<compile_context>
chip_gen: v7x
topology: tpu7x:2x2x1
jax: 0.10.0
libtpu: 0.0.40
codegen_flags: <defaults>
</compile_context>

<pallas_src>
import functools
import math

import jax
import jax.numpy as jnp
from jax import lax
from jax.experimental import pallas as pl
from jax.experimental.pallas import tpu as pltpu


# ----------------------------------------------------------------------------
# Kernel: one batch element per grid step; everything stays in VMEM.
# ----------------------------------------------------------------------------
def transformer_block_kernel(x_ref, wc_ref, bc_ref, wl_ref, bl_ref,
                             wq_ref, bq_ref, wk_ref, bk_ref,
                             wvo_ref, bvo_ref, bo_ref, wff_ref, o_ref,
                             *, num_heads, num_layers, head_dim):
    f32 = jnp.float32
    bf16 = jnp.bfloat16

    x = x_ref[0]                                   # (L, c1) f32
    L = x.shape[0]
    E = wc_ref.shape[1]

    # Head-column selector (hoisted; broadcast_in_dim is not CSE'd by JAX).
    lane = lax.broadcasted_iota(jnp.int32, (1, E), 1)

    # ---- 1x1 conv (BN scale folded into weight) + bias + SiLU ----
    y = jnp.dot(x.astype(bf16), wc_ref[...], preferred_element_type=f32) + bc_ref[...]
    y = y * pl.reciprocal(1.0 + jnp.exp(-y), approx=True)       # SiLU via EUP

    # ---- p + linear(p): identity folded into wl ----
    p = jnp.dot(y.astype(bf16), wl_ref[...], preferred_element_type=f32) + bl_ref[...]

    # ---- Transformer layers (static: only num_layers bodies; big tensors live in fori) ----
    for l in range(num_layers):
        pb = p.astype(bf16)
        # Lane-dense per-layer projections; 1/sqrt(head_dim) folded into wq/bq offline.
        q = jnp.dot(pb, wq_ref[l], preferred_element_type=f32) + bq_ref[l]
        k = jnp.dot(pb, wk_ref[l], preferred_element_type=f32) + bk_ref[l]
        qb = q.astype(bf16)
        kb = k.astype(bf16)

        def head_body(h, acc, pb=pb, qb=qb, kb=kb, l=l):
            # Select head h's columns of K with a lane mask -> masked NT contraction
            # gives exactly q_h @ k_h^T without slicing or transposing activations.
            msk = ((lane >= h * head_dim) & (lane < (h + 1) * head_dim)).astype(bf16)
            s = lax.dot_general(qb, kb * msk, (((1,), (1,)), ((), ())),
                                preferred_element_type=f32)      # (L, L) f32
            e = jnp.exp(s - jnp.max(s, axis=-1, keepdims=True))
            a = (e * pl.reciprocal(jnp.sum(e, axis=-1, keepdims=True),
                                   approx=True)).astype(bf16)    # softmax probs
            # Value + out-proj folded per head: U_h = p @ (WV_h Wo_h) + bv_h Wo_h
            u = (jnp.dot(pb, wvo_ref[l, h], preferred_element_type=f32)
                 + bvo_ref[l, h]).astype(bf16)                   # (L, E)
            return acc + jnp.dot(a, u, preferred_element_type=f32)

        acc = lax.fori_loop(0, num_heads, head_body, jnp.zeros((L, E), f32))

        p = acc + bo_ref[l] + p                                  # out_proj bias + residual
        p = jnp.dot(p.astype(bf16), wff_ref[l],
                    preferred_element_type=f32) + p              # fc2(fc1(.)) folded

    o_ref[0] = p.astype(o_ref.dtype)


# ----------------------------------------------------------------------------
# pallas_call wrapper (operates on (b, L, c1) layout)
# ----------------------------------------------------------------------------
def transformer_block_pallas(x_blc, kp, num_heads, num_layers):
    b, L, c1 = x_blc.shape
    E = kp["wc"].shape[1]
    hd = E // num_heads

    def full(arr):
        nd = arr.ndim
        return pl.BlockSpec(arr.shape, lambda n, _nd=nd: (0,) * _nd)

    names = ["wc", "bc", "wl", "bl", "wq", "bq", "wk", "bk", "wvo", "bvo", "bo", "wff"]

    kernel = functools.partial(transformer_block_kernel,
                               num_heads=num_heads, num_layers=num_layers,
                               head_dim=hd)
    return pl.pallas_call(
        kernel,
        out_shape=jax.ShapeDtypeStruct((b, L, E), jnp.float32),
        grid=(b,),
        in_specs=[pl.BlockSpec((1, L, c1), lambda n: (n, 0, 0))]
                 + [full(kp[nm]) for nm in names],
        out_specs=pl.BlockSpec((1, L, E), lambda n: (n, 0, 0)),
        compiler_params=pltpu.CompilerParams(
            dimension_semantics=("parallel",),        # 2 TCs on v7x take one batch each
            vmem_limit_bytes=32 * 1024 * 1024),
    )(x_blc, *[kp[nm] for nm in names])


def transformer_block_forward(x_nchw, kp, num_heads, num_layers):
    """NCHW in / NCHW out, matching the PyTorch module."""
    b, c1, w, h = x_nchw.shape
    L = w * h
    E = kp["wc"].shape[1]
    x_blc = jnp.transpose(x_nchw.reshape(b, c1, L), (0, 2, 1))   # (b, L, c1)
    o_blc = transformer_block_pallas(x_blc, kp, num_heads, num_layers)
    return jnp.transpose(o_blc, (0, 2, 1)).reshape(b, E, w, h)


# ----------------------------------------------------------------------------
# Parameters: PyTorch-native shapes + offline folding into kernel layout
# ----------------------------------------------------------------------------
def init_params(key, c1, c2, num_layers, eps=1e-5):
    keys = iter(jax.random.split(key, 16 + 16 * num_layers))
    nrm = lambda shape, s=0.15: s * jax.random.normal(next(keys), shape, jnp.float32)
    P = {
        "conv_w": nrm((c2, c1)),                       # Conv2d(c1,c2,1,bias=False)
        "bn_gamma": 1.0 + nrm((c2,), 0.1),
        "bn_beta": nrm((c2,), 0.1),
        "bn_mean": nrm((c2,), 0.1),
        "bn_var": 0.5 + jnp.abs(nrm((c2,), 0.5)),
        "lin_w": nrm((c2, c2)),                        # nn.Linear(c2,c2)
        "lin_b": nrm((c2,), 0.1),
        "eps": eps,
        "layers": [],
    }
    for _ in range(num_layers):
        P["layers"].append({
            "wq": nrm((c2, c2)), "wk": nrm((c2, c2)), "wv": nrm((c2, c2)),   # bias-free
            "in_proj_w": nrm((3 * c2, c2)), "in_proj_b": nrm((3 * c2,), 0.1),
            "out_proj_w": nrm((c2, c2)), "out_proj_b": nrm((c2,), 0.1),
            "fc1": nrm((c2, c2)), "fc2": nrm((c2, c2)),                       # bias-free
        })
    return P


def fold_params(P, num_heads):
    """All parameter-only algebra done offline; matmul weights materialised in bf16."""
    c2 = P["conv_w"].shape[0]
    hd = c2 // num_heads
    eye = jnp.eye(c2, dtype=jnp.float32)
    scale = 1.0 / math.sqrt(hd)

    s = P["bn_gamma"] * jax.lax.rsqrt(P["bn_var"] + P["eps"])
    wc = (P["conv_w"] * s[:, None]).T                          # (c1, c2)
    bc = (P["bn_beta"] - P["bn_mean"] * s)[None, :]            # (1, c2)
    wl = P["lin_w"].T + eye                                    # p + linear(p)
    bl = P["lin_b"][None, :]

    wq_l, bq_l, wk_l, bk_l, wvo_l, bvo_l, bo_l, wff_l = ([] for _ in range(8))
    for lp in P["layers"]:
        Wiq, Wik, Wiv = jnp.split(lp["in_proj_w"], 3, axis=0)
        biq, bik, biv = jnp.split(lp["in_proj_b"], 3, axis=0)
        WQ = (Wiq @ lp["wq"]).T * scale                        # 1/sqrt(hd) folded into Q path
        WK = (Wik @ lp["wk"]).T
        WV = (Wiv @ lp["wv"]).T
        WoT = lp["out_proj_w"].T                               # y = concat_heads @ WoT + bo

        wq_l.append(WQ)
        bq_l.append((biq * scale)[None, :])
        wk_l.append(WK)
        bk_l.append(bik[None, :])
        # Per-head value*out_proj fold: U_h = p @ (WV_h @ Wo_h) + biv_h @ Wo_h
        wvo_l.append(jnp.stack([
            WV[:, h * hd:(h + 1) * hd] @ WoT[h * hd:(h + 1) * hd, :]
            for h in range(num_heads)]))
        bvo_l.append(jnp.stack([
            (biv[h * hd:(h + 1) * hd] @ WoT[h * hd:(h + 1) * hd, :])[None, :]
            for h in range(num_heads)]))
        bo_l.append(lp["out_proj_b"][None, :])
        wff_l.append((lp["fc2"] @ lp["fc1"]).T)                # fc2(fc1(x)) = x @ (W2 W1)^T

    bf16 = jnp.bfloat16
    return {
        "wc": wc.astype(bf16), "bc": bc,
        "wl": wl.astype(bf16), "bl": bl,
        "wq": jnp.stack(wq_l).astype(bf16), "bq": jnp.stack(bq_l),
        "wk": jnp.stack(wk_l).astype(bf16), "bk": jnp.stack(bk_l),
        "wvo": jnp.stack(wvo_l).astype(bf16), "bvo": jnp.stack(bvo_l),
        "bo": jnp.stack(bo_l),
        "wff": jnp.stack(wff_l).astype(bf16),
    }


# ----------------------------------------------------------------------------
# Plain-JAX reference that follows the PyTorch module literally (unfolded weights)
# ----------------------------------------------------------------------------
def reference(x_nchw, P, num_heads):
    b, c1, w, h = x_nchw.shape
    c2 = P["conv_w"].shape[0]
    hd = c2 // num_heads
    L = w * h

    y = jnp.einsum("bcwh,oc->bowh", x_nchw, P["conv_w"])
    s = P["bn_gamma"] / jnp.sqrt(P["bn_var"] + P["eps"])
    y = (y - P["bn_mean"][None, :, None, None]) * s[None, :, None, None] \
        + P["bn_beta"][None, :, None, None]
    y = y * jax.nn.sigmoid(y)                                  # SiLU

    p = jnp.transpose(y.reshape(b, c2, L), (2, 0, 1))          # (L, b, c2)
    p = p + p @ P["lin_w"].T + P["lin_b"]

    for lp in P["layers"]:
        q = p @ lp["wq"].T
        k = p @ lp["wk"].T
        v = p @ lp["wv"].T
        Wiq, Wik, Wiv = jnp.split(lp["in_proj_w"], 3, axis=0)
        biq, bik, biv = jnp.split(lp["in_proj_b"], 3, axis=0)
        Q = q @ Wiq.T + biq
        K = k @ Wik.T + bik
        V = v @ Wiv.T + biv
        Qh = jnp.transpose(Q.reshape(L, b, num_heads, hd), (1, 2, 0, 3))
        Kh = jnp.transpose(K.reshape(L, b, num_heads, hd), (1, 2, 0, 3))
        Vh = jnp.transpose(V.reshape(L, b, num_heads, hd), (1, 2, 0, 3))
        sc = jnp.einsum("bhqd,bhkd->bhqk", Qh, Kh) / math.sqrt(hd)
        a = jax.nn.softmax(sc, axis=-1)
        oh = jnp.einsum("bhqk,bhkd->bhqd", a, Vh)
        o = jnp.transpose(oh, (2, 0, 1, 3)).reshape(L, b, c2)
        o = o @ lp["out_proj_w"].T + lp["out_proj_b"]
        p = o + p
        p = (p @ lp["fc1"].T) @ lp["fc2"].T + p

    return jnp.transpose(p, (1, 2, 0)).reshape(b, c2, w, h)


# ----------------------------------------------------------------------------
if __name__ == "__main__":
    key = jax.random.PRNGKey(0)
    kx, kp = jax.random.split(key)

    b, c1, w, h = 2, 4, 16, 16          # input NCHW
    c2, num_heads, num_layers = 32, 4, 2

    x = jax.random.normal(kx, (b, c1, w, h), jnp.float32)
    P = init_params(kp, c1, c2, num_layers)
    KP = fold_params(P, num_heads)

    y = transformer_block_forward(x, KP, num_heads, num_layers)
    jax.block_until_ready(y)

    with jax.default_matmul_precision("highest"):
        y_ref = reference(x, P, num_heads)
    err = float(jnp.max(jnp.abs(y - y_ref)))
    assert y.shape == (b, c2, w, h)
    # bf16 MXU inputs + approx-reciprocal softmax/SiLU -> slightly looser tolerance than f32
    assert jnp.allclose(y, y_ref, atol=2e-2, rtol=2e-2), f"max abs err {err}"
    print("KERNEL_OK")
</pallas_src>

<mosaic_0001>
module attributes {stable_mosaic.version = 11 : i64} {
  func.func @transformer_block_kernel(%arg0: i32, %arg1: memref<1x256x4xf32, #tpu.memory_space<vmem>>, %arg2: memref<4x32xbf16, #tpu.memory_space<vmem>>, %arg3: memref<1x32xf32, #tpu.memory_space<vmem>>, %arg4: memref<32x32xbf16, #tpu.memory_space<vmem>>, %arg5: memref<1x32xf32, #tpu.memory_space<vmem>>, %arg6: memref<2x32x32xbf16, #tpu.memory_space<vmem>>, %arg7: memref<2x1x32xf32, #tpu.memory_space<vmem>>, %arg8: memref<2x32x32xbf16, #tpu.memory_space<vmem>>, %arg9: memref<2x1x32xf32, #tpu.memory_space<vmem>>, %arg10: memref<2x4x32x32xbf16, #tpu.memory_space<vmem>>, %arg11: memref<2x4x1x32xf32, #tpu.memory_space<vmem>>, %arg12: memref<2x1x32xf32, #tpu.memory_space<vmem>>, %arg13: memref<2x32x32xbf16, #tpu.memory_space<vmem>>, %arg14: memref<1x256x32xf32, #tpu.memory_space<vmem>>) attributes {dimension_semantics = [#tpu.dimension_semantics<parallel>], iteration_bounds = array<i64: 2>, scalar_prefetch = 0 : i64, scratch_operands = 0 : i64, tpu.core_type = #tpu.core_type<tc>, window_params = [{transform_indices = @transform_0, window_bounds = array<i64: 1, 256, 4>}, {pipeline_mode = #tpu.pipeline_mode<synchronous>, transform_indices = @transform_1, window_bounds = array<i64: 4, 32>}, {pipeline_mode = #tpu.pipeline_mode<synchronous>, transform_indices = @transform_2, window_bounds = array<i64: 1, 32>}, {pipeline_mode = #tpu.pipeline_mode<synchronous>, transform_indices = @transform_3, window_bounds = array<i64: 32, 32>}, {pipeline_mode = #tpu.pipeline_mode<synchronous>, transform_indices = @transform_4, window_bounds = array<i64: 1, 32>}, {pipeline_mode = #tpu.pipeline_mode<synchronous>, transform_indices = @transform_5, window_bounds = array<i64: 2, 32, 32>}, {pipeline_mode = #tpu.pipeline_mode<synchronous>, transform_indices = @transform_6, window_bounds = array<i64: 2, 1, 32>}, {pipeline_mode = #tpu.pipeline_mode<synchronous>, transform_indices = @transform_7, window_bounds = array<i64: 2, 32, 32>}, {pipeline_mode = #tpu.pipeline_mode<synchronous>, transform_indices = @transform_8, window_bounds = array<i64: 2, 1, 32>}, {pipeline_mode = #tpu.pipeline_mode<synchronous>, transform_indices = @transform_9, window_bounds = array<i64: 2, 4, 32, 32>}, {pipeline_mode = #tpu.pipeline_mode<synchronous>, transform_indices = @transform_10, window_bounds = array<i64: 2, 4, 1, 32>}, {pipeline_mode = #tpu.pipeline_mode<synchronous>, transform_indices = @transform_11, window_bounds = array<i64: 2, 1, 32>}, {pipeline_mode = #tpu.pipeline_mode<synchronous>, transform_indices = @transform_12, window_bounds = array<i64: 2, 32, 32>}, {transform_indices = @transform_13, window_bounds = array<i64: 1, 256, 32>}]} {
    %c0 = arith.constant 0 : index
    %c0_0 = arith.constant 0 : index
    %c0_1 = arith.constant 0 : index
    %0 = vector.load %arg1[%c0, %c0_0, %c0_1] : memref<1x256x4xf32, #tpu.memory_space<vmem>>, vector<1x256x4xf32>
    %1 = vector.shape_cast %0 : vector<1x256x4xf32> to vector<256x4xf32>
    %2 = tpu.iota {dimensions = array<i32: 1>} : vector<1x32xi32>
    %3 = arith.truncf %1 : vector<256x4xf32> to vector<256x4xbf16>
    %c0_2 = arith.constant 0 : index
    %c0_3 = arith.constant 0 : index
    %4 = vector.load %arg2[%c0_2, %c0_3] : memref<4x32xbf16, #tpu.memory_space<vmem>>, vector<4x32xbf16>
    %cst = arith.constant dense<0.000000e+00> : vector<256x32xf32>
    %5 = tpu.matmul %3, %4, %cst {dimension_numbers = #tpu.dot_dimension_numbers<[1], [0], [0], [1], [0, 0, 1, 1], [], []>} : vector<256x4xbf16>, vector<4x32xbf16>, vector<256x32xf32> -> vector<256x32xf32>
    %c0_4 = arith.constant 0 : index
    %c0_5 = arith.constant 0 : index
    %6 = vector.load %arg3[%c0_4, %c0_5] : memref<1x32xf32, #tpu.memory_space<vmem>>, vector<1x32xf32>
    %7 = vector.broadcast %6 : vector<1x32xf32> to vector<256x32xf32>
    %8 = arith.addf %5, %7 : vector<256x32xf32>
    %cst_6 = arith.constant 0.000000e+00 : f32
    %9 = vector.broadcast %cst_6 : f32 to vector<256x32xf32>
    %10 = arith.subf %9, %8 : vector<256x32xf32>
    %11 = math.exp %10 : vector<256x32xf32>
    %cst_7 = arith.constant 1.000000e+00 : f32
    %12 = vector.broadcast %cst_7 : f32 to vector<256x32xf32>
    %13 = arith.addf %12, %11 : vector<256x32xf32>
    %14 = tpu.reciprocal %13 {approx = true} : vector<256x32xf32> -> vector<256x32xf32>
    %15 = arith.mulf %8, %14 : vector<256x32xf32>
    %16 = arith.truncf %15 : vector<256x32xf32> to vector<256x32xbf16>
    %c0_8 = arith.constant 0 : index
    %c0_9 = arith.constant 0 : index
    %17 = vector.load %arg4[%c0_8, %c0_9] : memref<32x32xbf16, #tpu.memory_space<vmem>>, vector<32x32xbf16>
    %cst_10 = arith.constant dense<0.000000e+00> : vector<256x32xf32>
    %18 = tpu.matmul %16, %17, %cst_10 {dimension_numbers = #tpu.dot_dimension_numbers<[1], [0], [0], [1], [0, 0, 1, 1], [], []>} : vector<256x32xbf16>, vector<32x32xbf16>, vector<256x32xf32> -> vector<256x32xf32>
    %c0_11 = arith.constant 0 : index
    %c0_12 = arith.constant 0 : index
    %19 = vector.load %arg5[%c0_11, %c0_12] : memref<1x32xf32, #tpu.memory_space<vmem>>, vector<1x32xf32>
    %20 = vector.broadcast %19 : vector<1x32xf32> to vector<256x32xf32>
    %21 = arith.addf %18, %20 : vector<256x32xf32>
    %22 = arith.truncf %21 : vector<256x32xf32> to vector<256x32xbf16>
    %c0_13 = arith.constant 0 : index
    %c0_14 = arith.constant 0 : index
    %c0_15 = arith.constant 0 : index
    %23 = vector.load %arg6[%c0_13, %c0_14, %c0_15] : memref<2x32x32xbf16, #tpu.memory_space<vmem>>, vector<1x32x32xbf16>
    %24 = vector.shape_cast %23 : vector<1x32x32xbf16> to vector<32x32xbf16>
    %cst_16 = arith.constant dense<0.000000e+00> : vector<256x32xf32>
    %25 = tpu.matmul %22, %24, %cst_16 {dimension_numbers = #tpu.dot_dimension_numbers<[1], [0], [0], [1], [0, 0, 1, 1], [], []>} : vector<256x32xbf16>, vector<32x32xbf16>, vector<256x32xf32> -> vector<256x32xf32>
    %c0_17 = arith.constant 0 : index
    %c0_18 = arith.constant 0 : index
    %c0_19 = arith.constant 0 : index
    %26 = vector.load %arg7[%c0_17, %c0_18, %c0_19] : memref<2x1x32xf32, #tpu.memory_space<vmem>>, vector<1x1x32xf32>
    %27 = vector.shape_cast %26 : vector<1x1x32xf32> to vector<1x32xf32>
    %28 = vector.broadcast %27 : vector<1x32xf32> to vector<256x32xf32>
    %29 = arith.addf %25, %28 : vector<256x32xf32>
    %c0_20 = arith.constant 0 : index
    %c0_21 = arith.constant 0 : index
    %c0_22 = arith.constant 0 : index
    %30 = vector.load %arg8[%c0_20, %c0_21, %c0_22] : memref<2x32x32xbf16, #tpu.memory_space<vmem>>, vector<1x32x32xbf16>
    %31 = vector.shape_cast %30 : vector<1x32x32xbf16> to vector<32x32xbf16>
    %cst_23 = arith.constant dense<0.000000e+00> : vector<256x32xf32>
    %32 = tpu.matmul %22, %31, %cst_23 {dimension_numbers = #tpu.dot_dimension_numbers<[1], [0], [0], [1], [0, 0, 1, 1], [], []>} : vector<256x32xbf16>, vector<32x32xbf16>, vector<256x32xf32> -> vector<256x32xf32>
    %c0_24 = arith.constant 0 : index
    %c0_25 = arith.constant 0 : index
    %c0_26 = arith.constant 0 : index
    %33 = vector.load %arg9[%c0_24, %c0_25, %c0_26] : memref<2x1x32xf32, #tpu.memory_space<vmem>>, vector<1x1x32xf32>
    %34 = vector.shape_cast %33 : vector<1x1x32xf32> to vector<1x32xf32>
    %35 = vector.broadcast %34 : vector<1x32xf32> to vector<256x32xf32>
    %36 = arith.addf %32, %35 : vector<256x32xf32>
    %37 = arith.truncf %29 : vector<256x32xf32> to vector<256x32xbf16>
    %38 = arith.truncf %36 : vector<256x32xf32> to vector<256x32xbf16>
    %cst_27 = arith.constant 0.000000e+00 : f32
    %39 = vector.broadcast %cst_27 : f32 to vector<256x32xf32>
    %c0_i32 = arith.constant 0 : i32
    %c4_i32 = arith.constant 4 : i32
    %40 = arith.addi %c0_i32, %c4_i32 : i32
    %c1_i32 = arith.constant 1 : i32
    %41 = scf.for %arg15 = %c0_i32 to %40 step %c1_i32 iter_args(%arg16 = %39) -> (vector<256x32xf32>)  : i32 {
      %c8_i32 = arith.constant 8 : i32
      %85 = arith.muli %arg15, %c8_i32 : i32
      %86 = vector.broadcast %85 : i32 to vector<1x32xi32>
      %87 = arith.cmpi sge, %2, %86 : vector<1x32xi32>
      %c1_i32_64 = arith.constant 1 : i32
      %88 = arith.addi %arg15, %c1_i32_64 : i32
      %c8_i32_65 = arith.constant 8 : i32
      %89 = arith.muli %88, %c8_i32_65 : i32
      %90 = vector.broadcast %89 : i32 to vector<1x32xi32>
      %91 = arith.cmpi slt, %2, %90 : vector<1x32xi32>
      %92 = arith.andi %87, %91 : vector<1x32xi1>
      %93 = arith.extui %92 : vector<1x32xi1> to vector<1x32xi32>
      %94 = arith.sitofp %93 : vector<1x32xi32> to vector<1x32xf32>
      %95 = arith.truncf %94 : vector<1x32xf32> to vector<1x32xbf16>
      %96 = vector.broadcast %95 : vector<1x32xbf16> to vector<256x32xbf16>
      %97 = arith.mulf %38, %96 : vector<256x32xbf16>
      %cst_66 = arith.constant dense<0.000000e+00> : vector<256x256xf32>
      %98 = tpu.matmul %37, %97, %cst_66 {dimension_numbers = #tpu.dot_dimension_numbers<[1], [1], [0], [0], [0, 0, 1, 0], [], []>} : vector<256x32xbf16>, vector<256x32xbf16>, vector<256x256xf32> -> vector<256x256xf32>
      %cst_67 = arith.constant dense<0xFF800000> : vector<256xf32>
      %99 = vector.multi_reduction <maximumf>, %98, %cst_67 [1] : vector<256x256xf32> to vector<256xf32>
      %100 = vector.shape_cast %99 : vector<256xf32> to vector<256x1xf32>
      %101 = vector.broadcast %100 : vector<256x1xf32> to vector<256x256xf32>
      %102 = arith.subf %98, %101 : vector<256x256xf32>
      %103 = math.exp %102 : vector<256x256xf32>
      %cst_68 = arith.constant dense<0.000000e+00> : vector<256xf32>
      %104 = vector.multi_reduction <add>, %103, %cst_68 [1] : vector<256x256xf32> to vector<256xf32>
      %105 = vector.shape_cast %104 : vector<256xf32> to vector<256x1xf32>
      %106 = tpu.reciprocal %105 {approx = true} : vector<256x1xf32> -> vector<256x1xf32>
      %107 = vector.broadcast %106 : vector<256x1xf32> to vector<256x256xf32>
      %108 = arith.mulf %103, %107 : vector<256x256xf32>
      %109 = arith.truncf %108 : vector<256x256xf32> to vector<256x256xbf16>
      %c0_69 = arith.constant 0 : index
      %110 = arith.index_cast %arg15 : i32 to index
      %c0_70 = arith.constant 0 : index
      %c0_71 = arith.constant 0 : index
      %111 = vector.load %arg10[%c0_69, %110, %c0_70, %c0_71] : memref<2x4x32x32xbf16, #tpu.memory_space<vmem>>, vector<1x1x32x32xbf16>
      %112 = vector.shape_cast %111 : vector<1x1x32x32xbf16> to vector<32x32xbf16>
      %cst_72 = arith.constant dense<0.000000e+00> : vector<256x32xf32>
      %113 = tpu.matmul %22, %112, %cst_72 {dimension_numbers = #tpu.dot_dimension_numbers<[1], [0], [0], [1], [0, 0, 1, 1], [], []>} : vector<256x32xbf16>, vector<32x32xbf16>, vector<256x32xf32> -> vector<256x32xf32>
      %c0_73 = arith.constant 0 : index
      %114 = arith.index_cast %arg15 : i32 to index
      %c0_74 = arith.constant 0 : index
      %c0_75 = arith.constant 0 : index
      %115 = vector.load %arg11[%c0_73, %114, %c0_74, %c0_75] : memref<2x4x1x32xf32, #tpu.memory_space<vmem>>, vector<1x1x1x32xf32>
      %116 = vector.shape_cast %115 : vector<1x1x1x32xf32> to vector<1x32xf32>
      %117 = vector.broadcast %116 : vector<1x32xf32> to vector<256x32xf32>
      %118 = arith.addf %113, %117 : vector<256x32xf32>
      %119 = arith.truncf %118 : vector<256x32xf32> to vector<256x32xbf16>
      %cst_76 = arith.constant dense<0.000000e+00> : vector<256x32xf32>
      %120 = tpu.matmul %109, %119, %cst_76 {dimension_numbers = #tpu.dot_dimension_numbers<[1], [0], [0], [1], [0, 0, 1, 1], [], []>} : vector<256x256xbf16>, vector<256x32xbf16>, vector<256x32xf32> -> vector<256x32xf32>
      %121 = arith.addf %arg16, %120 : vector<256x32xf32>
      scf.yield %121 : vector<256x32xf32>
    }
    %c4_i32_28 = arith.constant 4 : i32
    %c0_29 = arith.constant 0 : index
    %c0_30 = arith.constant 0 : index
    %c0_31 = arith.constant 0 : index
    %42 = vector.load %arg12[%c0_29, %c0_30, %c0_31] : memref<2x1x32xf32, #tpu.memory_space<vmem>>, vector<1x1x32xf32>
    %43 = vector.shape_cast %42 : vector<1x1x32xf32> to vector<1x32xf32>
    %44 = vector.broadcast %43 : vector<1x32xf32> to vector<256x32xf32>
    %45 = arith.addf %41, %44 : vector<256x32xf32>
    %46 = arith.addf %45, %21 : vector<256x32xf32>
    %47 = arith.truncf %46 : vector<256x32xf32> to vector<256x32xbf16>
    %c0_32 = arith.constant 0 : index
    %c0_33 = arith.constant 0 : index
    %c0_34 = arith.constant 0 : index
    %48 = vector.load %arg13[%c0_32, %c0_33, %c0_34] : memref<2x32x32xbf16, #tpu.memory_space<vmem>>, vector<1x32x32xbf16>
    %49 = vector.shape_cast %48 : vector<1x32x32xbf16> to vector<32x32xbf16>
    %cst_35 = arith.constant dense<0.000000e+00> : vector<256x32xf32>
    %50 = tpu.matmul %47, %49, %cst_35 {dimension_numbers = #tpu.dot_dimension_numbers<[1], [0], [0], [1], [0, 0, 1, 1], [], []>} : vector<256x32xbf16>, vector<32x32xbf16>, vector<256x32xf32> -> vector<256x32xf32>
    %51 = arith.addf %50, %46 : vector<256x32xf32>
    %52 = arith.truncf %51 : vector<256x32xf32> to vector<256x32xbf16>
    %c1 = arith.constant 1 : index
    %c0_36 = arith.constant 0 : index
    %c0_37 = arith.constant 0 : index
    %53 = vector.load %arg6[%c1, %c0_36, %c0_37] : memref<2x32x32xbf16, #tpu.memory_space<vmem>>, vector<1x32x32xbf16>
    %54 = vector.shape_cast %53 : vector<1x32x32xbf16> to vector<32x32xbf16>
    %cst_38 = arith.constant dense<0.000000e+00> : vector<256x32xf32>
    %55 = tpu.matmul %52, %54, %cst_38 {dimension_numbers = #tpu.dot_dimension_numbers<[1], [0], [0], [1], [0, 0, 1, 1], [], []>} : vector<256x32xbf16>, vector<32x32xbf16>, vector<256x32xf32> -> vector<256x32xf32>
    %c1_39 = arith.constant 1 : index
    %c0_40 = arith.constant 0 : index
    %c0_41 = arith.constant 0 : index
    %56 = vector.load %arg7[%c1_39, %c0_40, %c0_41] : memref<2x1x32xf32, #tpu.memory_space<vmem>>, vector<1x1x32xf32>
    %57 = vector.shape_cast %56 : vector<1x1x32xf32> to vector<1x32xf32>
    %58 = vector.broadcast %57 : vector<1x32xf32> to vector<256x32xf32>
    %59 = arith.addf %55, %58 : vector<256x32xf32>
    %c1_42 = arith.constant 1 : index
    %c0_43 = arith.constant 0 : index
    %c0_44 = arith.constant 0 : index
    %60 = vector.load %arg8[%c1_42, %c0_43, %c0_44] : memref<2x32x32xbf16, #tpu.memory_space<vmem>>, vector<1x32x32xbf16>
    %61 = vector.shape_cast %60 : vector<1x32x32xbf16> to vector<32x32xbf16>
    %cst_45 = arith.constant dense<0.000000e+00> : vector<256x32xf32>
    %62 = tpu.matmul %52, %61, %cst_45 {dimension_numbers = #tpu.dot_dimension_numbers<[1], [0], [0], [1], [0, 0, 1, 1], [], []>} : vector<256x32xbf16>, vector<32x32xbf16>, vector<256x32xf32> -> vector<256x32xf32>
    %c1_46 = arith.constant 1 : index
    %c0_47 = arith.constant 0 : index
    %c0_48 = arith.constant 0 : index
    %63 = vector.load %arg9[%c1_46, %c0_47, %c0_48] : memref<2x1x32xf32, #tpu.memory_space<vmem>>, vector<1x1x32xf32>
    %64 = vector.shape_cast %63 : vector<1x1x32xf32> to vector<1x32xf32>
    %65 = vector.broadcast %64 : vector<1x32xf32> to vector<256x32xf32>
    %66 = arith.addf %62, %65 : vector<256x32xf32>
    %67 = arith.truncf %59 : vector<256x32xf32> to vector<256x32xbf16>
    %68 = arith.truncf %66 : vector<256x32xf32> to vector<256x32xbf16>
    %cst_49 = arith.constant 0.000000e+00 : f32
    %69 = vector.broadcast %cst_49 : f32 to vector<256x32xf32>
    %c0_i32_50 = arith.constant 0 : i32
    %c4_i32_51 = arith.constant 4 : i32
    %70 = arith.addi %c0_i32_50, %c4_i32_51 : i32
    %c1_i32_52 = arith.constant 1 : i32
    %71 = scf.for %arg15 = %c0_i32_50 to %70 step %c1_i32_52 iter_args(%arg16 = %69) -> (vector<256x32xf32>)  : i32 {
      %c8_i32 = arith.constant 8 : i32
      %85 = arith.muli %arg15, %c8_i32 : i32
      %86 = vector.broadcast %85 : i32 to vector<1x32xi32>
      %87 = arith.cmpi sge, %2, %86 : vector<1x32xi32>
      %c1_i32_64 = arith.constant 1 : i32
      %88 = arith.addi %arg15, %c1_i32_64 : i32
      %c8_i32_65 = arith.constant 8 : i32
      %89 = arith.muli %88, %c8_i32_65 : i32
      %90 = vector.broadcast %89 : i32 to vector<1x32xi32>
      %91 = arith.cmpi slt, %2, %90 : vector<1x32xi32>
      %92 = arith.andi %87, %91 : vector<1x32xi1>
      %93 = arith.extui %92 : vector<1x32xi1> to vector<1x32xi32>
      %94 = arith.sitofp %93 : vector<1x32xi32> to vector<1x32xf32>
      %95 = arith.truncf %94 : vector<1x32xf32> to vector<1x32xbf16>
      %96 = vector.broadcast %95 : vector<1x32xbf16> to vector<256x32xbf16>
      %97 = arith.mulf %68, %96 : vector<256x32xbf16>
      %cst_66 = arith.constant dense<0.000000e+00> : vector<256x256xf32>
      %98 = tpu.matmul %67, %97, %cst_66 {dimension_numbers = #tpu.dot_dimension_numbers<[1], [1], [0], [0], [0, 0, 1, 0], [], []>} : vector<256x32xbf16>, vector<256x32xbf16>, vector<256x256xf32> -> vector<256x256xf32>
      %cst_67 = arith.constant dense<0xFF800000> : vector<256xf32>
      %99 = vector.multi_reduction <maximumf>, %98, %cst_67 [1] : vector<256x256xf32> to vector<256xf32>
      %100 = vector.shape_cast %99 : vector<256xf32> to vector<256x1xf32>
      %101 = vector.broadcast %100 : vector<256x1xf32> to vector<256x256xf32>
      %102 = arith.subf %98, %101 : vector<256x256xf32>
      %103 = math.exp %102 : vector<256x256xf32>
      %cst_68 = arith.constant dense<0.000000e+00> : vector<256xf32>
      %104 = vector.multi_reduction <add>, %103, %cst_68 [1] : vector<256x256xf32> to vector<256xf32>
      %105 = vector.shape_cast %104 : vector<256xf32> to vector<256x1xf32>
      %106 = tpu.reciprocal %105 {approx = true} : vector<256x1xf32> -> vector<256x1xf32>
      %107 = vector.broadcast %106 : vector<256x1xf32> to vector<256x256xf32>
      %108 = arith.mulf %103, %107 : vector<256x256xf32>
      %109 = arith.truncf %108 : vector<256x256xf32> to vector<256x256xbf16>
      %c1_69 = arith.constant 1 : index
      %110 = arith.index_cast %arg15 : i32 to index
      %c0_70 = arith.constant 0 : index
      %c0_71 = arith.constant 0 : index
      %111 = vector.load %arg10[%c1_69, %110, %c0_70, %c0_71] : memref<2x4x32x32xbf16, #tpu.memory_space<vmem>>, vector<1x1x32x32xbf16>
      %112 = vector.shape_cast %111 : vector<1x1x32x32xbf16> to vector<32x32xbf16>
      %cst_72 = arith.constant dense<0.000000e+00> : vector<256x32xf32>
      %113 = tpu.matmul %52, %112, %cst_72 {dimension_numbers = #tpu.dot_dimension_numbers<[1], [0], [0], [1], [0, 0, 1, 1], [], []>} : vector<256x32xbf16>, vector<32x32xbf16>, vector<256x32xf32> -> vector<256x32xf32>
      %c1_73 = arith.constant 1 : index
      %114 = arith.index_cast %arg15 : i32 to index
      %c0_74 = arith.constant 0 : index
      %c0_75 = arith.constant 0 : index
      %115 = vector.load %arg11[%c1_73, %114, %c0_74, %c0_75] : memref<2x4x1x32xf32, #tpu.memory_space<vmem>>, vector<1x1x1x32xf32>
      %116 = vector.shape_cast %115 : vector<1x1x1x32xf32> to vector<1x32xf32>
      %117 = vector.broadcast %116 : vector<1x32xf32> to vector<256x32xf32>
      %118 = arith.addf %113, %117 : vector<256x32xf32>
      %119 = arith.truncf %118 : vector<256x32xf32> to vector<256x32xbf16>
      %cst_76 = arith.constant dense<0.000000e+00> : vector<256x32xf32>
      %120 = tpu.matmul %109, %119, %cst_76 {dimension_numbers = #tpu.dot_dimension_numbers<[1], [0], [0], [1], [0, 0, 1, 1], [], []>} : vector<256x256xbf16>, vector<256x32xbf16>, vector<256x32xf32> -> vector<256x32xf32>
      %121 = arith.addf %arg16, %120 : vector<256x32xf32>
      scf.yield %121 : vector<256x32xf32>
    }
    %c4_i32_53 = arith.constant 4 : i32
    %c1_54 = arith.constant 1 : index
    %c0_55 = arith.constant 0 : index
    %c0_56 = arith.constant 0 : index
    %72 = vector.load %arg12[%c1_54, %c0_55, %c0_56] : memref<2x1x32xf32, #tpu.memory_space<vmem>>, vector<1x1x32xf32>
    %73 = vector.shape_cast %72 : vector<1x1x32xf32> to vector<1x32xf32>
    %74 = vector.broadcast %73 : vector<1x32xf32> to vector<256x32xf32>
    %75 = arith.addf %71, %74 : vector<256x32xf32>
    %76 = arith.addf %75, %51 : vector<256x32xf32>
    %77 = arith.truncf %76 : vector<256x32xf32> to vector<256x32xbf16>
    %c1_57 = arith.constant 1 : index
    %c0_58 = arith.constant 0 : index
    %c0_59 = arith.constant 0 : index
    %78 = vector.load %arg13[%c1_57, %c0_58, %c0_59] : memref<2x32x32xbf16, #tpu.memory_space<vmem>>, vector<1x32x32xbf16>
    %79 = vector.shape_cast %78 : vector<1x32x32xbf16> to vector<32x32xbf16>
    %cst_60 = arith.constant dense<0.000000e+00> : vector<256x32xf32>
    %80 = tpu.matmul %77, %79, %cst_60 {dimension_numbers = #tpu.dot_dimension_numbers<[1], [0], [0], [1], [0, 0, 1, 1], [], []>} : vector<256x32xbf16>, vector<32x32xbf16>, vector<256x32xf32> -> vector<256x32xf32>
    %81 = arith.addf %80, %76 : vector<256x32xf32>
    %c0_61 = arith.constant 0 : index
    %c0_62 = arith.constant 0 : index
    %c0_63 = arith.constant 0 : index
    %82 = vector.load %arg14[%c0_61, %c0_62, %c0_63] : memref<1x256x32xf32, #tpu.memory_space<vmem>>, vector<1x256x32xf32>
    %83 = vector.shape_cast %82 : vector<1x256x32xf32> to vector<256x32xf32>
    %84 = vector.shape_cast %81 : vector<256x32xf32> to vector<1x256x32xf32>
    tpu.vector_store %arg14[%c0_61, %c0_62, %c0_63], %84 {strides = array<i32>} : memref<1x256x32xf32, #tpu.memory_space<vmem>>, vector<1x256x32xf32>,
    return
  }
  func.func @transform_0(%arg0: i32) -> (i32, i32, i32) {
    %c0_i32 = arith.constant 0 : i32
    %c0_i32_0 = arith.constant 0 : i32
    %c0_i32_1 = arith.constant 0 : i32
    return %arg0, %c0_i32, %c0_i32_0 : i32, i32, i32
  }
  func.func @transform_1(%arg0: i32) -> (i32, i32) {
    %c0_i32 = arith.constant 0 : i32
    %c0_i32_0 = arith.constant 0 : i32
    %c0_i32_1 = arith.constant 0 : i32
    return %c0_i32, %c0_i32_0 : i32, i32
  }
  func.func @transform_2(%arg0: i32) -> (i32, i32) {
    %c0_i32 = arith.constant 0 : i32
    %c0_i32_0 = arith.constant 0 : i32
    %c0_i32_1 = arith.constant 0 : i32
    return %c0_i32, %c0_i32_0 : i32, i32
  }
  func.func @transform_3(%arg0: i32) -> (i32, i32) {
    %c0_i32 = arith.constant 0 : i32
    %c0_i32_0 = arith.constant 0 : i32
    %c0_i32_1 = arith.constant 0 : i32
    return %c0_i32, %c0_i32_0 : i32, i32
  }
  func.func @transform_4(%arg0: i32) -> (i32, i32) {
    %c0_i32 = arith.constant 0 : i32
    %c0_i32_0 = arith.constant 0 : i32
    %c0_i32_1 = arith.constant 0 : i32
    return %c0_i32, %c0_i32_0 : i32, i32
  }
  func.func @transform_5(%arg0: i32) -> (i32, i32, i32) {
    %c0_i32 = arith.constant 0 : i32
    %c0_i32_0 = arith.constant 0 : i32
    %c0_i32_1 = arith.constant 0 : i32
    %c0_i32_2 = arith.constant 0 : i32
    return %c0_i32, %c0_i32_0, %c0_i32_1 : i32, i32, i32
  }
  func.func @transform_6(%arg0: i32) -> (i32, i32, i32) {
    %c0_i32 = arith.constant 0 : i32
    %c0_i32_0 = arith.constant 0 : i32
    %c0_i32_1 = arith.constant 0 : i32
    %c0_i32_2 = arith.constant 0 : i32
    return %c0_i32, %c0_i32_0, %c0_i32_1 : i32, i32, i32
  }
  func.func @transform_7(%arg0: i32) -> (i32, i32, i32) {
    %c0_i32 = arith.constant 0 : i32
    %c0_i32_0 = arith.constant 0 : i32
    %c0_i32_1 = arith.constant 0 : i32
    %c0_i32_2 = arith.constant 0 : i32
    return %c0_i32, %c0_i32_0, %c0_i32_1 : i32, i32, i32
  }
  func.func @transform_8(%arg0: i32) -> (i32, i32, i32) {
    %c0_i32 = arith.constant 0 : i32
    %c0_i32_0 = arith.constant 0 : i32
    %c0_i32_1 = arith.constant 0 : i32
    %c0_i32_2 = arith.constant 0 : i32
    return %c0_i32, %c0_i32_0, %c0_i32_1 : i32, i32, i32
  }
  func.func @transform_9(%arg0: i32) -> (i32, i32, i32, i32) {
    %c0_i32 = arith.constant 0 : i32
    %c0_i32_0 = arith.constant 0 : i32
    %c0_i32_1 = arith.constant 0 : i32
    %c0_i32_2 = arith.constant 0 : i32
    %c0_i32_3 = arith.constant 0 : i32
    return %c0_i32, %c0_i32_0, %c0_i32_1, %c0_i32_2 : i32, i32, i32, i32
  }
  func.func @transform_10(%arg0: i32) -> (i32, i32, i32, i32) {
    %c0_i32 = arith.constant 0 : i32
    %c0_i32_0 = arith.constant 0 : i32
    %c0_i32_1 = arith.constant 0 : i32
    %c0_i32_2 = arith.constant 0 : i32
    %c0_i32_3 = arith.constant 0 : i32
    return %c0_i32, %c0_i32_0, %c0_i32_1, %c0_i32_2 : i32, i32, i32, i32
  }
  func.func @transform_11(%arg0: i32) -> (i32, i32, i32) {
    %c0_i32 = arith.constant 0 : i32
    %c0_i32_0 = arith.constant 0 : i32
    %c0_i32_1 = arith.constant 0 : i32
    %c0_i32_2 = arith.constant 0 : i32
    return %c0_i32, %c0_i32_0, %c0_i32_1 : i32, i32, i32
  }
  func.func @transform_12(%arg0: i32) -> (i32, i32, i32) {
    %c0_i32 = arith.constant 0 : i32
    %c0_i32_0 = arith.constant 0 : i32
    %c0_i32_1 = arith.constant 0 : i32
    %c0_i32_2 = arith.constant 0 : i32
    return %c0_i32, %c0_i32_0, %c0_i32_1 : i32, i32, i32
  }
  func.func @transform_13(%arg0: i32) -> (i32, i32, i32) {
    %c0_i32 = arith.constant 0 : i32
    %c0_i32_0 = arith.constant 0 : i32
    %c0_i32_1 = arith.constant 0 : i32
    return %arg0, %c0_i32, %c0_i32_0 : i32, i32, i32
  }
}

</mosaic_0001>

<llo_original>
// kernel: tpu_custom_call.1
$region0: #{tpu_custom_call.1}
  #allocation0 [shape = 'u32[]', space=smem, size = 0x4, offset = 0x4, fixed_abs, tag = 'smem constant byte address 0x4 - core index']
  #allocation1 [shape = 'u32[144,128]{1,0:T(1,128)}', space=vmem, size = 0x12000, scoped, tag = 'internal scratch']
  %s0 = inlined_call_operand.vmem [shape: f32[2,256,4], index: 0, kind: input, shape index: {}]
  %s1 = inlined_call_operand.vmem [shape: bf16[4,32], index: 1, kind: input, shape index: {}]
  %s2 = inlined_call_operand.vmem [shape: f32[1,32], index: 2, kind: input, shape index: {}]
  %s3 = inlined_call_operand.vmem [shape: bf16[32,32], index: 3, kind: input, shape index: {}]
  %s4 = inlined_call_operand.vmem [shape: f32[1,32], index: 4, kind: input, shape index: {}]
  %s5 = inlined_call_operand.vmem [shape: bf16[2,32,32], index: 5, kind: input, shape index: {}]
  %s6 = inlined_call_operand.vmem [shape: f32[2,1,32], index: 6, kind: input, shape index: {}]
  %s7 = inlined_call_operand.vmem [shape: bf16[2,32,32], index: 7, kind: input, shape index: {}]
  %s8 = inlined_call_operand.vmem [shape: f32[2,1,32], index: 8, kind: input, shape index: {}]
  %s9 = inlined_call_operand.vmem [shape: bf16[2,4,32,32], index: 9, kind: input, shape index: {}]
  %s10 = inlined_call_operand.vmem [shape: f32[2,4,1,32], index: 10, kind: input, shape index: {}]
  %s11 = inlined_call_operand.vmem [shape: f32[2,1,32], index: 11, kind: input, shape index: {}]
  %s12 = inlined_call_operand.vmem [shape: bf16[2,32,32], index: 12, kind: input, shape index: {}]
  %s13 = inlined_call_operand.vmem [shape: f32[2,256,32], index: 13, kind: output, shape index: {}]
  %s14 = sld [smem:[#allocation0]]
  $region99: #{tpu_custom_call.1} parent=0
    _
  %s16 = ssub.s32 1, %s14
  %s17 = scalar_select 0, %s16, %s14
  loop: start=0, step=1, limit=4
  $region2: #{tpu_custom_call.1} parent=0 // loop_pre_header
    _
  $region3: #{tpu_custom_call.1} parent=0 // loop_header
    %s19 = sphi 0, %s23
    %p20 = scmp.ge.s32.totalorder %s19, 4
    %s29 = sphi 0, %s31
    %s32 = sphi 0, %s29
    %s33 = sphi 0, %s32
    %s49 = sphi 0, %s33
    %s53 = sphi 0, %s53
    %s55 = sphi 0, %s53
    %s56 = sphi 0, %s55
    %s70 = sphi 0, %s56
    %s74 = sphi 0, %s74
    %s76 = sphi 0, %s74
    %s77 = sphi 0, %s76
    %s91 = sphi 0, %s77
    %s95 = sphi 0, %s95
    %s97 = sphi 0, %s95
    %s98 = sphi 0, %s97
    %s112 = sphi 0, %s98
    %s116 = sphi 0, %s116
    %s118 = sphi 0, %s116
    %s119 = sphi 0, %s118
    %s133 = sphi 0, %s119
    %s137 = sphi 0, %s137
    %s139 = sphi 0, %s137
    %s140 = sphi 0, %s139
    %s154 = sphi 0, %s140
    %s158 = sphi 0, %s158
    %s160 = sphi 0, %s158
    %s161 = sphi 0, %s160
    %s175 = sphi 0, %s161
    %s179 = sphi 0, %s179
    %s181 = sphi 0, %s179
    %s182 = sphi 0, %s181
    %s196 = sphi 0, %s182
    %s200 = sphi 0, %s200
    %s202 = sphi 0, %s200
    %s203 = sphi 0, %s202
    %s217 = sphi 0, %s203
    %s221 = sphi 0, %s221
    %s223 = sphi 0, %s221
    %s224 = sphi 0, %s223
    %s238 = sphi 0, %s224
    %s242 = sphi 0, %s242
    %s244 = sphi 0, %s242
    %s245 = sphi 0, %s244
    %s259 = sphi 0, %s245
    %s263 = sphi 0, %s263
    %s265 = sphi 0, %s263
    %s266 = sphi 0, %s265
    %s280 = sphi 0, %s266
    %s284 = sphi 0, %s284
    %s286 = sphi 0, %s284
    %s287 = sphi 0, %s286
    %s301 = sphi 0, %s287
    %s307 = sphi 0, %s309
    %s310 = sphi 0, %s307
    %s311 = sphi 0, %s310
    %s327 = sphi 0, %s311
  $region4: #{tpu_custom_call.1} parent=0 // loop_header_branch
    %22 = sbr.rel (%p20) target = $region8
  $region5: #{tpu_custom_call.1} parent=0 // loop_body
    %s24 = ssub.s32 %s19, 1
    %s25 = ssub.s32 %s19, 2
    %s26 = sadd.s32 %s19, 1
    %s27 = ssub.s32 %s19, %s26
    %p28 = scmp.eq.s32.totalorder %s27, 0
    %s30 = sadd.s32 %s29, 1
    %s31 = scalar_select %p28, %s29, %s30
    %p34 = pneg %p28
    %p35 = scmp.eq.s32.totalorder %s19, 1
    %p36 = por %p34, %p35
    %p37 = scmp.ne.s32.totalorder %s29, %s32
    %p38 = scmp.eq.s32.totalorder %s19, 0
    %p39 = por %p37, %p38
    %p40 = scmp.ne.s32.totalorder %s29, %s32
    %p41 = scmp.eq.s32.totalorder %s24, 1
    %p42 = por %p40, %p41
    %p43 = scmp.ne.s32.totalorder %s32, %s33
    %p44 = scmp.eq.s32.totalorder %s24, 0
    %p45 = por %p43, %p44
    %p46 = scmp.ne.s32.totalorder %s32, %s33
    %p47 = scmp.eq.s32.totalorder %s25, 1
    %p48 = por %p46, %p47
    %p50 = scmp.ne.s32.totalorder %s33, %s49
    %p51 = scmp.eq.s32.totalorder %s25, 0
    %p52 = por %p50, %p51
    %s54 = sadd.s32 %s53, 1
    %p57 = scmp.eq.s32.totalorder %s19, 1
    %p58 = scmp.ne.s32.totalorder %s53, %s55
    %p59 = scmp.eq.s32.totalorder %s19, 0
    %p60 = por %p58, %p59
    %p61 = scmp.ne.s32.totalorder %s53, %s55
    %p62 = scmp.eq.s32.totalorder %s24, 1
    %p63 = por %p61, %p62
    %p64 = scmp.ne.s32.totalorder %s55, %s56
    %p65 = scmp.eq.s32.totalorder %s24, 0
    %p66 = por %p64, %p65
    %p67 = scmp.ne.s32.totalorder %s55, %s56
    %p68 = scmp.eq.s32.totalorder %s25, 1
    %p69 = por %p67, %p68
    %p71 = scmp.ne.s32.totalorder %s56, %s70
    %p72 = scmp.eq.s32.totalorder %s25, 0
    %p73 = por %p71, %p72
    %s75 = sadd.s32 %s74, 1
    %p78 = scmp.eq.s32.totalorder %s19, 1
    %p79 = scmp.ne.s32.totalorder %s74, %s76
    %p80 = scmp.eq.s32.totalorder %s19, 0
    %p81 = por %p79, %p80
    %p82 = scmp.ne.s32.totalorder %s74, %s76
    %p83 = scmp.eq.s32.totalorder %s24, 1
    %p84 = por %p82, %p83
    %p85 = scmp.ne.s32.totalorder %s76, %s77
    %p86 = scmp.eq.s32.totalorder %s24, 0
    %p87 = por %p85, %p86
    %p88 = scmp.ne.s32.totalorder %s76, %s77
    %p89 = scmp.eq.s32.totalorder %s25, 1
    %p90 = por %p88, %p89
    %p92 = scmp.ne.s32.totalorder %s77, %s91
    %p93 = scmp.eq.s32.totalorder %s25, 0
    %p94 = por %p92, %p93
    %s96 = sadd.s32 %s95, 1
    %p99 = scmp.eq.s32.totalorder %s19, 1
    %p100 = scmp.ne.s32.totalorder %s95, %s97
    %p101 = scmp.eq.s32.totalorder %s19, 0
    %p102 = por %p100, %p101
    %p103 = scmp.ne.s32.totalorder %s95, %s97
    %p104 = scmp.eq.s32.totalorder %s24, 1
    %p105 = por %p103, %p104
    %p106 = scmp.ne.s32.totalorder %s97, %s98
    %p107 = scmp.eq.s32.totalorder %s24, 0
    %p108 = por %p106, %p107
    %p109 = scmp.ne.s32.totalorder %s97, %s98
    %p110 = scmp.eq.s32.totalorder %s25, 1
    %p111 = por %p109, %p110
    %p113 = scmp.ne.s32.totalorder %s98, %s112
    %p114 = scmp.eq.s32.totalorder %s25, 0
    %p115 = por %p113, %p114
    %s117 = sadd.s32 %s116, 1
    %p120 = scmp.eq.s32.totalorder %s19, 1
    %p121 = scmp.ne.s32.totalorder %s116, %s118
    %p122 = scmp.eq.s32.totalorder %s19, 0
    %p123 = por %p121, %p122
    %p124 = scmp.ne.s32.totalorder %s116, %s118
    %p125 = scmp.eq.s32.totalorder %s24, 1
    %p126 = por %p124, %p125
    %p127 = scmp.ne.s32.totalorder %s118, %s119
    %p128 = scmp.eq.s32.totalorder %s24, 0
    %p129 = por %p127, %p128
    %p130 = scmp.ne.s32.totalorder %s118, %s119
    %p131 = scmp.eq.s32.totalorder %s25, 1
    %p132 = por %p130, %p131
    %p134 = scmp.ne.s32.totalorder %s119, %s133
    %p135 = scmp.eq.s32.totalorder %s25, 0
    %p136 = por %p134, %p135
    %s138 = sadd.s32 %s137, 1
    %p141 = scmp.eq.s32.totalorder %s19, 1
    %p142 = scmp.ne.s32.totalorder %s137, %s139
    %p143 = scmp.eq.s32.totalorder %s19, 0
    %p144 = por %p142, %p143
    %p145 = scmp.ne.s32.totalorder %s137, %s139
    %p146 = scmp.eq.s32.totalorder %s24, 1
    %p147 = por %p145, %p146
    %p148 = scmp.ne.s32.totalorder %s139, %s140
    %p149 = scmp.eq.s32.totalorder %s24, 0
    %p150 = por %p148, %p149
    %p151 = scmp.ne.s32.totalorder %s139, %s140
    %p152 = scmp.eq.s32.totalorder %s25, 1
    %p153 = por %p151, %p152
    %p155 = scmp.ne.s32.totalorder %s140, %s154
    %p156 = scmp.eq.s32.totalorder %s25, 0
    %p157 = por %p155, %p156
    %s159 = sadd.s32 %s158, 1
    %p162 = scmp.eq.s32.totalorder %s19, 1
    %p163 = scmp.ne.s32.totalorder %s158, %s160
    %p164 = scmp.eq.s32.totalorder %s19, 0
    %p165 = por %p163, %p164
    %p166 = scmp.ne.s32.totalorder %s158, %s160
    %p167 = scmp.eq.s32.totalorder %s24, 1
    %p168 = por %p166, %p167
    %p169 = scmp.ne.s32.totalorder %s160, %s161
    %p170 = scmp.eq.s32.totalorder %s24, 0
    %p171 = por %p169, %p170
    %p172 = scmp.ne.s32.totalorder %s160, %s161
    %p173 = scmp.eq.s32.totalorder %s25, 1
    %p174 = por %p172, %p173
    %p176 = scmp.ne.s32.totalorder %s161, %s175
    %p177 = scmp.eq.s32.totalorder %s25, 0
    %p178 = por %p176, %p177
    %s180 = sadd.s32 %s179, 1
    %p183 = scmp.eq.s32.totalorder %s19, 1
    %p184 = scmp.ne.s32.totalorder %s179, %s181
    %p185 = scmp.eq.s32.totalorder %s19, 0
    %p186 = por %p184, %p185
    %p187 = scmp.ne.s32.totalorder %s179, %s181
    %p188 = scmp.eq.s32.totalorder %s24, 1
    %p189 = por %p187, %p188
    %p190 = scmp.ne.s32.totalorder %s181, %s182
    %p191 = scmp.eq.s32.totalorder %s24, 0
    %p192 = por %p190, %p191
    %p193 = scmp.ne.s32.totalorder %s181, %s182
    %p194 = scmp.eq.s32.totalorder %s25, 1
    %p195 = por %p193, %p194
    %p197 = scmp.ne.s32.totalorder %s182, %s196
    %p198 = scmp.eq.s32.totalorder %s25, 0
    %p199 = por %p197, %p198
    %s201 = sadd.s32 %s200, 1
    %p204 = scmp.eq.s32.totalorder %s19, 1
    %p205 = scmp.ne.s32.totalorder %s200, %s202
    %p206 = scmp.eq.s32.totalorder %s19, 0
    %p207 = por %p205, %p206
    %p208 = scmp.ne.s32.totalorder %s200, %s202
    %p209 = scmp.eq.s32.totalorder %s24, 1
    %p210 = por %p208, %p209
    %p211 = scmp.ne.s32.totalorder %s202, %s203
    %p212 = scmp.eq.s32.totalorder %s24, 0
    %p213 = por %p211, %p212
    %p214 = scmp.ne.s32.totalorder %s202, %s203
    %p215 = scmp.eq.s32.totalorder %s25, 1
    %p216 = por %p214, %p215
    %p218 = scmp.ne.s32.totalorder %s203, %s217
    %p219 = scmp.eq.s32.totalorder %s25, 0
    %p220 = por %p218, %p219
    %s222 = sadd.s32 %s221, 1
    %p225 = scmp.eq.s32.totalorder %s19, 1
    %p226 = scmp.ne.s32.totalorder %s221, %s223
    %p227 = scmp.eq.s32.totalorder %s19, 0
    %p228 = por %p226, %p227
    %p229 = scmp.ne.s32.totalorder %s221, %s223
    %p230 = scmp.eq.s32.totalorder %s24, 1
    %p231 = por %p229, %p230
    %p232 = scmp.ne.s32.totalorder %s223, %s224
    %p233 = scmp.eq.s32.totalorder %s24, 0
    %p234 = por %p232, %p233
    %p235 = scmp.ne.s32.totalorder %s223, %s224
    %p236 = scmp.eq.s32.totalorder %s25, 1
    %p237 = por %p235, %p236
    %p239 = scmp.ne.s32.totalorder %s224, %s238
    %p240 = scmp.eq.s32.totalorder %s25, 0
    %p241 = por %p239, %p240
    %s243 = sadd.s32 %s242, 1
    %p246 = scmp.eq.s32.totalorder %s19, 1
    %p247 = scmp.ne.s32.totalorder %s242, %s244
    %p248 = scmp.eq.s32.totalorder %s19, 0
    %p249 = por %p247, %p248
    %p250 = scmp.ne.s32.totalorder %s242, %s244
    %p251 = scmp.eq.s32.totalorder %s24, 1
    %p252 = por %p250, %p251
    %p253 = scmp.ne.s32.totalorder %s244, %s245
    %p254 = scmp.eq.s32.totalorder %s24, 0
    %p255 = por %p253, %p254
    %p256 = scmp.ne.s32.totalorder %s244, %s245
    %p257 = scmp.eq.s32.totalorder %s25, 1
    %p258 = por %p256, %p257
    %p260 = scmp.ne.s32.totalorder %s245, %s259
    %p261 = scmp.eq.s32.totalorder %s25, 0
    %p262 = por %p260, %p261
    %s264 = sadd.s32 %s263, 1
    %p267 = scmp.eq.s32.totalorder %s19, 1
    %p268 = scmp.ne.s32.totalorder %s263, %s265
    %p269 = scmp.eq.s32.totalorder %s19, 0
    %p270 = por %p268, %p269
    %p271 = scmp.ne.s32.totalorder %s263, %s265
    %p272 = scmp.eq.s32.totalorder %s24, 1
    %p273 = por %p271, %p272
    %p274 = scmp.ne.s32.totalorder %s265, %s266
    %p275 = scmp.eq.s32.totalorder %s24, 0
    %p276 = por %p274, %p275
    %p277 = scmp.ne.s32.totalorder %s265, %s266
    %p278 = scmp.eq.s32.totalorder %s25, 1
    %p279 = por %p277, %p278
    %p281 = scmp.ne.s32.totalorder %s266, %s280
    %p282 = scmp.eq.s32.totalorder %s25, 0
    %p283 = por %p281, %p282
    %s285 = sadd.s32 %s284, 1
    %p288 = scmp.eq.s32.totalorder %s19, 1
    %p289 = scmp.ne.s32.totalorder %s284, %s286
    %p290 = scmp.eq.s32.totalorder %s19, 0
    %p291 = por %p289, %p290
    %p292 = scmp.ne.s32.totalorder %s284, %s286
    %p293 = scmp.eq.s32.totalorder %s24, 1
    %p294 = por %p292, %p293
    %p295 = scmp.ne.s32.totalorder %s286, %s287
    %p296 = scmp.eq.s32.totalorder %s24, 0
    %p297 = por %p295, %p296
    %p298 = scmp.ne.s32.totalorder %s286, %s287
    %p299 = scmp.eq.s32.totalorder %s25, 1
    %p300 = por %p298, %p299
    %p302 = scmp.ne.s32.totalorder %s287, %s301
    %p303 = scmp.eq.s32.totalorder %s25, 0
    %p304 = por %p302, %p303
    %s305 = ssub.s32 %s19, %s26
    %p306 = scmp.eq.s32.totalorder %s305, 0
    %s308 = sadd.s32 %s307, 1
    %s309 = scalar_select %p306, %s307, %s308
    %p312 = pneg %p306
    %p313 = scmp.eq.s32.totalorder %s19, 1
    %p314 = por %p312, %p313
    %p315 = scmp.ne.s32.totalorder %s307, %s310
    %p316 = scmp.eq.s32.totalorder %s19, 0
    %p317 = por %p315, %p316
    %p318 = scmp.ne.s32.totalorder %s307, %s310
    %p319 = scmp.eq.s32.totalorder %s24, 1
    %p320 = por %p318, %p319
    %p321 = scmp.ne.s32.totalorder %s310, %s311
    %p322 = scmp.eq.s32.totalorder %s24, 0
    %p323 = por %p321, %p322
    %p324 = scmp.ne.s32.totalorder %s310, %s311
    %p325 = scmp.eq.s32.totalorder %s25, 1
    %p326 = por %p324, %p325
    %p328 = scmp.ne.s32.totalorder %s311, %s327
    %p329 = scmp.eq.s32.totalorder %s25, 0
    %p330 = por %p328, %p329
    %p331 = scmp.le.s32.totalorder 1, %s19
    %p332 = scmp.lt.s32.totalorder %s19, 3
    %p333 = pnand %p331, %p332
    %p334 = pneg %p333
    // Predicated region
    $region9: #{tpu_custom_call.1} parent=5 // pred_check
      _
    $region10: #{tpu_custom_call.1} parent=5 // pred_check_branch
      %336 = sbr.rel (%p333) target = $region12
    $region11: #{tpu_custom_call.1} parent=5 // pred_region
      %s337 = ssub.s32 %s19, 1
      // Predicated region
      $region13: #{tpu_custom_call.1} parent=11 // pred_check
        %p338 = pneg %p66
      $region14: #{tpu_custom_call.1} parent=11 // pred_check_branch
        %340 = sbr.rel (%p338) target = $region16
      $region15: #{tpu_custom_call.1} parent=11 // pred_region
        _
      $region16: #{tpu_custom_call.1} parent=11 // pred_fallthru
        _
      // Predicated region
      $region17: #{tpu_custom_call.1} parent=11 // pred_check
        %p341 = pneg %p87
      $region18: #{tpu_custom_call.1} parent=11 // pred_check_branch
        %343 = sbr.rel (%p341) target = $region20
      $region19: #{tpu_custom_call.1} parent=11 // pred_region
        _
      $region20: #{tpu_custom_call.1} parent=11 // pred_fallthru
        _
      // Predicated region
      $region21: #{tpu_custom_call.1} parent=11 // pred_check
        %p344 = pneg %p108
      $region22: #{tpu_custom_call.1} parent=11 // pred_check_branch
        %346 = sbr.rel (%p344) target = $region24
      $region23: #{tpu_custom_call.1} parent=11 // pred_region
        _
      $region24: #{tpu_custom_call.1} parent=11 // pred_fallthru
        _
      // Predicated region
      $region25: #{tpu_custom_call.1} parent=11 // pred_check
        %p347 = pneg %p129
      $region26: #{tpu_custom_call.1} parent=11 // pred_check_branch
        %349 = sbr.rel (%p347) target = $region28
      $region27: #{tpu_custom_call.1} parent=11 // pred_region
        _
      $region28: #{tpu_custom_call.1} parent=11 // pred_fallthru
        _
      // Predicated region
      $region29: #{tpu_custom_call.1} parent=11 // pred_check
        %p350 = pneg %p150
      $region30: #{tpu_custom_call.1} parent=11 // pred_check_branch
        %352 = sbr.rel (%p350) target = $region32
      $region31: #{tpu_custom_call.1} parent=11 // pred_region
        _
      $region32: #{tpu_custom_call.1} parent=11 // pred_fallthru
        _
      // Predicated region
      $region33: #{tpu_custom_call.1} parent=11 // pred_check
        %p353 = pneg %p171
      $region34: #{tpu_custom_call.1} parent=11 // pred_check_branch
        %355 = sbr.rel (%p353) target = $region36
      $region35: #{tpu_custom_call.1} parent=11 // pred_region
        _
      $region36: #{tpu_custom_call.1} parent=11 // pred_fallthru
        _
      // Predicated region
      $region37: #{tpu_custom_call.1} parent=11 // pred_check
        %p356 = pneg %p192
      $region38: #{tpu_custom_call.1} parent=11 // pred_check_branch
        %358 = sbr.rel (%p356) target = $region40
      $region39: #{tpu_custom_call.1} parent=11 // pred_region
        _
      $region40: #{tpu_custom_call.1} parent=11 // pred_fallthru
        _
      // Predicated region
      $region41: #{tpu_custom_call.1} parent=11 // pred_check
        %p359 = pneg %p213
      $region42: #{tpu_custom_call.1} parent=11 // pred_check_branch
        %361 = sbr.rel (%p359) target = $region44
      $region43: #{tpu_custom_call.1} parent=11 // pred_region
        _
      $region44: #{tpu_custom_call.1} parent=11 // pred_fallthru
        _
      // Predicated region
      $region45: #{tpu_custom_call.1} parent=11 // pred_check
        %p362 = pneg %p234
      $region46: #{tpu_custom_call.1} parent=11 // pred_check_branch
        %364 = sbr.rel (%p362) target = $region48
      $region47: #{tpu_custom_call.1} parent=11 // pred_region
        _
      $region48: #{tpu_custom_call.1} parent=11 // pred_fallthru
        _
      // Predicated region
      $region49: #{tpu_custom_call.1} parent=11 // pred_check
        %p365 = pneg %p255
      $region50: #{tpu_custom_call.1} parent=11 // pred_check_branch
        %367 = sbr.rel (%p365) target = $region52
      $region51: #{tpu_custom_call.1} parent=11 // pred_region
        _
      $region52: #{tpu_custom_call.1} parent=11 // pred_fallthru
        _
      // Predicated region
      $region53: #{tpu_custom_call.1} parent=11 // pred_check
        %p368 = pneg %p276
      $region54: #{tpu_custom_call.1} parent=11 // pred_check_branch
        %370 = sbr.rel (%p368) target = $region56
      $region55: #{tpu_custom_call.1} parent=11 // pred_region
        _
      $region56: #{tpu_custom_call.1} parent=11 // pred_fallthru
        _
      // Predicated region
      $region57: #{tpu_custom_call.1} parent=11 // pred_check
        %p371 = pneg %p297
      $region58: #{tpu_custom_call.1} parent=11 // pred_check_branch
        %373 = sbr.rel (%p371) target = $region60
      $region59: #{tpu_custom_call.1} parent=11 // pred_region
        _
      $region60: #{tpu_custom_call.1} parent=11 // pred_fallthru
        _
    $region12: #{tpu_custom_call.1} parent=5 // pred_fallthru
      _
    %p374 = scmp.lt.s32.totalorder %s19, 2
    // Predicated region
    $region61: #{tpu_custom_call.1} parent=5 // pred_check
      %p375 = pneg %p374
    $region62: #{tpu_custom_call.1} parent=5 // pred_check_branch
      %377 = sbr.rel (%p375) target = $region64
    $region63: #{tpu_custom_call.1} parent=5 // pred_region
      // Predicated region
      $region65: #{tpu_custom_call.1} parent=63 // pred_check
        %p378 = pneg %p39
      $region66: #{tpu_custom_call.1} parent=63 // pred_check_branch
        %380 = sbr.rel (%p378) target = $region68
      $region67: #{tpu_custom_call.1} parent=63 // pred_region
        %p381 = scmp.lt.s32.totalorder %s19, 1
        %s382 = scalar_select %p381, %s19, 1
        %s383 = smul.addr %s382, 32
        %s384 = smul.addr %s383, 8
        %s385 = scalar_lea.vmem %s0, %s384
      $region68: #{tpu_custom_call.1} parent=63 // pred_fallthru
        _
    $region64: #{tpu_custom_call.1} parent=5 // pred_fallthru
      _
    %p386 = scmp.le.s32.totalorder 1, %s19
    %p387 = scmp.lt.s32.totalorder %s19, 3
    %p388 = pnand %p386, %p387
    %p389 = pneg %p388
    // Predicated region
    $region69: #{tpu_custom_call.1} parent=5 // pred_check
      _
    $region70: #{tpu_custom_call.1} parent=5 // pred_check_branch
      %391 = sbr.rel (%p388) target = $region72
    $region71: #{tpu_custom_call.1} parent=5 // pred_region
      %s392 = ssub.s32 %s19, 1
      %p393 = scmp.lt.s32.totalorder %s24, 1
      %s394 = scalar_select %p393, %s24, 1
      %s395 = smul.addr %s394, 32
      %s396 = smul.addr %s395, 8
      %s397 = scalar_lea.vmem %s0, %s396
      %p398 = pneg %p45
      %p399 = pneg %p42
      %p400 = pneg %p66
      %p401 = pneg %p63
      %p402 = pneg %p87
      %p403 = pneg %p84
      %p404 = pneg %p108
      %p405 = pneg %p105
      %p406 = pneg %p129
      %p407 = pneg %p126
      %p408 = pneg %p150
      %p409 = pneg %p147
      %p410 = pneg %p171
      %p411 = pneg %p168
      %p412 = pneg %p192
      %p413 = pneg %p189
      %p414 = pneg %p213
      %p415 = pneg %p210
      %p416 = pneg %p234
      %p417 = pneg %p231
      %p418 = pneg %p255
      %p419 = pneg %p252
      %p420 = pneg %p276
      %p421 = pneg %p273
      %p422 = pneg %p297
      %p423 = pneg %p294
      %p424 = pneg %p323
      %p425 = pneg %p320
      %p426 = scmp.lt.s32.totalorder %s24, 1
      %s427 = scalar_select %p426, %s24, 1
      %s428 = smul.addr %s427, 32
      %s429 = smul.addr %s428, 8
      %s430 = scalar_lea.vmem %s13, %s429
      %p431 = scmp.lt.s32.totalorder %s24, 1
      %s432 = scalar_select %p431, %s24, 1
      %s433 = smul.addr %s432, 32
      %s434 = smul.addr %s433, 8
      %s435 = scalar_lea.vmem %s0, %s434
      %p436 = scmp.lt.s32.totalorder %s24, 1
      %s437 = scalar_select %p436, %s24, 1
      %s438 = smul.addr %s437, 32
      %s439 = smul.addr %s438, 8
      %s440 = scalar_lea.vmem %s13, %s439
      %v442 = vld [vmem:[%s435] sm:$0xff]
      %v443 = vld [vmem:[%s435 + $0x8] sm:$0xff]
      %v444 = vld [vmem:[%s435 + $0x10] sm:$0xff]
      %v445 = vld [vmem:[%s435 + $0x18] sm:$0xff]
      %v446 = vld [vmem:[%s435 + $0x20] sm:$0xff]
      %v447 = vld [vmem:[%s435 + $0x28] sm:$0xff]
      %v448 = vld [vmem:[%s435 + $0x30] sm:$0xff]
      %v449 = vld [vmem:[%s435 + $0x38] sm:$0xff]
      %v450 = vld [vmem:[%s435 + $0x40] sm:$0xff]
      %v451 = vld [vmem:[%s435 + $0x48] sm:$0xff]
      %v452 = vld [vmem:[%s435 + $0x50] sm:$0xff]
      %v453 = vld [vmem:[%s435 + $0x58] sm:$0xff]
      %v454 = vld [vmem:[%s435 + $0x60] sm:$0xff]
      %v455 = vld [vmem:[%s435 + $0x68] sm:$0xff]
      %v456 = vld [vmem:[%s435 + $0x70] sm:$0xff]
      %v457 = vld [vmem:[%s435 + $0x78] sm:$0xff]
      %v458 = vld [vmem:[%s435 + $0x80] sm:$0xff]
      %v459 = vld [vmem:[%s435 + $0x88] sm:$0xff]
      %v460 = vld [vmem:[%s435 + $0x90] sm:$0xff]
      %v461 = vld [vmem:[%s435 + $0x98] sm:$0xff]
      %v462 = vld [vmem:[%s435 + $0xa0] sm:$0xff]
      %v463 = vld [vmem:[%s435 + $0xa8] sm:$0xff]
      %v464 = vld [vmem:[%s435 + $0xb0] sm:$0xff]
      %v465 = vld [vmem:[%s435 + $0xb8] sm:$0xff]
      %v466 = vld [vmem:[%s435 + $0xc0] sm:$0xff]
      %v467 = vld [vmem:[%s435 + $0xc8] sm:$0xff]
      %v468 = vld [vmem:[%s435 + $0xd0] sm:$0xff]
      %v469 = vld [vmem:[%s435 + $0xd8] sm:$0xff]
      %v470 = vld [vmem:[%s435 + $0xe0] sm:$0xff]
      %v471 = vld [vmem:[%s435 + $0xe8] sm:$0xff]
      %v472 = vld [vmem:[%s435 + $0xf0] sm:$0xff]
      %v473 = vld [vmem:[%s435 + $0xf8] sm:$0xff]
      %v474 = vlaneseq
      %v475 = vand.u32 %v474, 127
      %v476 = vpack.c.bf16 %v443, %v442
      %v477 = vpack.c.bf16 %v445, %v444
      %v478 = vpack.c.bf16 %v447, %v446
      %v479 = vpack.c.bf16 %v449, %v448
      %v480 = vpack.c.bf16 %v451, %v450
      %v481 = vpack.c.bf16 %v453, %v452
      %v482 = vpack.c.bf16 %v455, %v454
      %v483 = vpack.c.bf16 %v457, %v456
      %v484 = vpack.c.bf16 %v459, %v458
      %v485 = vpack.c.bf16 %v461, %v460
      %v486 = vpack.c.bf16 %v463, %v462
      %v487 = vpack.c.bf16 %v465, %v464
      %v488 = vpack.c.bf16 %v467, %v466
      %v489 = vpack.c.bf16 %v469, %v468
      %v490 = vpack.c.bf16 %v471, %v470
      %v491 = vpack.c.bf16 %v473, %v472
      %v492 = vld [vmem:[%s1] sm:$0x3]
      %v493 = vld [vmem:[%s2] sm:$0x1]
      %v495 = vlaneseq
      %v496 = vshrl.u32 %v495, 7
      %v497 = vsub.s32 0, %v496
      %v498 = vrot.slane %v493, %v497
      %vm500 = vcmask 31744
      %v502 = vsel %vm500, %v476, 0
      %v505 = vsel %vm500, %v477, 0
      %v508 = vsel %vm500, %v478, 0
      %v511 = vsel %vm500, %v479, 0
      %v514 = vsel %vm500, %v480, 0
      %v517 = vsel %vm500, %v481, 0
      %v520 = vsel %vm500, %v482, 0
      %v523 = vsel %vm500, %v483, 0
      %v526 = vsel %vm500, %v484, 0
      %v529 = vsel %vm500, %v485, 0
      %v532 = vsel %vm500, %v486, 0
      %v535 = vsel %vm500, %v487, 0
      %v538 = vsel %vm500, %v488, 0
      %v541 = vsel %vm500, %v489, 0
      %v544 = vsel %vm500, %v490, 0
      %v547 = vsel %vm500, %v491, 0
      %vm549 = vcmask 1041408
      %v551 = vsel %vm549, %v492, 0
      %553 = vmatprep.subr.bf16.mxu0 0
      %554 = vmatpush1.bf16.msra.mxu0 %v551
      %555 = vmatprep.subr.bf16.mxu0 0
      %556 = vmatpush1.bf16.msra.mxu0 0
      %557 = vmatprep.subr.bf16.mxu0 0
      %558 = vmatpush1.bf16.msra.mxu0 0
      %559 = vmatprep.subr.bf16.mxu0 0
      %560 = vmatpush1.bf16.msra.mxu0 0
      %561 = vmatprep.subr.bf16.mxu0 0
      %562 = vmatpush1.bf16.msra.mxu0 0
      %563 = vmatprep.subr.bf16.mxu0 0
      %564 = vmatpush1.bf16.msra.mxu0 0
      %565 = vmatprep.subr.bf16.mxu0 0
      %566 = vmatpush1.bf16.msra.mxu0 0
      %567 = vmatprep.subr.bf16.mxu0 0
      %568 = vmatpush1.bf16.msra.mxu0 0
      %569 = vmatprep.subr.bf16.mxu0 0
      %570 = vmatpush1.bf16.msra.mxu0 0
      %571 = vmatprep.subr.bf16.mxu0 0
      %572 = vmatpush1.bf16.msra.mxu0 0
      %573 = vmatprep.subr.bf16.mxu0 0
      %574 = vmatpush1.bf16.msra.mxu0 0
      %575 = vmatprep.subr.bf16.mxu0 0
      %576 = vmatpush1.bf16.msra.mxu0 0
      %577 = vmatprep.subr.bf16.mxu0 0
      %578 = vmatpush1.bf16.msra.mxu0 0
      %579 = vmatprep.subr.bf16.mxu0 0
      %580 = vmatpush1.bf16.msra.mxu0 0
      %581 = vmatprep.subr.bf16.mxu0 0
      %582 = vmatpush1.bf16.msra.mxu0 0
      %583 = vmatprep.subr.bf16.mxu0 0
      %584 = vmatpush1.bf16.msra.mxu0 0
      %585 = vmatprep.mubr.bf16.mxu0 0
      %586 = vmatmul.mubr.bf16.gmra.mrb[0].mxu0 %v502
      %v587 = vpop.f32.mrb[0].mxu0
      %v588 = vadd.f32 %v498, %v587
      %v589 = vpop.f32.mrb[0].mxu0
      %v590 = vpop.f32.mrb[0].mxu0
      %v591 = vadd.f32 %v498, %v590
      %v592 = vpop.f32.mrb[0].mxu0
      %593 = vmatprep.mubr.bf16.mxu0 0
      %594 = vmatmul.mubr.bf16.gmra.mrb[0].mxu0 %v505
      %v595 = vpop.f32.mrb[0].mxu0
      %v596 = vadd.f32 %v498, %v595
      %v597 = vpop.f32.mrb[0].mxu0
      %v598 = vpop.f32.mrb[0].mxu0
      %v599 = vadd.f32 %v498, %v598
      %v600 = vpop.f32.mrb[0].mxu0
      %601 = vmatprep.mubr.bf16.mxu0 0
      %602 = vmatmul.mubr.bf16.gmra.mrb[0].mxu0 %v508
      %v603 = vpop.f32.mrb[0].mxu0
      %v604 = vadd.f32 %v498, %v603
      %v605 = vpop.f32.mrb[0].mxu0
      %v606 = vpop.f32.mrb[0].mxu0
      %v607 = vadd.f32 %v498, %v606
      %v608 = vpop.f32.mrb[0].mxu0
      %609 = vmatprep.mubr.bf16.mxu0 0
      %610 = vmatmul.mubr.bf16.gmra.mrb[0].mxu0 %v511
      %v611 = vpop.f32.mrb[0].mxu0
      %v612 = vadd.f32 %v498, %v611
      %v613 = vpop.f32.mrb[0].mxu0
      %v614 = vpop.f32.mrb[0].mxu0
      %v615 = vadd.f32 %v498, %v614
      %v616 = vpop.f32.mrb[0].mxu0
      %617 = vmatprep.mubr.bf16.mxu0 0
      %618 = vmatmul.mubr.bf16.gmra.mrb[0].mxu0 %v514
      %v619 = vpop.f32.mrb[0].mxu0
      %v620 = vadd.f32 %v498, %v619
      %v621 = vpop.f32.mrb[0].mxu0
      %v622 = vpop.f32.mrb[0].mxu0
      %v623 = vadd.f32 %v498, %v622
      %v624 = vpop.f32.mrb[0].mxu0
      %625 = vmatprep.mubr.bf16.mxu0 0
      %626 = vmatmul.mubr.bf16.gmra.mrb[0].mxu0 %v517
      %v627 = vpop.f32.mrb[0].mxu0
      %v628 = vadd.f32 %v498, %v627
      %v629 = vpop.f32.mrb[0].mxu0
      %v630 = vpop.f32.mrb[0].mxu0
      %v631 = vadd.f32 %v498, %v630
      %v632 = vpop.f32.mrb[0].mxu0
      %633 = vmatprep.mubr.bf16.mxu0 0
      %634 = vmatmul.mubr.bf16.gmra.mrb[0].mxu0 %v520
      %v635 = vpop.f32.mrb[0].mxu0
      %v636 = vadd.f32 %v498, %v635
      %v637 = vpop.f32.mrb[0].mxu0
      %v638 = vpop.f32.mrb[0].mxu0
      %v639 = vadd.f32 %v498, %v638
      %v640 = vpop.f32.mrb[0].mxu0
      %641 = vmatprep.mubr.bf16.mxu0 0
      %642 = vmatmul.mubr.bf16.gmra.mrb[0].mxu0 %v523
      %v643 = vpop.f32.mrb[0].mxu0
      %v644 = vadd.f32 %v498, %v643
      %v645 = vpop.f32.mrb[0].mxu0
      %v646 = vpop.f32.mrb[0].mxu0
      %v647 = vadd.f32 %v498, %v646
      %v648 = vpop.f32.mrb[0].mxu0
      %649 = vmatprep.mubr.bf16.mxu0 0
      %650 = vmatmul.mubr.bf16.gmra.mrb[0].mxu0 %v526
      %v651 = vpop.f32.mrb[0].mxu0
      %v652 = vadd.f32 %v498, %v651
      %v653 = vpop.f32.mrb[0].mxu0
      %v654 = vpop.f32.mrb[0].mxu0
      %v655 = vadd.f32 %v498, %v654
      %v656 = vpop.f32.mrb[0].mxu0
      %657 = vmatprep.mubr.bf16.mxu0 0
      %658 = vmatmul.mubr.bf16.gmra.mrb[0].mxu0 %v529
      %v659 = vpop.f32.mrb[0].mxu0
      %v660 = vadd.f32 %v498, %v659
      %v661 = vpop.f32.mrb[0].mxu0
      %v662 = vpop.f32.mrb[0].mxu0
      %v663 = vadd.f32 %v498, %v662
      %v664 = vpop.f32.mrb[0].mxu0
      %665 = vmatprep.mubr.bf16.mxu0 0
      %666 = vmatmul.mubr.bf16.gmra.mrb[0].mxu0 %v532
      %v667 = vpop.f32.mrb[0].mxu0
      %v668 = vadd.f32 %v498, %v667
      %v669 = vpop.f32.mrb[0].mxu0
      %v670 = vpop.f32.mrb[0].mxu0
      %v671 = vadd.f32 %v498, %v670
      %v672 = vpop.f32.mrb[0].mxu0
      %673 = vmatprep.mubr.bf16.mxu0 0
      %674 = vmatmul.mubr.bf16.gmra.mrb[0].mxu0 %v535
      %v675 = vpop.f32.mrb[0].mxu0
      %v676 = vadd.f32 %v498, %v675
      %v677 = vpop.f32.mrb[0].mxu0
      %v678 = vpop.f32.mrb[0].mxu0
      %v679 = vadd.f32 %v498, %v678
      %v680 = vpop.f32.mrb[0].mxu0
      %681 = vmatprep.mubr.bf16.mxu0 0
      %682 = vmatmul.mubr.bf16.gmra.mrb[0].mxu0 %v538
      %v683 = vpop.f32.mrb[0].mxu0
      %v684 = vadd.f32 %v498, %v683
      %v685 = vpop.f32.mrb[0].mxu0
      %v686 = vpop.f32.mrb[0].mxu0
      %v687 = vadd.f32 %v498, %v686
      %v688 = vpop.f32.mrb[0].mxu0
      %689 = vmatprep.mubr.bf16.mxu0 0
      %690 = vmatmul.mubr.bf16.gmra.mrb[0].mxu0 %v541
      %v691 = vpop.f32.mrb[0].mxu0
      %v692 = vadd.f32 %v498, %v691
      %v693 = vpop.f32.mrb[0].mxu0
      %v694 = vpop.f32.mrb[0].mxu0
      %v695 = vadd.f32 %v498, %v694
      %v696 = vpop.f32.mrb[0].mxu0
      %697 = vmatprep.mubr.bf16.mxu0 0
      %698 = vmatmul.mubr.bf16.gmra.mrb[0].mxu0 %v544
      %v699 = vpop.f32.mrb[0].mxu0
      %v700 = vadd.f32 %v498, %v699
      %v701 = vpop.f32.mrb[0].mxu0
      %v702 = vpop.f32.mrb[0].mxu0
      %v703 = vadd.f32 %v498, %v702
      %v704 = vpop.f32.mrb[0].mxu0
      %705 = vmatprep.mubr.bf16.mxu0 0
      %706 = vmatmul.mubr.bf16.gmra.mrb[0].mxu0 %v547
      %v707 = vpop.f32.mrb[0].mxu0
      %v708 = vadd.f32 %v498, %v707
      %v709 = vpop.f32.mrb[0].mxu0
      %v710 = vpop.f32.mrb[0].mxu0
      %v711 = vadd.f32 %v498, %v710
      %v712 = vpop.f32.mrb[0].mxu0
      %713 = vdwg.mxu0
      %v714 = vsub.f32 0.0, %v588
      %v715 = vsub.f32 0.0, %v591
      %v716 = vsub.f32 0.0, %v596
      %v717 = vsub.f32 0.0, %v599
      %v718 = vsub.f32 0.0, %v604
      %v719 = vsub.f32 0.0, %v607
      %v720 = vsub.f32 0.0, %v612
      %v721 = vsub.f32 0.0, %v615
      %v722 = vsub.f32 0.0, %v620
      %v723 = vsub.f32 0.0, %v623
      %v724 = vsub.f32 0.0, %v628
      %v725 = vsub.f32 0.0, %v631
      %v726 = vsub.f32 0.0, %v636
      %v727 = vsub.f32 0.0, %v639
      %v728 = vsub.f32 0.0, %v644
      %v729 = vsub.f32 0.0, %v647
      %v730 = vsub.f32 0.0, %v652
      %v731 = vsub.f32 0.0, %v655
      %v732 = vsub.f32 0.0, %v660
      %v733 = vsub.f32 0.0, %v663
      %v734 = vsub.f32 0.0, %v668
      %v735 = vsub.f32 0.0, %v671
      %v736 = vsub.f32 0.0, %v676
      %v737 = vsub.f32 0.0, %v679
      %v738 = vsub.f32 0.0, %v684
      %v739 = vsub.f32 0.0, %v687
      %v740 = vsub.f32 0.0, %v692
      %v741 = vsub.f32 0.0, %v695
      %v742 = vsub.f32 0.0, %v700
      %v743 = vsub.f32 0.0, %v703
      %v744 = vsub.f32 0.0, %v708
      %v745 = vsub.f32 0.0, %v711
      %v746 = vmul.f32 %v714, 1.442695
      %v747 = vpow.pop %v746
      %v748 = vmul.f32 %v715, 1.442695
      %v749 = vpow.pop %v748
      %v750 = vmul.f32 %v716, 1.442695
      %v751 = vpow.pop %v750
      %v752 = vmul.f32 %v717, 1.442695
      %v753 = vpow.pop %v752
      %v754 = vmul.f32 %v718, 1.442695
      %v755 = vpow.pop %v754
      %v756 = vmul.f32 %v719, 1.442695
      %v757 = vpow.pop %v756
      %v758 = vmul.f32 %v720, 1.442695
      %v759 = vpow.pop %v758
      %v760 = vmul.f32 %v721, 1.442695
      %v761 = vpow.pop %v760
      %v762 = vmul.f32 %v722, 1.442695
      %v763 = vpow.pop %v762
      %v764 = vmul.f32 %v723, 1.442695
      %v765 = vpow.pop %v764
      %v766 = vmul.f32 %v724, 1.442695
      %v767 = vpow.pop %v766
      %v768 = vmul.f32 %v725, 1.442695
      %v769 = vpow.pop %v768
      %v770 = vmul.f32 %v726, 1.442695
      %v771 = vpow.pop %v770
      %v772 = vmul.f32 %v727, 1.442695
      %v773 = vpow.pop %v772
      %v774 = vmul.f32 %v728, 1.442695
      %v775 = vpow.pop %v774
      %v776 = vmul.f32 %v729, 1.442695
      %v777 = vpow.pop %v776
      %v778 = vmul.f32 %v730, 1.442695
      %v779 = vpow.pop %v778
      %v780 = vmul.f32 %v731, 1.442695
      %v781 = vpow.pop %v780
      %v782 = vmul.f32 %v732, 1.442695
      %v783 = vpow.pop %v782
      %v784 = vmul.f32 %v733, 1.442695
      %v785 = vpow.pop %v784
      %v786 = vmul.f32 %v734, 1.442695
      %v787 = vpow.pop %v786
      %v788 = vmul.f32 %v735, 1.442695
      %v789 = vpow.pop %v788
      %v790 = vmul.f32 %v736, 1.442695
      %v791 = vpow.pop %v790
      %v792 = vmul.f32 %v737, 1.442695
      %v793 = vpow.pop %v792
      %v794 = vmul.f32 %v738, 1.442695
      %v795 = vpow.pop %v794
      %v796 = vmul.f32 %v739, 1.442695
      %v797 = vpow.pop %v796
      %v798 = vmul.f32 %v740, 1.442695
      %v799 = vpow.pop %v798
      %v800 = vmul.f32 %v741, 1.442695
      %v801 = vpow.pop %v800
      %v802 = vmul.f32 %v742, 1.442695
      %v803 = vpow.pop %v802
      %v804 = vmul.f32 %v743, 1.442695
      %v805 = vpow.pop %v804
      %v806 = vmul.f32 %v744, 1.442695
      %v807 = vpow.pop %v806
      %v808 = vmul.f32 %v745, 1.442695
      %v809 = vpow.pop %v808
      %v810 = vadd.f32 %v747, 1.0
      %v811 = vadd.f32 %v749, 1.0
      %v812 = vadd.f32 %v751, 1.0
      %v813 = vadd.f32 %v753, 1.0
      %v814 = vadd.f32 %v755, 1.0
      %v815 = vadd.f32 %v757, 1.0
      %v816 = vadd.f32 %v759, 1.0
      %v817 = vadd.f32 %v761, 1.0
      %v818 = vadd.f32 %v763, 1.0
      %v819 = vadd.f32 %v765, 1.0
      %v820 = vadd.f32 %v767, 1.0
      %v821 = vadd.f32 %v769, 1.0
      %v822 = vadd.f32 %v771, 1.0
      %v823 = vadd.f32 %v773, 1.0
      %v824 = vadd.f32 %v775, 1.0
      %v825 = vadd.f32 %v777, 1.0
      %v826 = vadd.f32 %v779, 1.0
      %v827 = vadd.f32 %v781, 1.0
      %v828 = vadd.f32 %v783, 1.0
      %v829 = vadd.f32 %v785, 1.0
      %v830 = vadd.f32 %v787, 1.0
      %v831 = vadd.f32 %v789, 1.0
      %v832 = vadd.f32 %v791, 1.0
      %v833 = vadd.f32 %v793, 1.0
      %v834 = vadd.f32 %v795, 1.0
      %v835 = vadd.f32 %v797, 1.0
      %v836 = vadd.f32 %v799, 1.0
      %v837 = vadd.f32 %v801, 1.0
      %v838 = vadd.f32 %v803, 1.0
      %v839 = vadd.f32 %v805, 1.0
      %v840 = vadd.f32 %v807, 1.0
      %v841 = vadd.f32 %v809, 1.0
      %v842 = vrcp.pop %v810
      %v843 = vrcp.pop %v811
      %v844 = vrcp.pop %v812
      %v845 = vrcp.pop %v813
      %v846 = vrcp.pop %v814
      %v847 = vrcp.pop %v815
      %v848 = vrcp.pop %v816
      %v849 = vrcp.pop %v817
      %v850 = vrcp.pop %v818
      %v851 = vrcp.pop %v819
      %v852 = vrcp.pop %v820
      %v853 = vrcp.pop %v821
      %v854 = vrcp.pop %v822
      %v855 = vrcp.pop %v823
      %v856 = vrcp.pop %v824
      %v857 = vrcp.pop %v825
      %v858 = vrcp.pop %v826
      %v859 = vrcp.pop %v827
      %v860 = vrcp.pop %v828
      %v861 = vrcp.pop %v829
      %v862 = vrcp.pop %v830
      %v863 = vrcp.pop %v831
      %v864 = vrcp.pop %v832
      %v865 = vrcp.pop %v833
      %v866 = vrcp.pop %v834
      %v867 = vrcp.pop %v835
      %v868 = vrcp.pop %v836
      %v869 = vrcp.pop %v837
      %v870 = vrcp.pop %v838
      %v871 = vrcp.pop %v839
      %v872 = vrcp.pop %v840
      %v873 = vrcp.pop %v841
      %v874 = vmul.f32 %v588, %v842
      %v875 = vmul.f32 %v591, %v843
      %v876 = vmul.f32 %v596, %v844
      %v877 = vmul.f32 %v599, %v845
      %v878 = vmul.f32 %v604, %v846
      %v879 = vmul.f32 %v607, %v847
      %v880 = vmul.f32 %v612, %v848
      %v881 = vmul.f32 %v615, %v849
      %v882 = vmul.f32 %v620, %v850
      %v883 = vmul.f32 %v623, %v851
      %v884 = vmul.f32 %v628, %v852
      %v885 = vmul.f32 %v631, %v853
      %v886 = vmul.f32 %v636, %v854
      %v887 = vmul.f32 %v639, %v855
      %v888 = vmul.f32 %v644, %v856
      %v889 = vmul.f32 %v647, %v857
      %v890 = vmul.f32 %v652, %v858
      %v891 = vmul.f32 %v655, %v859
      %v892 = vmul.f32 %v660, %v860
      %v893 = vmul.f32 %v663, %v861
      %v894 = vmul.f32 %v668, %v862
      %v895 = vmul.f32 %v671, %v863
      %v896 = vmul.f32 %v676, %v864
      %v897 = vmul.f32 %v679, %v865
      %v898 = vmul.f32 %v684, %v866
      %v899 = vmul.f32 %v687, %v867
      %v900 = vmul.f32 %v692, %v868
      %v901 = vmul.f32 %v695, %v869
      %v902 = vmul.f32 %v700, %v870
      %v903 = vmul.f32 %v703, %v871
      %v904 = vmul.f32 %v708, %v872
      %v905 = vmul.f32 %v711, %v873
      %v906 = vpack.c.bf16 %v875, %v874
      %v907 = vpack.c.bf16 %v877, %v876
      %v908 = vpack.c.bf16 %v879, %v878
      %v909 = vpack.c.bf16 %v881, %v880
      %v910 = vpack.c.bf16 %v883, %v882
      %v911 = vpack.c.bf16 %v885, %v884
      %v912 = vpack.c.bf16 %v887, %v886
      %v913 = vpack.c.bf16 %v889, %v888
      %v914 = vpack.c.bf16 %v891, %v890
      %v915 = vpack.c.bf16 %v893, %v892
      %v916 = vpack.c.bf16 %v895, %v894
      %v917 = vpack.c.bf16 %v897, %v896
      %v918 = vpack.c.bf16 %v899, %v898
      %v919 = vpack.c.bf16 %v901, %v900
      %v920 = vpack.c.bf16 %v903, %v902
      %v921 = vpack.c.bf16 %v905, %v904
      %v922 = vld [vmem:[%s3] sm:$0xf]
      %v923 = vld [vmem:[%s3 + $0x4] sm:$0xf]
      %v924 = vld [vmem:[%s3 + $0x8] sm:$0xf]
      %v925 = vld [vmem:[%s3 + $0xc] sm:$0xf]
      %v926 = vld [vmem:[%s4] sm:$0x1]
      %v928 = vlaneseq
      %v929 = vshrl.u32 %v928, 7
      %v930 = vsub.s32 0, %v929
      %v931 = vrot.slane %v926, %v930
      %v937 = vunpack.c.l.b16 %v922
      %v938 = vunpack.c.l.b16 %v923
      %v939 = vunpack.c.l.b16 %v924
      %v940 = vunpack.c.l.b16 %v925
      %v941 = vpack.c.b16 %v938, %v937
      %v942 = vpack.c.b16 %v940, %v939
      %vm945 = vcmask 261120
      %v947 = vsel %vm945, %v906, 0
      %v950 = vsel %vm945, %v907, 0
      %v953 = vsel %vm945, %v908, 0
      %v956 = vsel %vm945, %v909, 0
      %v959 = vsel %vm945, %v910, 0
      %v962 = vsel %vm945, %v911, 0
      %v965 = vsel %vm945, %v912, 0
      %v968 = vsel %vm945, %v913, 0
      %v971 = vsel %vm945, %v914, 0
      %v974 = vsel %vm945, %v915, 0
      %v977 = vsel %vm945, %v916, 0
      %v980 = vsel %vm945, %v917, 0
      %v983 = vsel %vm945, %v918, 0
      %v986 = vsel %vm945, %v919, 0
      %v989 = vsel %vm945, %v920, 0
      %v992 = vsel %vm945, %v921, 0
      %994 = vmatprep.subr.bf16.mxu0 0
      %995 = vmatpush1.bf16.msra.mxu0 %v941
      %996 = vmatprep.subr.bf16.mxu0 0
      %997 = vmatpush1.bf16.msra.mxu0 %v942
      %998 = vmatprep.subr.bf16.mxu0 0
      %999 = vmatpush1.bf16.msra.mxu0 0
      %1000 = vmatprep.subr.bf16.mxu0 0
      %1001 = vmatpush1.bf16.msra.mxu0 0
      %1002 = vmatprep.subr.bf16.mxu0 0
      %1003 = vmatpush1.bf16.msra.mxu0 0
      %1004 = vmatprep.subr.bf16.mxu0 0
      %1005 = vmatpush1.bf16.msra.mxu0 0
      %1006 = vmatprep.subr.bf16.mxu0 0
      %1007 = vmatpush1.bf16.msra.mxu0 0
      %1008 = vmatprep.subr.bf16.mxu0 0
      %1009 = vmatpush1.bf16.msra.mxu0 0
      %1010 = vmatprep.subr.bf16.mxu0 0
      %1011 = vmatpush1.bf16.msra.mxu0 0
      %1012 = vmatprep.subr.bf16.mxu0 0
      %1013 = vmatpush1.bf16.msra.mxu0 0
      %1014 = vmatprep.subr.bf16.mxu0 0
      %1015 = vmatpush1.bf16.msra.mxu0 0
      %1016 = vmatprep.subr.bf16.mxu0 0
      %1017 = vmatpush1.bf16.msra.mxu0 0
      %1018 = vmatprep.subr.bf16.mxu0 0
      %1019 = vmatpush1.bf16.msra.mxu0 0
      %1020 = vmatprep.subr.bf16.mxu0 0
      %1021 = vmatpush1.bf16.msra.mxu0 0
      %1022 = vmatprep.subr.bf16.mxu0 0
      %1023 = vmatpush1.bf16.msra.mxu0 0
      %1024 = vmatprep.subr.bf16.mxu0 0
      %1025 = vmatpush1.bf16.msra.mxu0 0
      %1026 = vmatprep.mubr.bf16.mxu0 0
      %1027 = vmatmul.mubr.bf16.gmra.mrb[0].mxu0 %v947
      %v1028 = vpop.f32.mrb[0].mxu0
      %v1029 = vadd.f32 %v931, %v1028
      %v1030 = vpop.f32.mrb[0].mxu0
      %v1031 = vpop.f32.mrb[0].mxu0
      %v1032 = vadd.f32 %v931, %v1031
      %v1033 = vpop.f32.mrb[0].mxu0
      %1034 = vmatprep.mubr.bf16.mxu0 0
      %1035 = vmatmul.mubr.bf16.gmra.mrb[0].mxu0 %v950
      %v1036 = vpop.f32.mrb[0].mxu0
      %v1037 = vadd.f32 %v931, %v1036
      %v1038 = vpop.f32.mrb[0].mxu0
      %v1039 = vpop.f32.mrb[0].mxu0
      %v1040 = vadd.f32 %v931, %v1039
      %v1041 = vpop.f32.mrb[0].mxu0
      %1042 = vmatprep.mubr.bf16.mxu0 0
      %1043 = vmatmul.mubr.bf16.gmra.mrb[0].mxu0 %v953
      %v1044 = vpop.f32.mrb[0].mxu0
      %v1045 = vadd.f32 %v931, %v1044
      %v1046 = vpop.f32.mrb[0].mxu0
      %v1047 = vpop.f32.mrb[0].mxu0
      %v1048 = vadd.f32 %v931, %v1047
      %v1049 = vpop.f32.mrb[0].mxu0
      %1050 = vmatprep.mubr.bf16.mxu0 0
      %1051 = vmatmul.mubr.bf16.gmra.mrb[0].mxu0 %v956
      %v1052 = vpop.f32.mrb[0].mxu0
      %v1053 = vadd.f32 %v931, %v1052
      %v1054 = vpop.f32.mrb[0].mxu0
      %v1055 = vpop.f32.mrb[0].mxu0
      %v1056 = vadd.f32 %v931, %v1055
      %v1057 = vpop.f32.mrb[0].mxu0
      %1058 = vmatprep.mubr.bf16.mxu0 0
      %1059 = vmatmul.mubr.bf16.gmra.mrb[0].mxu0 %v959
      %v1060 = vpop.f32.mrb[0].mxu0
      %v1061 = vadd.f32 %v931, %v1060
      %v1062 = vpop.f32.mrb[0].mxu0
      %v1063 = vpop.f32.mrb[0].mxu0
      %v1064 = vadd.f32 %v931, %v1063
      %v1065 = vpop.f32.mrb[0].mxu0
      %1066 = vmatprep.mubr.bf16.mxu0 0
      %1067 = vmatmul.mubr.bf16.gmra.mrb[0].mxu0 %v962
      %v1068 = vpop.f32.mrb[0].mxu0
      %v1069 = vadd.f32 %v931, %v1068
      %v1070 = vpop.f32.mrb[0].mxu0
      %v1071 = vpop.f32.mrb[0].mxu0
      %v1072 = vadd.f32 %v931, %v1071
      %v1073 = vpop.f32.mrb[0].mxu0
      %1074 = vmatprep.mubr.bf16.mxu0 0
      %1075 = vmatmul.mubr.bf16.gmra.mrb[0].mxu0 %v965
      %v1076 = vpop.f32.mrb[0].mxu0
      %v1077 = vadd.f32 %v931, %v1076
      %v1078 = vpop.f32.mrb[0].mxu0
      %v1079 = vpop.f32.mrb[0].mxu0
      %v1080 = vadd.f32 %v931, %v1079
      %v1081 = vpop.f32.mrb[0].mxu0
      %1082 = vmatprep.mubr.bf16.mxu0 0
      %1083 = vmatmul.mubr.bf16.gmra.mrb[0].mxu0 %v968
      %v1084 = vpop.f32.mrb[0].mxu0
      %v1085 = vadd.f32 %v931, %v1084
      %v1086 = vpop.f32.mrb[0].mxu0
      %v1087 = vpop.f32.mrb[0].mxu0
      %v1088 = vadd.f32 %v931, %v1087
      %v1089 = vpop.f32.mrb[0].mxu0
      %1090 = vmatprep.mubr.bf16.mxu0 0
      %1091 = vmatmul.mubr.bf16.gmra.mrb[0].mxu0 %v971
      %v1092 = vpop.f32.mrb[0].mxu0
      %v1093 = vadd.f32 %v931, %v1092
      %v1094 = vpop.f32.mrb[0].mxu0
      %v1095 = vpop.f32.mrb[0].mxu0
      %v1096 = vadd.f32 %v931, %v1095
      %v1097 = vpop.f32.mrb[0].mxu0
      %1098 = vmatprep.mubr.bf16.mxu0 0
      %1099 = vmatmul.mubr.bf16.gmra.mrb[0].mxu0 %v974
      %v1100 = vpop.f32.mrb[0].mxu0
      %v1101 = vadd.f32 %v931, %v1100
      %v1102 = vpop.f32.mrb[0].mxu0
      %v1103 = vpop.f32.mrb[0].mxu0
      %v1104 = vadd.f32 %v931, %v1103
      %v1105 = vpop.f32.mrb[0].mxu0
      %1106 = vmatprep.mubr.bf16.mxu0 0
      %1107 = vmatmul.mubr.bf16.gmra.mrb[0].mxu0 %v977
      %v1108 = vpop.f32.mrb[0].mxu0
      %v1109 = vadd.f32 %v931, %v1108
      %v1110 = vpop.f32.mrb[0].mxu0
      %v1111 = vpop.f32.mrb[0].mxu0
      %v1112 = vadd.f32 %v931, %v1111
      %v1113 = vpop.f32.mrb[0].mxu0
      %1114 = vmatprep.mubr.bf16.mxu0 0
      %1115 = vmatmul.mubr.bf16.gmra.mrb[0].mxu0 %v980
      %v1116 = vpop.f32.mrb[0].mxu0
      %v1117 = vadd.f32 %v931, %v1116
      %v1118 = vpop.f32.mrb[0].mxu0
      %v1119 = vpop.f32.mrb[0].mxu0
      %v1120 = vadd.f32 %v931, %v1119
      %v1121 = vpop.f32.mrb[0].mxu0
      %1122 = vmatprep.mubr.bf16.mxu0 0
      %1123 = vmatmul.mubr.bf16.gmra.mrb[0].mxu0 %v983
      %v1124 = vpop.f32.mrb[0].mxu0
      %v1125 = vadd.f32 %v931, %v1124
      %v1126 = vpop.f32.mrb[0].mxu0
      %v1127 = vpop.f32.mrb[0].mxu0
      %v1128 = vadd.f32 %v931, %v1127
      %v1129 = vpop.f32.mrb[0].mxu0
      %1130 = vmatprep.mubr.bf16.mxu0 0
      %1131 = vmatmul.mubr.bf16.gmra.mrb[0].mxu0 %v986
      %v1132 = vpop.f32.mrb[0].mxu0
      %v1133 = vadd.f32 %v931, %v1132
      %v1134 = vpop.f32.mrb[0].mxu0
      %v1135 = vpop.f32.mrb[0].mxu0
      %v1136 = vadd.f32 %v931, %v1135
      %v1137 = vpop.f32.mrb[0].mxu0
      %1138 = vmatprep.mubr.bf16.mxu0 0
      %1139 = vmatmul.mubr.bf16.gmra.mrb[0].mxu0 %v989
      %v1140 = vpop.f32.mrb[0].mxu0
      %v1141 = vadd.f32 %v931, %v1140
      %v1142 = vpop.f32.mrb[0].mxu0
      %v1143 = vpop.f32.mrb[0].mxu0
      %v1144 = vadd.f32 %v931, %v1143
      %v1145 = vpop.f32.mrb[0].mxu0
      %1146 = vmatprep.mubr.bf16.mxu0 0
      %1147 = vmatmul.mubr.bf16.gmra.mrb[0].mxu0 %v992
      %v1148 = vpop.f32.mrb[0].mxu0
      %v1149 = vadd.f32 %v931, %v1148
      %v1150 = vpop.f32.mrb[0].mxu0
      %v1151 = vpop.f32.mrb[0].mxu0
      %v1152 = vadd.f32 %v931, %v1151
      %v1153 = vpop.f32.mrb[0].mxu0
      %1154 = vdwg.mxu0
      %v1155 = vpack.c.bf16 %v1032, %v1029
      %v1156 = vpack.c.bf16 %v1040, %v1037
      %v1157 = vpack.c.bf16 %v1048, %v1045
      %v1158 = vpack.c.bf16 %v1056, %v1053
      %v1159 = vpack.c.bf16 %v1064, %v1061
      %v1160 = vpack.c.bf16 %v1072, %v1069
      %v1161 = vpack.c.bf16 %v1080, %v1077
      %v1162 = vpack.c.bf16 %v1088, %v1085
      %v1163 = vpack.c.bf16 %v1096, %v1093
      %v1164 = vpack.c.bf16 %v1104, %v1101
      %v1165 = vpack.c.bf16 %v1112, %v1109
      %v1166 = vpack.c.bf16 %v1120, %v1117
      %v1167 = vpack.c.bf16 %v1128, %v1125
      %v1168 = vpack.c.bf16 %v1136, %v1133
      %v1169 = vpack.c.bf16 %v1144, %v1141
      %v1170 = vpack.c.bf16 %v1152, %v1149
      %v1171 = vld [vmem:[%s5] sm:$0xf]
      %v1172 = vld [vmem:[%s5 + $0x4] sm:$0xf]
      %v1173 = vld [vmem:[%s5 + $0x8] sm:$0xf]
      %v1174 = vld [vmem:[%s5 + $0xc] sm:$0xf]
      %v1175 = vld [vmem:[%s6] sm:$0x1]
      %v1177 = vlaneseq
      %v1178 = vshrl.u32 %v1177, 7
      %v1179 = vsub.s32 0, %v1178
      %v1180 = vrot.slane %v1175, %v1179
      %v1186 = vunpack.c.l.b16 %v1171
      %v1187 = vunpack.c.l.b16 %v1172
      %v1188 = vunpack.c.l.b16 %v1173
      %v1189 = vunpack.c.l.b16 %v1174
      %v1190 = vpack.c.b16 %v1187, %v1186
      %v1191 = vpack.c.b16 %v1189, %v1188
      %v1195 = vsel %vm945, %v1155, 0
      %v1198 = vsel %vm945, %v1156, 0
      %v1201 = vsel %vm945, %v1157, 0
      %v1204 = vsel %vm945, %v1158, 0
      %v1207 = vsel %vm945, %v1159, 0
      %v1210 = vsel %vm945, %v1160, 0
      %v1213 = vsel %vm945, %v1161, 0
      %v1216 = vsel %vm945, %v1162, 0
      %v1219 = vsel %vm945, %v1163, 0
      %v1222 = vsel %vm945, %v1164, 0
      %v1225 = vsel %vm945, %v1165, 0
      %v1228 = vsel %vm945, %v1166, 0
      %v1231 = vsel %vm945, %v1167, 0
      %v1234 = vsel %vm945, %v1168, 0
      %v1237 = vsel %vm945, %v1169, 0
      %v1240 = vsel %vm945, %v1170, 0
      %1242 = vmatprep.subr.bf16.mxu0 0
      %1243 = vmatpush1.bf16.msra.mxu0 %v1190
      %1244 = vmatprep.subr.bf16.mxu0 0
      %1245 = vmatpush1.bf16.msra.mxu0 %v1191
      %1246 = vmatprep.subr.bf16.mxu0 0
      %1247 = vmatpush1.bf16.msra.mxu0 0
      %1248 = vmatprep.subr.bf16.mxu0 0
      %1249 = vmatpush1.bf16.msra.mxu0 0
      %1250 = vmatprep.subr.bf16.mxu0 0
      %1251 = vmatpush1.bf16.msra.mxu0 0
      %1252 = vmatprep.subr.bf16.mxu0 0
      %1253 = vmatpush1.bf16.msra.mxu0 0
      %1254 = vmatprep.subr.bf16.mxu0 0
      %1255 = vmatpush1.bf16.msra.mxu0 0
      %1256 = vmatprep.subr.bf16.mxu0 0
      %1257 = vmatpush1.bf16.msra.mxu0 0
      %1258 = vmatprep.subr.bf16.mxu0 0
      %1259 = vmatpush1.bf16.msra.mxu0 0
      %1260 = vmatprep.subr.bf16.mxu0 0
      %1261 = vmatpush1.bf16.msra.mxu0 0
      %1262 = vmatprep.subr.bf16.mxu0 0
      %1263 = vmatpush1.bf16.msra.mxu0 0
      %1264 = vmatprep.subr.bf16.mxu0 0
      %1265 = vmatpush1.bf16.msra.mxu0 0
      %1266 = vmatprep.subr.bf16.mxu0 0
      %1267 = vmatpush1.bf16.msra.mxu0 0
      %1268 = vmatprep.subr.bf16.mxu0 0
      %1269 = vmatpush1.bf16.msra.mxu0 0
      %1270 = vmatprep.subr.bf16.mxu0 0
      %1271 = vmatpush1.bf16.msra.mxu0 0
      %1272 = vmatprep.subr.bf16.mxu0 0
      %1273 = vmatpush1.bf16.msra.mxu0 0
      %1274 = vmatprep.mubr.bf16.mxu0 0
      %1275 = vmatmul.mubr.bf16.gmra.mrb[0].mxu0 %v1195
      %v1276 = vpop.f32.mrb[0].mxu0
      %v1277 = vadd.f32 %v1180, %v1276
      %v1278 = vpop.f32.mrb[0].mxu0
      %v1279 = vpop.f32.mrb[0].mxu0
      %v1280 = vadd.f32 %v1180, %v1279
      %v1281 = vpop.f32.mrb[0].mxu0
      %1282 = vmatprep.mubr.bf16.mxu0 0
      %1283 = vmatmul.mubr.bf16.gmra.mrb[0].mxu0 %v1198
      %v1284 = vpop.f32.mrb[0].mxu0
      %v1285 = vadd.f32 %v1180, %v1284
      %v1286 = vpop.f32.mrb[0].mxu0
      %v1287 = vpop.f32.mrb[0].mxu0
      %v1288 = vadd.f32 %v1180, %v1287
      %v1289 = vpop.f32.mrb[0].mxu0
      %1290 = vmatprep.mubr.bf16.mxu0 0
      %1291 = vmatmul.mubr.bf16.gmra.mrb[0].mxu0 %v1201
      %v1292 = vpop.f32.mrb[0].mxu0
      %v1293 = vadd.f32 %v1180, %v1292
      %v1294 = vpop.f32.mrb[0].mxu0
      %v1295 = vpop.f32.mrb[0].mxu0
      %v1296 = vadd.f32 %v1180, %v1295
      %v1297 = vpop.f32.mrb[0].mxu0
      %1298 = vmatprep.mubr.bf16.mxu0 0
      %1299 = vmatmul.mubr.bf16.gmra.mrb[0].mxu0 %v1204
      %v1300 = vpop.f32.mrb[0].mxu0
      %v1301 = vadd.f32 %v1180, %v1300
      %v1302 = vpop.f32.mrb[0].mxu0
      %v1303 = vpop.f32.mrb[0].mxu0
      %v1304 = vadd.f32 %v1180, %v1303
      %v1305 = vpop.f32.mrb[0].mxu0
      %1306 = vmatprep.mubr.bf16.mxu0 0
      %1307 = vmatmul.mubr.bf16.gmra.mrb[0].mxu0 %v1207
      %v1308 = vpop.f32.mrb[0].mxu0
      %v1309 = vadd.f32 %v1180, %v1308
      %v1310 = vpop.f32.mrb[0].mxu0
      %v1311 = vpop.f32.mrb[0].mxu0
      %v1312 = vadd.f32 %v1180, %v1311
      %v1313 = vpop.f32.mrb[0].mxu0
      %1314 = vmatprep.mubr.bf16.mxu0 0
      %1315 = vmatmul.mubr.bf16.gmra.mrb[0].mxu0 %v1210
      %v1316 = vpop.f32.mrb[0].mxu0
      %v1317 = vadd.f32 %v1180, %v1316
      %v1318 = vpop.f32.mrb[0].mxu0
      %v1319 = vpop.f32.mrb[0].mxu0
      %v1320 = vadd.f32 %v1180, %v1319
      %v1321 = vpop.f32.mrb[0].mxu0
      %1322 = vmatprep.mubr.bf16.mxu0 0
      %1323 = vmatmul.mubr.bf16.gmra.mrb[0].mxu0 %v1213
      %v1324 = vpop.f32.mrb[0].mxu0
      %v1325 = vadd.f32 %v1180, %v1324
      %v1326 = vpop.f32.mrb[0].mxu0
      %v1327 = vpop.f32.mrb[0].mxu0
      %v1328 = vadd.f32 %v1180, %v1327
      %v1329 = vpop.f32.mrb[0].mxu0
      %1330 = vmatprep.mubr.bf16.mxu0 0
      %1331 = vmatmul.mubr.bf16.gmra.mrb[0].mxu0 %v1216
      %v1332 = vpop.f32.mrb[0].mxu0
      %v1333 = vadd.f32 %v1180, %v1332
      %v1334 = vpop.f32.mrb[0].mxu0
      %v1335 = vpop.f32.mrb[0].mxu0
      %v1336 = vadd.f32 %v1180, %v1335
      %v1337 = vpop.f32.mrb[0].mxu0
      %1338 = vmatprep.mubr.bf16.mxu0 0
      %1339 = vmatmul.mubr.bf16.gmra.mrb[0].mxu0 %v1219
      %v1340 = vpop.f32.mrb[0].mxu0
      %v1341 = vadd.f32 %v1180, %v1340
      %v1342 = vpop.f32.mrb[0].mxu0
      %v1343 = vpop.f32.mrb[0].mxu0
      %v1344 = vadd.f32 %v1180, %v1343
      %v1345 = vpop.f32.mrb[0].mxu0
      %1346 = vmatprep.mubr.bf16.mxu0 0
      %1347 = vmatmul.mubr.bf16.gmra.mrb[0].mxu0 %v1222
      %v1348 = vpop.f32.mrb[0].mxu0
      %v1349 = vadd.f32 %v1180, %v1348
      %v1350 = vpop.f32.mrb[0].mxu0
      %v1351 = vpop.f32.mrb[0].mxu0
      %v1352 = vadd.f32 %v1180, %v1351
      %v1353 = vpop.f32.mrb[0].mxu0
      %1354 = vmatprep.mubr.bf16.mxu0 0
      %1355 = vmatmul.mubr.bf16.gmra.mrb[0].mxu0 %v1225
      %v1356 = vpop.f32.mrb[0].mxu0
      %v1357 = vadd.f32 %v1180, %v1356
      %v1358 = vpop.f32.mrb[0].mxu0
      %v1359 = vpop.f32.mrb[0].mxu0
      %v1360 = vadd.f32 %v1180, %v1359
      %v1361 = vpop.f32.mrb[0].mxu0
      %1362 = vmatprep.mubr.bf16.mxu0 0
      %1363 = vmatmul.mubr.bf16.gmra.mrb[0].mxu0 %v1228
      %v1364 = vpop.f32.mrb[0].mxu0
      %v1365 = vadd.f32 %v1180, %v1364
      %v1366 = vpop.f32.mrb[0].mxu0
      %v1367 = vpop.f32.mrb[0].mxu0
      %v1368 = vadd.f32 %v1180, %v1367
      %v1369 = vpop.f32.mrb[0].mxu0
      %1370 = vmatprep.mubr.bf16.mxu0 0
      %1371 = vmatmul.mubr.bf16.gmra.mrb[0].mxu0 %v1231
      %v1372 = vpop.f32.mrb[0].mxu0
      %v1373 = vadd.f32 %v1180, %v1372
      %v1374 = vpop.f32.mrb[0].mxu0
      %v1375 = vpop.f32.mrb[0].mxu0
      %v1376 = vadd.f32 %v1180, %v1375
      %v1377 = vpop.f32.mrb[0].mxu0
      %1378 = vmatprep.mubr.bf16.mxu0 0
      %1379 = vmatmul.mubr.bf16.gmra.mrb[0].mxu0 %v1234
      %v1380 = vpop.f32.mrb[0].mxu0
      %v1381 = vadd.f32 %v1180, %v1380
      %v1382 = vpop.f32.mrb[0].mxu0
      %v1383 = vpop.f32.mrb[0].mxu0
      %v1384 = vadd.f32 %v1180, %v1383
      %v1385 = vpop.f32.mrb[0].mxu0
      %1386 = vmatprep.mubr.bf16.mxu0 0
      %1387 = vmatmul.mubr.bf16.gmra.mrb[0].mxu0 %v1237
      %v1388 = vpop.f32.mrb[0].mxu0
      %v1389 = vadd.f32 %v1180, %v1388
      %v1390 = vpop.f32.mrb[0].mxu0
      %v1391 = vpop.f32.mrb[0].mxu0
      %v1392 = vadd.f32 %v1180, %v1391
      %v1393 = vpop.f32.mrb[0].mxu0
      %1394 = vmatprep.mubr.bf16.mxu0 0
      %1395 = vmatmul.mubr.bf16.gmra.mrb[0].mxu0 %v1240
      %v1396 = vpop.f32.mrb[0].mxu0
      %v1397 = vadd.f32 %v1180, %v1396
      %v1398 = vpop.f32.mrb[0].mxu0
      %v1399 = vpop.f32.mrb[0].mxu0
      %v1400 = vadd.f32 %v1180, %v1399
      %v1401 = vpop.f32.mrb[0].mxu0
      %1402 = vdwg.mxu0
      %v1403 = vld [vmem:[%s7] sm:$0xf]
      %v1404 = vld [vmem:[%s7 + $0x4] sm:$0xf]
      %v1405 = vld [vmem:[%s7 + $0x8] sm:$0xf]
      %v1406 = vld [vmem:[%s7 + $0xc] sm:$0xf]
      %v1407 = vld [vmem:[%s8] sm:$0x1]
      %v1409 = vlaneseq
      %v1410 = vshrl.u32 %v1409, 7
      %v1411 = vsub.s32 0, %v1410
      %v1412 = vrot.slane %v1407, %v1411
      %v1418 = vunpack.c.l.b16 %v1403
      %v1419 = vunpack.c.l.b16 %v1404
      %v1420 = vunpack.c.l.b16 %v1405
      %v1421 = vunpack.c.l.b16 %v1406
      %v1422 = vpack.c.b16 %v1419, %v1418
      %v1423 = vpack.c.b16 %v1421, %v1420
      %1426 = vmatprep.subr.bf16.mxu0 0
      %1427 = vmatpush1.bf16.msra.mxu0 %v1422
      %1428 = vmatprep.subr.bf16.mxu0 0
      %1429 = vmatpush1.bf16.msra.mxu0 %v1423
      %1430 = vmatprep.subr.bf16.mxu0 0
      %1431 = vmatpush1.bf16.msra.mxu0 0
      %1432 = vmatprep.subr.bf16.mxu0 0
      %1433 = vmatpush1.bf16.msra.mxu0 0
      %1434 = vmatprep.subr.bf16.mxu0 0
      %1435 = vmatpush1.bf16.msra.mxu0 0
      %1436 = vmatprep.subr.bf16.mxu0 0
      %1437 = vmatpush1.bf16.msra.mxu0 0
      %1438 = vmatprep.subr.bf16.mxu0 0
      %1439 = vmatpush1.bf16.msra.mxu0 0
      %1440 = vmatprep.subr.bf16.mxu0 0
      %1441 = vmatpush1.bf16.msra.mxu0 0
      %1442 = vmatprep.subr.bf16.mxu0 0
      %1443 = vmatpush1.bf16.msra.mxu0 0
      %1444 = vmatprep.subr.bf16.mxu0 0
      %1445 = vmatpush1.bf16.msra.mxu0 0
      %1446 = vmatprep.subr.bf16.mxu0 0
      %1447 = vmatpush1.bf16.msra.mxu0 0
      %1448 = vmatprep.subr.bf16.mxu0 0
      %1449 = vmatpush1.bf16.msra.mxu0 0
      %1450 = vmatprep.subr.bf16.mxu0 0
      %1451 = vmatpush1.bf16.msra.mxu0 0
      %1452 = vmatprep.subr.bf16.mxu0 0
      %1453 = vmatpush1.bf16.msra.mxu0 0
      %1454 = vmatprep.subr.bf16.mxu0 0
      %1455 = vmatpush1.bf16.msra.mxu0 0
      %1456 = vmatprep.subr.bf16.mxu0 0
      %1457 = vmatpush1.bf16.msra.mxu0 0
      %1458 = vmatprep.mubr.bf16.mxu0 0
      %1459 = vmatmul.mubr.bf16.gmra.mrb[0].mxu0 %v1195
      %v1460 = vpop.f32.mrb[0].mxu0
      %v1461 = vadd.f32 %v1412, %v1460
      %v1462 = vpop.f32.mrb[0].mxu0
      %v1463 = vpop.f32.mrb[0].mxu0
      %v1464 = vadd.f32 %v1412, %v1463
      %v1465 = vpop.f32.mrb[0].mxu0
      %1466 = vmatprep.mubr.bf16.mxu0 0
      %1467 = vmatmul.mubr.bf16.gmra.mrb[0].mxu0 %v1198
      %v1468 = vpop.f32.mrb[0].mxu0
      %v1469 = vadd.f32 %v1412, %v1468
      %v1470 = vpop.f32.mrb[0].mxu0
      %v1471 = vpop.f32.mrb[0].mxu0
      %v1472 = vadd.f32 %v1412, %v1471
      %v1473 = vpop.f32.mrb[0].mxu0
      %1474 = vmatprep.mubr.bf16.mxu0 0
      %1475 = vmatmul.mubr.bf16.gmra.mrb[0].mxu0 %v1201
      %v1476 = vpop.f32.mrb[0].mxu0
      %v1477 = vadd.f32 %v1412, %v1476
      %v1478 = vpop.f32.mrb[0].mxu0
      %v1479 = vpop.f32.mrb[0].mxu0
      %v1480 = vadd.f32 %v1412, %v1479
      %v1481 = vpop.f32.mrb[0].mxu0
      %1482 = vmatprep.mubr.bf16.mxu0 0
      %1483 = vmatmul.mubr.bf16.gmra.mrb[0].mxu0 %v1204
      %v1484 = vpop.f32.mrb[0].mxu0
      %v1485 = vadd.f32 %v1412, %v1484
      %v1486 = vpop.f32.mrb[0].mxu0
      %v1487 = vpop.f32.mrb[0].mxu0
      %v1488 = vadd.f32 %v1412, %v1487
      %v1489 = vpop.f32.mrb[0].mxu0
      %1490 = vmatprep.mubr.bf16.mxu0 0
      %1491 = vmatmul.mubr.bf16.gmra.mrb[0].mxu0 %v1207
      %v1492 = vpop.f32.mrb[0].mxu0
      %v1493 = vadd.f32 %v1412, %v1492
      %v1494 = vpop.f32.mrb[0].mxu0
      %v1495 = vpop.f32.mrb[0].mxu0
      %v1496 = vadd.f32 %v1412, %v1495
      %v1497 = vpop.f32.mrb[0].mxu0
      %1498 = vmatprep.mubr.bf16.mxu0 0
      %1499 = vmatmul.mubr.bf16.gmra.mrb[0].mxu0 %v1210
      %v1500 = vpop.f32.mrb[0].mxu0
      %v1501 = vadd.f32 %v1412, %v1500
      %v1502 = vpop.f32.mrb[0].mxu0
      %v1503 = vpop.f32.mrb[0].mxu0
      %v1504 = vadd.f32 %v1412, %v1503
      %v1505 = vpop.f32.mrb[0].mxu0
      %1506 = vmatprep.mubr.bf16.mxu0 0
      %1507 = vmatmul.mubr.bf16.gmra.mrb[0].mxu0 %v1213
      %v1508 = vpop.f32.mrb[0].mxu0
      %v1509 = vadd.f32 %v1412, %v1508
      %v1510 = vpop.f32.mrb[0].mxu0
      %v1511 = vpop.f32.mrb[0].mxu0
      %v1512 = vadd.f32 %v1412, %v1511
      %v1513 = vpop.f32.mrb[0].mxu0
      %1514 = vmatprep.mubr.bf16.mxu0 0
      %1515 = vmatmul.mubr.bf16.gmra.mrb[0].mxu0 %v1216
      %v1516 = vpop.f32.mrb[0].mxu0
      %v1517 = vadd.f32 %v1412, %v1516
      %v1518 = vpop.f32.mrb[0].mxu0
      %v1519 = vpop.f32.mrb[0].mxu0
      %v1520 = vadd.f32 %v1412, %v1519
      %v1521 = vpop.f32.mrb[0].mxu0
      %1522 = vmatprep.mubr.bf16.mxu0 0
      %1523 = vmatmul.mubr.bf16.gmra.mrb[0].mxu0 %v1219
      %v1524 = vpop.f32.mrb[0].mxu0
      %v1525 = vadd.f32 %v1412, %v1524
      %v1526 = vpop.f32.mrb[0].mxu0
      %v1527 = vpop.f32.mrb[0].mxu0
      %v1528 = vadd.f32 %v1412, %v1527
      %v1529 = vpop.f32.mrb[0].mxu0
      %1530 = vmatprep.mubr.bf16.mxu0 0
      %1531 = vmatmul.mubr.bf16.gmra.mrb[0].mxu0 %v1222
      %v1532 = vpop.f32.mrb[0].mxu0
      %v1533 = vadd.f32 %v1412, %v1532
      %v1534 = vpop.f32.mrb[0].mxu0
      %v1535 = vpop.f32.mrb[0].mxu0
      %v1536 = vadd.f32 %v1412, %v1535
      %v1537 = vpop.f32.mrb[0].mxu0
      %1538 = vmatprep.mubr.bf16.mxu0 0
      %1539 = vmatmul.mubr.bf16.gmra.mrb[0].mxu0 %v1225
      %v1540 = vpop.f32.mrb[0].mxu0
      %v1541 = vadd.f32 %v1412, %v1540
      %v1542 = vpop.f32.mrb[0].mxu0
      %v1543 = vpop.f32.mrb[0].mxu0
      %v1544 = vadd.f32 %v1412, %v1543
      %v1545 = vpop.f32.mrb[0].mxu0
      %1546 = vmatprep.mubr.bf16.mxu0 0
      %1547 = vmatmul.mubr.bf16.gmra.mrb[0].mxu0 %v1228
      %v1548 = vpop.f32.mrb[0].mxu0
      %v1549 = vadd.f32 %v1412, %v1548
      %v1550 = vpop.f32.mrb[0].mxu0
      %v1551 = vpop.f32.mrb[0].mxu0
      %v1552 = vadd.f32 %v1412, %v1551
      %v1553 = vpop.f32.mrb[0].mxu0
      %1554 = vmatprep.mubr.bf16.mxu0 0
      %1555 = vmatmul.mubr.bf16.gmra.mrb[0].mxu0 %v1231
      %v1556 = vpop.f32.mrb[0].mxu0
      %v1557 = vadd.f32 %v1412, %v1556
      %v1558 = vpop.f32.mrb[0].mxu0
      %v1559 = vpop.f32.mrb[0].mxu0
      %v1560 = vadd.f32 %v1412, %v1559
      %v1561 = vpop.f32.mrb[0].mxu0
      %1562 = vmatprep.mubr.bf16.mxu0 0
      %1563 = vmatmul.mubr.bf16.gmra.mrb[0].mxu0 %v1234
      %v1564 = vpop.f32.mrb[0].mxu0
      %v1565 = vadd.f32 %v1412, %v1564
      %v1566 = vpop.f32.mrb[0].mxu0
      %v1567 = vpop.f32.mrb[0].mxu0
      %v1568 = vadd.f32 %v1412, %v1567
      %v1569 = vpop.f32.mrb[0].mxu0
      %1570 = vmatprep.mubr.bf16.mxu0 0
      %1571 = vmatmul.mubr.bf16.gmra.mrb[0].mxu0 %v1237
      %v1572 = vpop.f32.mrb[0].mxu0
      %v1573 = vadd.f32 %v1412, %v1572
      %v1574 = vpop.f32.mrb[0].mxu0
      %v1575 = vpop.f32.mrb[0].mxu0
      %v1576 = vadd.f32 %v1412, %v1575
      %v1577 = vpop.f32.mrb[0].mxu0
      %1578 = vmatprep.mubr.bf16.mxu0 0
      %1579 = vmatmul.mubr.bf16.gmra.mrb[0].mxu0 %v1240
      %v1580 = vpop.f32.mrb[0].mxu0
      %v1581 = vadd.f32 %v1412, %v1580
      %v1582 = vpop.f32.mrb[0].mxu0
      %v1583 = vpop.f32.mrb[0].mxu0
      %v1584 = vadd.f32 %v1412, %v1583
      %v1585 = vpop.f32.mrb[0].mxu0
      %1586 = vdwg.mxu0
      %v1587 = vpack.c.bf16 %v1280, %v1277
      %v1588 = vpack.c.bf16 %v1288, %v1285
      %v1589 = vpack.c.bf16 %v1296, %v1293
      %v1590 = vpack.c.bf16 %v1304, %v1301
      %v1591 = vpack.c.bf16 %v1312, %v1309
      %v1592 = vpack.c.bf16 %v1320, %v1317
      %v1593 = vpack.c.bf16 %v1328, %v1325
      %v1594 = vpack.c.bf16 %v1336, %v1333
      %v1595 = vpack.c.bf16 %v1344, %v1341
      %v1596 = vpack.c.bf16 %v1352, %v1349
      %v1597 = vpack.c.bf16 %v1360, %v1357
      %v1598 = vpack.c.bf16 %v1368, %v1365
      %v1599 = vpack.c.bf16 %v1376, %v1373
      %v1600 = vpack.c.bf16 %v1384, %v1381
      %v1601 = vpack.c.bf16 %v1392, %v1389
      %v1602 = vpack.c.bf16 %v1400, %v1397
      %v1603 = vpack.c.bf16 %v1464, %v1461
      %v1604 = vpack.c.bf16 %v1472, %v1469
      %v1605 = vpack.c.bf16 %v1480, %v1477
      %v1606 = vpack.c.bf16 %v1488, %v1485
      %v1607 = vpack.c.bf16 %v1496, %v1493
      %v1608 = vpack.c.bf16 %v1504, %v1501
      %v1609 = vpack.c.bf16 %v1512, %v1509
      %v1610 = vpack.c.bf16 %v1520, %v1517
      %v1611 = vpack.c.bf16 %v1528, %v1525
      %v1612 = vpack.c.bf16 %v1536, %v1533
      %v1613 = vpack.c.bf16 %v1544, %v1541
      %v1614 = vpack.c.bf16 %v1552, %v1549
      %v1615 = vpack.c.bf16 %v1560, %v1557
      %v1616 = vpack.c.bf16 %v1568, %v1565
      %v1617 = vpack.c.bf16 %v1576, %v1573
      %v1618 = vpack.c.bf16 %v1584, %v1581
      loop: start=0, step=1, limit=4
      $region73: #{tpu_custom_call.1} parent=71 // loop_pre_header
        _
      $region74: #{tpu_custom_call.1} parent=71 // loop_header
        %s1620 = sphi 0, %s1624
        %p1621 = scmp.ge.s32.totalorder %s1620, 4
        %v1625 = vphi 0.0, %v2850
        %v1626 = vphi 0.0, %v2851
        %v1627 = vphi 0.0, %v2852
        %v1628 = vphi 0.0, %v2853
        %v1629 = vphi 0.0, %v2854
        %v1630 = vphi 0.0, %v2855
        %v1631 = vphi 0.0, %v2856
        %v1632 = vphi 0.0, %v2857
        %v1633 = vphi 0.0, %v2858
        %v1634 = vphi 0.0, %v2859
        %v1635 = vphi 0.0, %v2860
        %v1636 = vphi 0.0, %v2861
        %v1637 = vphi 0.0, %v2862
        %v1638 = vphi 0.0, %v2863
        %v1639 = vphi 0.0, %v2864
        %v1640 = vphi 0.0, %v2865
        %v1641 = vphi 0.0, %v2866
        %v1642 = vphi 0.0, %v2867
        %v1643 = vphi 0.0, %v2868
        %v1644 = vphi 0.0, %v2869
        %v1645 = vphi 0.0, %v2870
        %v1646 = vphi 0.0, %v2871
        %v1647 = vphi 0.0, %v2872
        %v1648 = vphi 0.0, %v2873
        %v1649 = vphi 0.0, %v2874
        %v1650 = vphi 0.0, %v2875
        %v1651 = vphi 0.0, %v2876
        %v1652 = vphi 0.0, %v2877
        %v1653 = vphi 0.0, %v2878
        %v1654 = vphi 0.0, %v2879
        %v1655 = vphi 0.0, %v2880
        %v1656 = vphi 0.0, %v2881
      $region75: #{tpu_custom_call.1} parent=71 // loop_header_branch
        %1623 = sbr.rel (%p1621) target = $region79
      $region76: #{tpu_custom_call.1} parent=71 // loop_body
        %s1657 = smul.u32 %s1620, 8
        %v1658 = vstv %s1657
        %vm1659 = vcmp.ge.s32.totalorder %v475, %v1658
        %s1660 = sadd.s32 %s1620, 1
        %s1661 = smul.u32 %s1660, 8
        %v1662 = vstv %s1661
        %vm1663 = vcmp.lt.s32.totalorder %v475, %v1662
        %vm1664 = vmand %vm1659, %vm1663
        %v1665 = vsel %vm1664, 1, 0
        %v1666 = vcvt.s32.f32 %v1665
        %v1667 = vpack.c.bf16 %v1666, %v1666
        %v1668 = vmul.bf16 %v1603, %v1667
        %v1669 = vmul.bf16 %v1604, %v1667
        %v1670 = vmul.bf16 %v1605, %v1667
        %v1671 = vmul.bf16 %v1606, %v1667
        %v1672 = vmul.bf16 %v1607, %v1667
        %v1673 = vmul.bf16 %v1608, %v1667
        %v1674 = vmul.bf16 %v1609, %v1667
        %v1675 = vmul.bf16 %v1610, %v1667
        %v1676 = vmul.bf16 %v1611, %v1667
        %v1677 = vmul.bf16 %v1612, %v1667
        %v1678 = vmul.bf16 %v1613, %v1667
        %v1679 = vmul.bf16 %v1614, %v1667
        %v1680 = vmul.bf16 %v1615, %v1667
        %v1681 = vmul.bf16 %v1616, %v1667
        %v1682 = vmul.bf16 %v1617, %v1667
        %v1683 = vmul.bf16 %v1618, %v1667
        %v1685 = vsel %vm945, %v1587, 0
        %v1688 = vsel %vm945, %v1588, 0
        %v1691 = vsel %vm945, %v1589, 0
        %v1694 = vsel %vm945, %v1590, 0
        %v1697 = vsel %vm945, %v1591, 0
        %v1700 = vsel %vm945, %v1592, 0
        %v1703 = vsel %vm945, %v1593, 0
        %v1706 = vsel %vm945, %v1594, 0
        %v1709 = vsel %vm945, %v1595, 0
        %v1712 = vsel %vm945, %v1596, 0
        %v1715 = vsel %vm945, %v1597, 0
        %v1718 = vsel %vm945, %v1598, 0
        %v1721 = vsel %vm945, %v1599, 0
        %v1724 = vsel %vm945, %v1600, 0
        %v1727 = vsel %vm945, %v1601, 0
        %v1730 = vsel %vm945, %v1602, 0
        %v1733 = vsel %vm945, %v1668, 0
        %v1736 = vsel %vm945, %v1669, 0
        %v1739 = vsel %vm945, %v1670, 0
        %v1742 = vsel %vm945, %v1671, 0
        %v1745 = vsel %vm945, %v1672, 0
        %v1748 = vsel %vm945, %v1673, 0
        %v1751 = vsel %vm945, %v1674, 0
        %v1754 = vsel %vm945, %v1675, 0
        %v1757 = vsel %vm945, %v1676, 0
        %v1760 = vsel %vm945, %v1677, 0
        %v1763 = vsel %vm945, %v1678, 0
        %v1766 = vsel %vm945, %v1679, 0
        %v1769 = vsel %vm945, %v1680, 0
        %v1772 = vsel %vm945, %v1681, 0
        %v1775 = vsel %vm945, %v1682, 0
        %v1778 = vsel %vm945, %v1683, 0
        %1780 = vmatprep.subr.bf16.mxu0 0
        %1781 = vmatpush1.bf16.xpose.msra.mxu0 %v1733
        %1782 = vmatprep.subr.bf16.mxu0 0
        %1783 = vmatpush1.bf16.xpose.msra.mxu0 %v1736
        %1784 = vmatprep.subr.bf16.mxu0 0
        %1785 = vmatpush1.bf16.xpose.msra.mxu0 %v1739
        %1786 = vmatprep.subr.bf16.mxu0 0
        %1787 = vmatpush1.bf16.xpose.msra.mxu0 %v1742
        %1788 = vmatprep.subr.bf16.mxu0 0
        %1789 = vmatpush1.bf16.xpose.msra.mxu0 %v1745
        %1790 = vmatprep.subr.bf16.mxu0 0
        %1791 = vmatpush1.bf16.xpose.msra.mxu0 %v1748
        %1792 = vmatprep.subr.bf16.mxu0 0
        %1793 = vmatpush1.bf16.xpose.msra.mxu0 %v1751
        %1794 = vmatprep.subr.bf16.mxu0 0
        %1795 = vmatpush1.bf16.xpose.msra.mxu0 %v1754
        %1796 = vmatprep.subr.bf16.mxu0 0
        %1797 = vmatpush1.bf16.xpose.msra.mxu0 %v1757
        %1798 = vmatprep.subr.bf16.mxu0 0
        %1799 = vmatpush1.bf16.xpose.msra.mxu0 %v1760
        %1800 = vmatprep.subr.bf16.mxu0 0
        %1801 = vmatpush1.bf16.xpose.msra.mxu0 %v1763
        %1802 = vmatprep.subr.bf16.mxu0 0
        %1803 = vmatpush1.bf16.xpose.msra.mxu0 %v1766
        %1804 = vmatprep.subr.bf16.mxu0 0
        %1805 = vmatpush1.bf16.xpose.msra.mxu0 %v1769
        %1806 = vmatprep.subr.bf16.mxu0 0
        %1807 = vmatpush1.bf16.xpose.msra.mxu0 %v1772
        %1808 = vmatprep.subr.bf16.mxu0 0
        %1809 = vmatpush1.bf16.xpose.msra.mxu0 %v1775
        %1810 = vmatprep.subr.bf16.mxu0 0
        %1811 = vmatpush1.bf16.xpose.msra.mxu0 %v1778
        %1812 = vmatprep.mubr.bf16.mxu0 0
        %1813 = vmatmul.mubr.bf16.gmra.mrb[0].mxu0 %v1685
        %v1814 = vpop.f32.mrb[0].mxu0
        %v1815 = vadd.f32 0.0, %v1814
        %v1816 = vpop.f32.mrb[0].mxu0
        %v1817 = vadd.f32 0.0, %v1816
        %v1818 = vpop.f32.mrb[0].mxu0
        %v1819 = vadd.f32 0.0, %v1818
        %v1820 = vpop.f32.mrb[0].mxu0
        %v1821 = vadd.f32 0.0, %v1820
        %1822 = vmatprep.mubr.bf16.mxu0 0
        %1823 = vmatmul.mubr.bf16.gmra.mrb[0].mxu0 %v1688
        %v1824 = vpop.f32.mrb[0].mxu0
        %v1825 = vadd.f32 0.0, %v1824
        %v1826 = vpop.f32.mrb[0].mxu0
        %v1827 = vadd.f32 0.0, %v1826
        %v1828 = vpop.f32.mrb[0].mxu0
        %v1829 = vadd.f32 0.0, %v1828
        %v1830 = vpop.f32.mrb[0].mxu0
        %v1831 = vadd.f32 0.0, %v1830
        %1832 = vmatprep.mubr.bf16.mxu0 0
        %1833 = vmatmul.mubr.bf16.gmra.mrb[0].mxu0 %v1691
        %v1834 = vpop.f32.mrb[0].mxu0
        %v1835 = vadd.f32 0.0, %v1834
        %v1836 = vpop.f32.mrb[0].mxu0
        %v1837 = vadd.f32 0.0, %v1836
        %v1838 = vpop.f32.mrb[0].mxu0
        %v1839 = vadd.f32 0.0, %v1838
        %v1840 = vpop.f32.mrb[0].mxu0
        %v1841 = vadd.f32 0.0, %v1840
        %1842 = vmatprep.mubr.bf16.mxu0 0
        %1843 = vmatmul.mubr.bf16.gmra.mrb[0].mxu0 %v1694
        %v1844 = vpop.f32.mrb[0].mxu0
        %v1845 = vadd.f32 0.0, %v1844
        %v1846 = vpop.f32.mrb[0].mxu0
        %v1847 = vadd.f32 0.0, %v1846
        %v1848 = vpop.f32.mrb[0].mxu0
        %v1849 = vadd.f32 0.0, %v1848
        %v1850 = vpop.f32.mrb[0].mxu0
        %v1851 = vadd.f32 0.0, %v1850
        %1852 = vmatprep.mubr.bf16.mxu0 0
        %1853 = vmatmul.mubr.bf16.gmra.mrb[0].mxu0 %v1697
        %v1854 = vpop.f32.mrb[0].mxu0
        %v1855 = vadd.f32 0.0, %v1854
        %v1856 = vpop.f32.mrb[0].mxu0
        %v1857 = vadd.f32 0.0, %v1856
        %v1858 = vpop.f32.mrb[0].mxu0
        %v1859 = vadd.f32 0.0, %v1858
        %v1860 = vpop.f32.mrb[0].mxu0
        %v1861 = vadd.f32 0.0, %v1860
        %1862 = vmatprep.mubr.bf16.mxu0 0
        %1863 = vmatmul.mubr.bf16.gmra.mrb[0].mxu0 %v1700
        %v1864 = vpop.f32.mrb[0].mxu0
        %v1865 = vadd.f32 0.0, %v1864
        %v1866 = vpop.f32.mrb[0].mxu0
        %v1867 = vadd.f32 0.0, %v1866
        %v1868 = vpop.f32.mrb[0].mxu0
        %v1869 = vadd.f32 0.0, %v1868
        %v1870 = vpop.f32.mrb[0].mxu0
        %v1871 = vadd.f32 0.0, %v1870
        %1872 = vmatprep.mubr.bf16.mxu0 0
        %1873 = vmatmul.mubr.bf16.gmra.mrb[0].mxu0 %v1703
        %v1874 = vpop.f32.mrb[0].mxu0
        %v1875 = vadd.f32 0.0, %v1874
        %v1876 = vpop.f32.mrb[0].mxu0
        %v1877 = vadd.f32 0.0, %v1876
        %v1878 = vpop.f32.mrb[0].mxu0
        %v1879 = vadd.f32 0.0, %v1878
        %v1880 = vpop.f32.mrb[0].mxu0
        %v1881 = vadd.f32 0.0, %v1880
        %1882 = vmatprep.mubr.bf16.mxu0 0
        %1883 = vmatmul.mubr.bf16.gmra.mrb[0].mxu0 %v1706
        %v1884 = vpop.f32.mrb[0].mxu0
        %v1885 = vadd.f32 0.0, %v1884
        %v1886 = vpop.f32.mrb[0].mxu0
        %v1887 = vadd.f32 0.0, %v1886
        %v1888 = vpop.f32.mrb[0].mxu0
        %v1889 = vadd.f32 0.0, %v1888
        %v1890 = vpop.f32.mrb[0].mxu0
        %v1891 = vadd.f32 0.0, %v1890
        %1892 = vmatprep.mubr.bf16.mxu0 0
        %1893 = vmatmul.mubr.bf16.gmra.mrb[0].mxu0 %v1709
        %v1894 = vpop.f32.mrb[0].mxu0
        %v1895 = vadd.f32 0.0, %v1894
        %v1896 = vpop.f32.mrb[0].mxu0
        %v1897 = vadd.f32 0.0, %v1896
        %v1898 = vpop.f32.mrb[0].mxu0
        %v1899 = vadd.f32 0.0, %v1898
        %v1900 = vpop.f32.mrb[0].mxu0
        %v1901 = vadd.f32 0.0, %v1900
        %1902 = vmatprep.mubr.bf16.mxu0 0
        %1903 = vmatmul.mubr.bf16.gmra.mrb[0].mxu0 %v1712
        %v1904 = vpop.f32.mrb[0].mxu0
        %v1905 = vadd.f32 0.0, %v1904
        %v1906 = vpop.f32.mrb[0].mxu0
        %v1907 = vadd.f32 0.0, %v1906
        %v1908 = vpop.f32.mrb[0].mxu0
        %v1909 = vadd.f32 0.0, %v1908
        %v1910 = vpop.f32.mrb[0].mxu0
        %v1911 = vadd.f32 0.0, %v1910
        %1912 = vmatprep.mubr.bf16.mxu0 0
        %1913 = vmatmul.mubr.bf16.gmra.mrb[0].mxu0 %v1715
        %v1914 = vpop.f32.mrb[0].mxu0
        %v1915 = vadd.f32 0.0, %v1914
        %v1916 = vpop.f32.mrb[0].mxu0
        %v1917 = vadd.f32 0.0, %v1916
        %v1918 = vpop.f32.mrb[0].mxu0
        %v1919 = vadd.f32 0.0, %v1918
        %v1920 = vpop.f32.mrb[0].mxu0
        %v1921 = vadd.f32 0.0, %v1920
        %1922 = vmatprep.mubr.bf16.mxu0 0
        %1923 = vmatmul.mubr.bf16.gmra.mrb[0].mxu0 %v1718
        %v1924 = vpop.f32.mrb[0].mxu0
        %v1925 = vadd.f32 0.0, %v1924
        %v1926 = vpop.f32.mrb[0].mxu0
        %v1927 = vadd.f32 0.0, %v1926
        %v1928 = vpop.f32.mrb[0].mxu0
        %v1929 = vadd.f32 0.0, %v1928
        %v1930 = vpop.f32.mrb[0].mxu0
        %v1931 = vadd.f32 0.0, %v1930
        %1932 = vmatprep.mubr.bf16.mxu0 0
        %1933 = vmatmul.mubr.bf16.gmra.mrb[0].mxu0 %v1721
        %v1934 = vpop.f32.mrb[0].mxu0
        %v1935 = vadd.f32 0.0, %v1934
        %v1936 = vpop.f32.mrb[0].mxu0
        %v1937 = vadd.f32 0.0, %v1936
        %v1938 = vpop.f32.mrb[0].mxu0
        %v1939 = vadd.f32 0.0, %v1938
        %v1940 = vpop.f32.mrb[0].mxu0
        %v1941 = vadd.f32 0.0, %v1940
        %1942 = vmatprep.mubr.bf16.mxu0 0
        %1943 = vmatmul.mubr.bf16.gmra.mrb[0].mxu0 %v1724
        %v1944 = vpop.f32.mrb[0].mxu0
        %v1945 = vadd.f32 0.0, %v1944
        %v1946 = vpop.f32.mrb[0].mxu0
        %v1947 = vadd.f32 0.0, %v1946
        %v1948 = vpop.f32.mrb[0].mxu0
        %v1949 = vadd.f32 0.0, %v1948
        %v1950 = vpop.f32.mrb[0].mxu0
        %v1951 = vadd.f32 0.0, %v1950
        %1952 = vmatprep.mubr.bf16.mxu0 0
        %1953 = vmatmul.mubr.bf16.gmra.mrb[0].mxu0 %v1727
        %v1954 = vpop.f32.mrb[0].mxu0
        %v1955 = vadd.f32 0.0, %v1954
        %v1956 = vpop.f32.mrb[0].mxu0
        %v1957 = vadd.f32 0.0, %v1956
        %v1958 = vpop.f32.mrb[0].mxu0
        %v1959 = vadd.f32 0.0, %v1958
        %v1960 = vpop.f32.mrb[0].mxu0
        %v1961 = vadd.f32 0.0, %v1960
        %1962 = vmatprep.mubr.bf16.mxu0 0
        %1963 = vmatmul.mubr.bf16.gmra.mrb[0].mxu0 %v1730
        %v1964 = vpop.f32.mrb[0].mxu0
        %v1965 = vadd.f32 0.0, %v1964
        %v1966 = vpop.f32.mrb[0].mxu0
        %v1967 = vadd.f32 0.0, %v1966
        %v1968 = vpop.f32.mrb[0].mxu0
        %v1969 = vadd.f32 0.0, %v1968
        %v1970 = vpop.f32.mrb[0].mxu0
        %v1971 = vadd.f32 0.0, %v1970
        %1972 = vdwg.mxu0
        %v1973 = vmax.f32 %v1815, %v1817
        %1974 = vmax.xlane.f32.xlu0 %v1973
        %v1975 = vpop.xlane.xlu0 %1974
        %v1976 = vmax.f32 %v1819, %v1821
        %1977 = vmax.xlane.f32.xlu0 %v1976
        %v1978 = vpop.xlane.xlu0 %1977
        %v1979 = vmax.f32 %v1825, %v1827
        %1980 = vmax.xlane.f32.xlu0 %v1979
        %v1981 = vpop.xlane.xlu0 %1980
        %v1982 = vmax.f32 %v1829, %v1831
        %1983 = vmax.xlane.f32.xlu0 %v1982
        %v1984 = vpop.xlane.xlu0 %1983
        %v1985 = vmax.f32 %v1835, %v1837
        %1986 = vmax.xlane.f32.xlu0 %v1985
        %v1987 = vpop.xlane.xlu0 %1986
        %v1988 = vmax.f32 %v1839, %v1841
        %1989 = vmax.xlane.f32.xlu0 %v1988
        %v1990 = vpop.xlane.xlu0 %1989
        %v1991 = vmax.f32 %v1845, %v1847
        %1992 = vmax.xlane.f32.xlu0 %v1991
        %v1993 = vpop.xlane.xlu0 %1992
        %v1994 = vmax.f32 %v1849, %v1851
        %1995 = vmax.xlane.f32.xlu0 %v1994
        %v1996 = vpop.xlane.xlu0 %1995
        %v1997 = vmax.f32 %v1855, %v1857
        %1998 = vmax.xlane.f32.xlu0 %v1997
        %v1999 = vpop.xlane.xlu0 %1998
        %v2000 = vmax.f32 %v1859, %v1861
        %2001 = vmax.xlane.f32.xlu0 %v2000
        %v2002 = vpop.xlane.xlu0 %2001
        %v2003 = vmax.f32 %v1865, %v1867
        %2004 = vmax.xlane.f32.xlu0 %v2003
        %v2005 = vpop.xlane.xlu0 %2004
        %v2006 = vmax.f32 %v1869, %v1871
        %2007 = vmax.xlane.f32.xlu0 %v2006
        %v2008 = vpop.xlane.xlu0 %2007
        %v2009 = vmax.f32 %v1875, %v1877
        %2010 = vmax.xlane.f32.xlu0 %v2009
        %v2011 = vpop.xlane.xlu0 %2010
        %v2012 = vmax.f32 %v1879, %v1881
        %2013 = vmax.xlane.f32.xlu0 %v2012
        %v2014 = vpop.xlane.xlu0 %2013
        %v2015 = vmax.f32 %v1885, %v1887
        %2016 = vmax.xlane.f32.xlu0 %v2015
        %v2017 = vpop.xlane.xlu0 %2016
        %v2018 = vmax.f32 %v1889, %v1891
        %2019 = vmax.xlane.f32.xlu0 %v2018
        %v2020 = vpop.xlane.xlu0 %2019
        %v2021 = vmax.f32 %v1895, %v1897
        %2022 = vmax.xlane.f32.xlu0 %v2021
        %v2023 = vpop.xlane.xlu0 %2022
        %v2024 = vmax.f32 %v1899, %v1901
        %2025 = vmax.xlane.f32.xlu0 %v2024
        %v2026 = vpop.xlane.xlu0 %2025
        %v2027 = vmax.f32 %v1905, %v1907
        %2028 = vmax.xlane.f32.xlu0 %v2027
        %v2029 = vpop.xlane.xlu0 %2028
        %v2030 = vmax.f32 %v1909, %v1911
        %2031 = vmax.xlane.f32.xlu0 %v2030
        %v2032 = vpop.xlane.xlu0 %2031
        %v2033 = vmax.f32 %v1915, %v1917
        %2034 = vmax.xlane.f32.xlu0 %v2033
        %v2035 = vpop.xlane.xlu0 %2034
        %v2036 = vmax.f32 %v1919, %v1921
        %2037 = vmax.xlane.f32.xlu0 %v2036
        %v2038 = vpop.xlane.xlu0 %2037
        %v2039 = vmax.f32 %v1925, %v1927
        %2040 = vmax.xlane.f32.xlu0 %v2039
        %v2041 = vpop.xlane.xlu0 %2040
        %v2042 = vmax.f32 %v1929, %v1931
        %2043 = vmax.xlane.f32.xlu0 %v2042
        %v2044 = vpop.xlane.xlu0 %2043
        %v2045 = vmax.f32 %v1935, %v1937
        %2046 = vmax.xlane.f32.xlu0 %v2045
        %v2047 = vpop.xlane.xlu0 %2046
        %v2048 = vmax.f32 %v1939, %v1941
        %2049 = vmax.xlane.f32.xlu0 %v2048
        %v2050 = vpop.xlane.xlu0 %2049
        %v2051 = vmax.f32 %v1945, %v1947
        %2052 = vmax.xlane.f32.xlu0 %v2051
        %v2053 = vpop.xlane.xlu0 %2052
        %v2054 = vmax.f32 %v1949, %v1951
        %2055 = vmax.xlane.f32.xlu0 %v2054
        %v2056 = vpop.xlane.xlu0 %2055
        %v2057 = vmax.f32 %v1955, %v1957
        %2058 = vmax.xlane.f32.xlu0 %v2057
        %v2059 = vpop.xlane.xlu0 %2058
        %v2060 = vmax.f32 %v1959, %v1961
        %2061 = vmax.xlane.f32.xlu0 %v2060
        %v2062 = vpop.xlane.xlu0 %2061
        %v2063 = vmax.f32 %v1965, %v1967
        %2064 = vmax.xlane.f32.xlu0 %v2063
        %v2065 = vpop.xlane.xlu0 %2064
        %v2066 = vmax.f32 %v1969, %v1971
        %2067 = vmax.xlane.f32.xlu0 %v2066
        %v2068 = vpop.xlane.xlu0 %2067
        %v2069 = vsub.f32 %v1815, %v1975
        %v2070 = vsub.f32 %v1817, %v1975
        %v2071 = vsub.f32 %v1819, %v1978
        %v2072 = vsub.f32 %v1821, %v1978
        %v2073 = vsub.f32 %v1825, %v1981
        %v2074 = vsub.f32 %v1827, %v1981
        %v2075 = vsub.f32 %v1829, %v1984
        %v2076 = vsub.f32 %v1831, %v1984
        %v2077 = vsub.f32 %v1835, %v1987
        %v2078 = vsub.f32 %v1837, %v1987
        %v2079 = vsub.f32 %v1839, %v1990
        %v2080 = vsub.f32 %v1841, %v1990
        %v2081 = vsub.f32 %v1845, %v1993
        %v2082 = vsub.f32 %v1847, %v1993
        %v2083 = vsub.f32 %v1849, %v1996
        %v2084 = vsub.f32 %v1851, %v1996
        %v2085 = vsub.f32 %v1855, %v1999
        %v2086 = vsub.f32 %v1857, %v1999
        %v2087 = vsub.f32 %v1859, %v2002
        %v2088 = vsub.f32 %v1861, %v2002
        %v2089 = vsub.f32 %v1865, %v2005
        %v2090 = vsub.f32 %v1867, %v2005
        %v2091 = vsub.f32 %v1869, %v2008
        %v2092 = vsub.f32 %v1871, %v2008
        %v2093 = vsub.f32 %v1875, %v2011
        %v2094 = vsub.f32 %v1877, %v2011
        %v2095 = vsub.f32 %v1879, %v2014
        %v2096 = vsub.f32 %v1881, %v2014
        %v2097 = vsub.f32 %v1885, %v2017
        %v2098 = vsub.f32 %v1887, %v2017
        %v2099 = vsub.f32 %v1889, %v2020
        %v2100 = vsub.f32 %v1891, %v2020
        %v2101 = vsub.f32 %v1895, %v2023
        %v2102 = vsub.f32 %v1897, %v2023
        %v2103 = vsub.f32 %v1899, %v2026
        %v2104 = vsub.f32 %v1901, %v2026
        %v2105 = vsub.f32 %v1905, %v2029
        %v2106 = vsub.f32 %v1907, %v2029
        %v2107 = vsub.f32 %v1909, %v2032
        %v2108 = vsub.f32 %v1911, %v2032
        %v2109 = vsub.f32 %v1915, %v2035
        %v2110 = vsub.f32 %v1917, %v2035
        %v2111 = vsub.f32 %v1919, %v2038
        %v2112 = vsub.f32 %v1921, %v2038
        %v2113 = vsub.f32 %v1925, %v2041
        %v2114 = vsub.f32 %v1927, %v2041
        %v2115 = vsub.f32 %v1929, %v2044
        %v2116 = vsub.f32 %v1931, %v2044
        %v2117 = vsub.f32 %v1935, %v2047
        %v2118 = vsub.f32 %v1937, %v2047
        %v2119 = vsub.f32 %v1939, %v2050
        %v2120 = vsub.f32 %v1941, %v2050
        %v2121 = vsub.f32 %v1945, %v2053
        %v2122 = vsub.f32 %v1947, %v2053
        %v2123 = vsub.f32 %v1949, %v2056
        %v2124 = vsub.f32 %v1951, %v2056
        %v2125 = vsub.f32 %v1955, %v2059
        %v2126 = vsub.f32 %v1957, %v2059
        %v2127 = vsub.f32 %v1959, %v2062
        %v2128 = vsub.f32 %v1961, %v2062
        %v2129 = vsub.f32 %v1965, %v2065
        %v2130 = vsub.f32 %v1967, %v2065
        %v2131 = vsub.f32 %v1969, %v2068
        %v2132 = vsub.f32 %v1971, %v2068
        %v2133 = vmul.f32 %v2069, 1.442695
        %v2134 = vpow.pop %v2133
        %v2135 = vmul.f32 %v2070, 1.442695
        %v2136 = vpow.pop %v2135
        %v2137 = vmul.f32 %v2071, 1.442695
        %v2138 = vpow.pop %v2137
        %v2139 = vmul.f32 %v2072, 1.442695
        %v2140 = vpow.pop %v2139
        %v2141 = vmul.f32 %v2073, 1.442695
        %v2142 = vpow.pop %v2141
        %v2143 = vmul.f32 %v2074, 1.442695
        %v2144 = vpow.pop %v2143
        %v2145 = vmul.f32 %v2075, 1.442695
        %v2146 = vpow.pop %v2145
        %v2147 = vmul.f32 %v2076, 1.442695
        %v2148 = vpow.pop %v2147
        %v2149 = vmul.f32 %v2077, 1.442695
        %v2150 = vpow.pop %v2149
        %v2151 = vmul.f32 %v2078, 1.442695
        %v2152 = vpow.pop %v2151
        %v2153 = vmul.f32 %v2079, 1.442695
        %v2154 = vpow.pop %v2153
        %v2155 = vmul.f32 %v2080, 1.442695
        %v2156 = vpow.pop %v2155
        %v2157 = vmul.f32 %v2081, 1.442695
        %v2158 = vpow.pop %v2157
        %v2159 = vmul.f32 %v2082, 1.442695
        %v2160 = vpow.pop %v2159
        %v2161 = vmul.f32 %v2083, 1.442695
        %v2162 = vpow.pop %v2161
        %v2163 = vmul.f32 %v2084, 1.442695
        %v2164 = vpow.pop %v2163
        %v2165 = vmul.f32 %v2085, 1.442695
        %v2166 = vpow.pop %v2165
        %v2167 = vmul.f32 %v2086, 1.442695
        %v2168 = vpow.pop %v2167
        %v2169 = vmul.f32 %v2087, 1.442695
        %v2170 = vpow.pop %v2169
        %v2171 = vmul.f32 %v2088, 1.442695
        %v2172 = vpow.pop %v2171
        %v2173 = vmul.f32 %v2089, 1.442695
        %v2174 = vpow.pop %v2173
        %v2175 = vmul.f32 %v2090, 1.442695
        %v2176 = vpow.pop %v2175
        %v2177 = vmul.f32 %v2091, 1.442695
        %v2178 = vpow.pop %v2177
        %v2179 = vmul.f32 %v2092, 1.442695
        %v2180 = vpow.pop %v2179
        %v2181 = vmul.f32 %v2093, 1.442695
        %v2182 = vpow.pop %v2181
        %v2183 = vmul.f32 %v2094, 1.442695
        %v2184 = vpow.pop %v2183
        %v2185 = vmul.f32 %v2095, 1.442695
        %v2186 = vpow.pop %v2185
        %v2187 = vmul.f32 %v2096, 1.442695
        %v2188 = vpow.pop %v2187
        %v2189 = vmul.f32 %v2097, 1.442695
        %v2190 = vpow.pop %v2189
        %v2191 = vmul.f32 %v2098, 1.442695
        %v2192 = vpow.pop %v2191
        %v2193 = vmul.f32 %v2099, 1.442695
        %v2194 = vpow.pop %v2193
        %v2195 = vmul.f32 %v2100, 1.442695
        %v2196 = vpow.pop %v2195
        %v2197 = vmul.f32 %v2101, 1.442695
        %v2198 = vpow.pop %v2197
        %v2199 = vmul.f32 %v2102, 1.442695
        %v2200 = vpow.pop %v2199
        %v2201 = vmul.f32 %v2103, 1.442695
        %v2202 = vpow.pop %v2201
        %v2203 = vmul.f32 %v2104, 1.442695
        %v2204 = vpow.pop %v2203
        %v2205 = vmul.f32 %v2105, 1.442695
        %v2206 = vpow.pop %v2205
        %v2207 = vmul.f32 %v2106, 1.442695
        %v2208 = vpow.pop %v2207
        %v2209 = vmul.f32 %v2107, 1.442695
        %v2210 = vpow.pop %v2209
        %v2211 = vmul.f32 %v2108, 1.442695
        %v2212 = vpow.pop %v2211
        %v2213 = vmul.f32 %v2109, 1.442695
        %v2214 = vpow.pop %v2213
        %v2215 = vmul.f32 %v2110, 1.442695
        %v2216 = vpow.pop %v2215
        %v2217 = vmul.f32 %v2111, 1.442695
        %v2218 = vpow.pop %v2217
        %v2219 = vmul.f32 %v2112, 1.442695
        %v2220 = vpow.pop %v2219
        %v2221 = vmul.f32 %v2113, 1.442695
        %v2222 = vpow.pop %v2221
        %v2223 = vmul.f32 %v2114, 1.442695
        %v2224 = vpow.pop %v2223
        %v2225 = vmul.f32 %v2115, 1.442695
        %v2226 = vpow.pop %v2225
        %v2227 = vmul.f32 %v2116, 1.442695
        %v2228 = vpow.pop %v2227
        %v2229 = vmul.f32 %v2117, 1.442695
        %v2230 = vpow.pop %v2229
        %v2231 = vmul.f32 %v2118, 1.442695
        %v2232 = vpow.pop %v2231
        %v2233 = vmul.f32 %v2119, 1.442695
        %v2234 = vpow.pop %v2233
        %v2235 = vmul.f32 %v2120, 1.442695
        %v2236 = vpow.pop %v2235
        %v2237 = vmul.f32 %v2121, 1.442695
        %v2238 = vpow.pop %v2237
        %v2239 = vmul.f32 %v2122, 1.442695
        %v2240 = vpow.pop %v2239
        %v2241 = vmul.f32 %v2123, 1.442695
        %v2242 = vpow.pop %v2241
        %v2243 = vmul.f32 %v2124, 1.442695
        %v2244 = vpow.pop %v2243
        %v2245 = vmul.f32 %v2125, 1.442695
        %v2246 = vpow.pop %v2245
        %v2247 = vmul.f32 %v2126, 1.442695
        %v2248 = vpow.pop %v2247
        %v2249 = vmul.f32 %v2127, 1.442695
        %v2250 = vpow.pop %v2249
        %v2251 = vmul.f32 %v2128, 1.442695
        %v2252 = vpow.pop %v2251
        %v2253 = vmul.f32 %v2129, 1.442695
        %v2254 = vpow.pop %v2253
        %v2255 = vmul.f32 %v2130, 1.442695
        %v2256 = vpow.pop %v2255
        %v2257 = vmul.f32 %v2131, 1.442695
        %v2258 = vpow.pop %v2257
        %v2259 = vmul.f32 %v2132, 1.442695
        %v2260 = vpow.pop %v2259
        %v2261 = vadd.f32 %v2134, %v2136
        %2262 = vadd.xlane.f32.xlu0 %v2261
        %v2263 = vpop.xlane.xlu0 %2262
        %v2264 = vadd.f32 %v2138, %v2140
        %2265 = vadd.xlane.f32.xlu0 %v2264
        %v2266 = vpop.xlane.xlu0 %2265
        %v2267 = vadd.f32 %v2142, %v2144
        %2268 = vadd.xlane.f32.xlu0 %v2267
        %v2269 = vpop.xlane.xlu0 %2268
        %v2270 = vadd.f32 %v2146, %v2148
        %2271 = vadd.xlane.f32.xlu0 %v2270
        %v2272 = vpop.xlane.xlu0 %2271
        %v2273 = vadd.f32 %v2150, %v2152
        %2274 = vadd.xlane.f32.xlu0 %v2273
        %v2275 = vpop.xlane.xlu0 %2274
        %v2276 = vadd.f32 %v2154, %v2156
        %2277 = vadd.xlane.f32.xlu0 %v2276
        %v2278 = vpop.xlane.xlu0 %2277
        %v2279 = vadd.f32 %v2158, %v2160
        %2280 = vadd.xlane.f32.xlu0 %v2279
        %v2281 = vpop.xlane.xlu0 %2280
        %v2282 = vadd.f32 %v2162, %v2164
        %2283 = vadd.xlane.f32.xlu0 %v2282
        %v2284 = vpop.xlane.xlu0 %2283
        %v2285 = vadd.f32 %v2166, %v2168
        %2286 = vadd.xlane.f32.xlu0 %v2285
        %v2287 = vpop.xlane.xlu0 %2286
        %v2288 = vadd.f32 %v2170, %v2172
        %2289 = vadd.xlane.f32.xlu0 %v2288
        %v2290 = vpop.xlane.xlu0 %2289
        %v2291 = vadd.f32 %v2174, %v2176
        %2292 = vadd.xlane.f32.xlu0 %v2291
        %v2293 = vpop.xlane.xlu0 %2292
        %v2294 = vadd.f32 %v2178, %v2180
        %2295 = vadd.xlane.f32.xlu0 %v2294
        %v2296 = vpop.xlane.xlu0 %2295
        %v2297 = vadd.f32 %v2182, %v2184
        %2298 = vadd.xlane.f32.xlu0 %v2297
        %v2299 = vpop.xlane.xlu0 %2298
        %v2300 = vadd.f32 %v2186, %v2188
        %2301 = vadd.xlane.f32.xlu0 %v2300
        %v2302 = vpop.xlane.xlu0 %2301
        %v2303 = vadd.f32 %v2190, %v2192
        %2304 = vadd.xlane.f32.xlu0 %v2303
        %v2305 = vpop.xlane.xlu0 %2304
        %v2306 = vadd.f32 %v2194, %v2196
        %2307 = vadd.xlane.f32.xlu0 %v2306
        %v2308 = vpop.xlane.xlu0 %2307
        %v2309 = vadd.f32 %v2198, %v2200
        %2310 = vadd.xlane.f32.xlu0 %v2309
        %v2311 = vpop.xlane.xlu0 %2310
        %v2312 = vadd.f32 %v2202, %v2204
        %2313 = vadd.xlane.f32.xlu0 %v2312
        %v2314 = vpop.xlane.xlu0 %2313
        %v2315 = vadd.f32 %v2206, %v2208
        %2316 = vadd.xlane.f32.xlu0 %v2315
        %v2317 = vpop.xlane.xlu0 %2316
        %v2318 = vadd.f32 %v2210, %v2212
        %2319 = vadd.xlane.f32.xlu0 %v2318
        %v2320 = vpop.xlane.xlu0 %2319
        %v2321 = vadd.f32 %v2214, %v2216
        %2322 = vadd.xlane.f32.xlu0 %v2321
        %v2323 = vpop.xlane.xlu0 %2322
        %v2324 = vadd.f32 %v2218, %v2220
        %2325 = vadd.xlane.f32.xlu0 %v2324
        %v2326 = vpop.xlane.xlu0 %2325
        %v2327 = vadd.f32 %v2222, %v2224
        %2328 = vadd.xlane.f32.xlu0 %v2327
        %v2329 = vpop.xlane.xlu0 %2328
        %v2330 = vadd.f32 %v2226, %v2228
        %2331 = vadd.xlane.f32.xlu0 %v2330
        %v2332 = vpop.xlane.xlu0 %2331
        %v2333 = vadd.f32 %v2230, %v2232
        %2334 = vadd.xlane.f32.xlu0 %v2333
        %v2335 = vpop.xlane.xlu0 %2334
        %v2336 = vadd.f32 %v2234, %v2236
        %2337 = vadd.xlane.f32.xlu0 %v2336
        %v2338 = vpop.xlane.xlu0 %2337
        %v2339 = vadd.f32 %v2238, %v2240
        %2340 = vadd.xlane.f32.xlu0 %v2339
        %v2341 = vpop.xlane.xlu0 %2340
        %v2342 = vadd.f32 %v2242, %v2244
        %2343 = vadd.xlane.f32.xlu0 %v2342
        %v2344 = vpop.xlane.xlu0 %2343
        %v2345 = vadd.f32 %v2246, %v2248
        %2346 = vadd.xlane.f32.xlu0 %v2345
        %v2347 = vpop.xlane.xlu0 %2346
        %v2348 = vadd.f32 %v2250, %v2252
        %2349 = vadd.xlane.f32.xlu0 %v2348
        %v2350 = vpop.xlane.xlu0 %2349
        %v2351 = vadd.f32 %v2254, %v2256
        %2352 = vadd.xlane.f32.xlu0 %v2351
        %v2353 = vpop.xlane.xlu0 %2352
        %v2354 = vadd.f32 %v2258, %v2260
        %2355 = vadd.xlane.f32.xlu0 %v2354
        %v2356 = vpop.xlane.xlu0 %2355
        %v2357 = vrcp.pop %v2263
        %v2358 = vrcp.pop %v2266
        %v2359 = vrcp.pop %v2269
        %v2360 = vrcp.pop %v2272
        %v2361 = vrcp.pop %v2275
        %v2362 = vrcp.pop %v2278
        %v2363 = vrcp.pop %v2281
        %v2364 = vrcp.pop %v2284
        %v2365 = vrcp.pop %v2287
        %v2366 = vrcp.pop %v2290
        %v2367 = vrcp.pop %v2293
        %v2368 = vrcp.pop %v2296
        %v2369 = vrcp.pop %v2299
        %v2370 = vrcp.pop %v2302
        %v2371 = vrcp.pop %v2305
        %v2372 = vrcp.pop %v2308
        %v2373 = vrcp.pop %v2311
        %v2374 = vrcp.pop %v2314
        %v2375 = vrcp.pop %v2317
        %v2376 = vrcp.pop %v2320
        %v2377 = vrcp.pop %v2323
        %v2378 = vrcp.pop %v2326
        %v2379 = vrcp.pop %v2329
        %v2380 = vrcp.pop %v2332
        %v2381 = vrcp.pop %v2335
        %v2382 = vrcp.pop %v2338
        %v2383 = vrcp.pop %v2341
        %v2384 = vrcp.pop %v2344
        %v2385 = vrcp.pop %v2347
        %v2386 = vrcp.pop %v2350
        %v2387 = vrcp.pop %v2353
        %v2388 = vrcp.pop %v2356
        %v2389 = vmul.f32 %v2134, %v2357
        %v2390 = vmul.f32 %v2136, %v2357
        %v2391 = vmul.f32 %v2138, %v2358
        %v2392 = vmul.f32 %v2140, %v2358
        %v2393 = vmul.f32 %v2142, %v2359
        %v2394 = vmul.f32 %v2144, %v2359
        %v2395 = vmul.f32 %v2146, %v2360
        %v2396 = vmul.f32 %v2148, %v2360
        %v2397 = vmul.f32 %v2150, %v2361
        %v2398 = vmul.f32 %v2152, %v2361
        %v2399 = vmul.f32 %v2154, %v2362
        %v2400 = vmul.f32 %v2156, %v2362
        %v2401 = vmul.f32 %v2158, %v2363
        %v2402 = vmul.f32 %v2160, %v2363
        %v2403 = vmul.f32 %v2162, %v2364
        %v2404 = vmul.f32 %v2164, %v2364
        %v2405 = vmul.f32 %v2166, %v2365
        %v2406 = vmul.f32 %v2168, %v2365
        %v2407 = vmul.f32 %v2170, %v2366
        %v2408 = vmul.f32 %v2172, %v2366
        %v2409 = vmul.f32 %v2174, %v2367
        %v2410 = vmul.f32 %v2176, %v2367
        %v2411 = vmul.f32 %v2178, %v2368
        %v2412 = vmul.f32 %v2180, %v2368
        %v2413 = vmul.f32 %v2182, %v2369
        %v2414 = vmul.f32 %v2184, %v2369
        %v2415 = vmul.f32 %v2186, %v2370
        %v2416 = vmul.f32 %v2188, %v2370
        %v2417 = vmul.f32 %v2190, %v2371
        %v2418 = vmul.f32 %v2192, %v2371
        %v2419 = vmul.f32 %v2194, %v2372
        %v2420 = vmul.f32 %v2196, %v2372
        %v2421 = vmul.f32 %v2198, %v2373
        %v2422 = vmul.f32 %v2200, %v2373
        %v2423 = vmul.f32 %v2202, %v2374
        %v2424 = vmul.f32 %v2204, %v2374
        %v2425 = vmul.f32 %v2206, %v2375
        %v2426 = vmul.f32 %v2208, %v2375
        %v2427 = vmul.f32 %v2210, %v2376
        %v2428 = vmul.f32 %v2212, %v2376
        %v2429 = vmul.f32 %v2214, %v2377
        %v2430 = vmul.f32 %v2216, %v2377
        %v2431 = vmul.f32 %v2218, %v2378
        %v2432 = vmul.f32 %v2220, %v2378
        %v2433 = vmul.f32 %v2222, %v2379
        %v2434 = vmul.f32 %v2224, %v2379
        %v2435 = vmul.f32 %v2226, %v2380
        %v2436 = vmul.f32 %v2228, %v2380
        %v2437 = vmul.f32 %v2230, %v2381
        %v2438 = vmul.f32 %v2232, %v2381
        %v2439 = vmul.f32 %v2234, %v2382
        %v2440 = vmul.f32 %v2236, %v2382
        %v2441 = vmul.f32 %v2238, %v2383
        %v2442 = vmul.f32 %v2240, %v2383
        %v2443 = vmul.f32 %v2242, %v2384
        %v2444 = vmul.f32 %v2244, %v2384
        %v2445 = vmul.f32 %v2246, %v2385
        %v2446 = vmul.f32 %v2248, %v2385
        %v2447 = vmul.f32 %v2250, %v2386
        %v2448 = vmul.f32 %v2252, %v2386
        %v2449 = vmul.f32 %v2254, %v2387
        %v2450 = vmul.f32 %v2256, %v2387
        %v2451 = vmul.f32 %v2258, %v2388
        %v2452 = vmul.f32 %v2260, %v2388
        %v2453 = vpack.c.bf16 %v2391, %v2389
        %v2454 = vpack.c.bf16 %v2392, %v2390
        %v2455 = vpack.c.bf16 %v2395, %v2393
        %v2456 = vpack.c.bf16 %v2396, %v2394
        %v2457 = vpack.c.bf16 %v2399, %v2397
        %v2458 = vpack.c.bf16 %v2400, %v2398
        %v2459 = vpack.c.bf16 %v2403, %v2401
        %v2460 = vpack.c.bf16 %v2404, %v2402
        %v2461 = vpack.c.bf16 %v2407, %v2405
        %v2462 = vpack.c.bf16 %v2408, %v2406
        %v2463 = vpack.c.bf16 %v2411, %v2409
        %v2464 = vpack.c.bf16 %v2412, %v2410
        %v2465 = vpack.c.bf16 %v2415, %v2413
        %v2466 = vpack.c.bf16 %v2416, %v2414
        %v2467 = vpack.c.bf16 %v2419, %v2417
        %v2468 = vpack.c.bf16 %v2420, %v2418
        %v2469 = vpack.c.bf16 %v2423, %v2421
        %v2470 = vpack.c.bf16 %v2424, %v2422
        %v2471 = vpack.c.bf16 %v2427, %v2425
        %v2472 = vpack.c.bf16 %v2428, %v2426
        %v2473 = vpack.c.bf16 %v2431, %v2429
        %v2474 = vpack.c.bf16 %v2432, %v2430
        %v2475 = vpack.c.bf16 %v2435, %v2433
        %v2476 = vpack.c.bf16 %v2436, %v2434
        %v2477 = vpack.c.bf16 %v2439, %v2437
        %v2478 = vpack.c.bf16 %v2440, %v2438
        %v2479 = vpack.c.bf16 %v2443, %v2441
        %v2480 = vpack.c.bf16 %v2444, %v2442
        %v2481 = vpack.c.bf16 %v2447, %v2445
        %v2482 = vpack.c.bf16 %v2448, %v2446
        %v2483 = vpack.c.bf16 %v2451, %v2449
        %v2484 = vpack.c.bf16 %v2452, %v2450
        %s2485 = smul.u32 %s1620, 4
        %s2486 = smul.addr %s2485, 4
        %s2487 = scalar_lea.vmem %s9, %s2486
        %v2488 = vld [vmem:[%s2487] sm:$0xf]
        %v2489 = vld [vmem:[%s2487 + $0x4] sm:$0xf]
        %v2490 = vld [vmem:[%s2487 + $0x8] sm:$0xf]
        %v2491 = vld [vmem:[%s2487 + $0xc] sm:$0xf]
        %s2492 = scalar_lea.vmem %s10, %s1620
        %v2493 = vld [vmem:[%s2492] sm:$0x1]
        %v2495 = vlaneseq
        %v2496 = vshrl.u32 %v2495, 7
        %v2497 = vsub.s32 0, %v2496
        %v2498 = vrot.slane %v2493, %v2497
        %v2504 = vunpack.c.l.b16 %v2488
        %v2505 = vunpack.c.l.b16 %v2489
        %v2506 = vunpack.c.l.b16 %v2490
        %v2507 = vunpack.c.l.b16 %v2491
        %v2508 = vpack.c.b16 %v2505, %v2504
        %v2509 = vpack.c.b16 %v2507, %v2506
        %2512 = vmatprep.subr.bf16.mxu0 0
        %2513 = vmatpush1.bf16.msra.mxu0 %v2508
        %2514 = vmatprep.subr.bf16.mxu0 0
        %2515 = vmatpush1.bf16.msra.mxu0 %v2509
        %2516 = vmatprep.subr.bf16.mxu0 0
        %2517 = vmatpush1.bf16.msra.mxu0 0
        %2518 = vmatprep.subr.bf16.mxu0 0
        %2519 = vmatpush1.bf16.msra.mxu0 0
        %2520 = vmatprep.subr.bf16.mxu0 0
        %2521 = vmatpush1.bf16.msra.mxu0 0
        %2522 = vmatprep.subr.bf16.mxu0 0
        %2523 = vmatpush1.bf16.msra.mxu0 0
        %2524 = vmatprep.subr.bf16.mxu0 0
        %2525 = vmatpush1.bf16.msra.mxu0 0
        %2526 = vmatprep.subr.bf16.mxu0 0
        %2527 = vmatpush1.bf16.msra.mxu0 0
        %2528 = vmatprep.subr.bf16.mxu0 0
        %2529 = vmatpush1.bf16.msra.mxu0 0
        %2530 = vmatprep.subr.bf16.mxu0 0
        %2531 = vmatpush1.bf16.msra.mxu0 0
        %2532 = vmatprep.subr.bf16.mxu0 0
        %2533 = vmatpush1.bf16.msra.mxu0 0
        %2534 = vmatprep.subr.bf16.mxu0 0
        %2535 = vmatpush1.bf16.msra.mxu0 0
        %2536 = vmatprep.subr.bf16.mxu0 0
        %2537 = vmatpush1.bf16.msra.mxu0 0
        %2538 = vmatprep.subr.bf16.mxu0 0
        %2539 = vmatpush1.bf16.msra.mxu0 0
        %2540 = vmatprep.subr.bf16.mxu0 0
        %2541 = vmatpush1.bf16.msra.mxu0 0
        %2542 = vmatprep.subr.bf16.mxu0 0
        %2543 = vmatpush1.bf16.msra.mxu0 0
        %2544 = vmatprep.mubr.bf16.mxu0 0
        %2545 = vmatmul.mubr.bf16.gmra.mrb[0].mxu0 %v1195
        %v2546 = vpop.f32.mrb[0].mxu0
        %v2547 = vadd.f32 %v2498, %v2546
        %v2548 = vpop.f32.mrb[0].mxu0
        %v2549 = vpop.f32.mrb[0].mxu0
        %v2550 = vadd.f32 %v2498, %v2549
        %v2551 = vpop.f32.mrb[0].mxu0
        %2552 = vmatprep.mubr.bf16.mxu0 0
        %2553 = vmatmul.mubr.bf16.gmra.mrb[0].mxu0 %v1198
        %v2554 = vpop.f32.mrb[0].mxu0
        %v2555 = vadd.f32 %v2498, %v2554
        %v2556 = vpop.f32.mrb[0].mxu0
        %v2557 = vpop.f32.mrb[0].mxu0
        %v2558 = vadd.f32 %v2498, %v2557
        %v2559 = vpop.f32.mrb[0].mxu0
        %2560 = vmatprep.mubr.bf16.mxu0 0
        %2561 = vmatmul.mubr.bf16.gmra.mrb[0].mxu0 %v1201
        %v2562 = vpop.f32.mrb[0].mxu0
        %v2563 = vadd.f32 %v2498, %v2562
        %v2564 = vpop.f32.mrb[0].mxu0
        %v2565 = vpop.f32.mrb[0].mxu0
        %v2566 = vadd.f32 %v2498, %v2565
        %v2567 = vpop.f32.mrb[0].mxu0
        %2568 = vmatprep.mubr.bf16.mxu0 0
        %2569 = vmatmul.mubr.bf16.gmra.mrb[0].mxu0 %v1204
        %v2570 = vpop.f32.mrb[0].mxu0
        %v2571 = vadd.f32 %v2498, %v2570
        %v2572 = vpop.f32.mrb[0].mxu0
        %v2573 = vpop.f32.mrb[0].mxu0
        %v2574 = vadd.f32 %v2498, %v2573
        %v2575 = vpop.f32.mrb[0].mxu0
        %2576 = vmatprep.mubr.bf16.mxu0 0
        %2577 = vmatmul.mubr.bf16.gmra.mrb[0].mxu0 %v1207
        %v2578 = vpop.f32.mrb[0].mxu0
        %v2579 = vadd.f32 %v2498, %v2578
        %v2580 = vpop.f32.mrb[0].mxu0
        %v2581 = vpop.f32.mrb[0].mxu0
        %v2582 = vadd.f32 %v2498, %v2581
        %v2583 = vpop.f32.mrb[0].mxu0
        %2584 = vmatprep.mubr.bf16.mxu0 0
        %2585 = vmatmul.mubr.bf16.gmra.mrb[0].mxu0 %v1210
        %v2586 = vpop.f32.mrb[0].mxu0
        %v2587 = vadd.f32 %v2498, %v2586
        %v2588 = vpop.f32.mrb[0].mxu0
        %v2589 = vpop.f32.mrb[0].mxu0
        %v2590 = vadd.f32 %v2498, %v2589
        %v2591 = vpop.f32.mrb[0].mxu0
        %2592 = vmatprep.mubr.bf16.mxu0 0
        %2593 = vmatmul.mubr.bf16.gmra.mrb[0].mxu0 %v1213
        %v2594 = vpop.f32.mrb[0].mxu0
        %v2595 = vadd.f32 %v2498, %v2594
        %v2596 = vpop.f32.mrb[0].mxu0
        %v2597 = vpop.f32.mrb[0].mxu0
        %v2598 = vadd.f32 %v2498, %v2597
        %v2599 = vpop.f32.mrb[0].mxu0
        %2600 = vmatprep.mubr.bf16.mxu0 0
        %2601 = vmatmul.mubr.bf16.gmra.mrb[0].mxu0 %v1216
        %v2602 = vpop.f32.mrb[0].mxu0
        %v2603 = vadd.f32 %v2498, %v2602
        %v2604 = vpop.f32.mrb[0].mxu0
        %v2605 = vpop.f32.mrb[0].mxu0
        %v2606 = vadd.f32 %v2498, %v2605
        %v2607 = vpop.f32.mrb[0].mxu0
        %2608 = vmatprep.mubr.bf16.mxu0 0
        %2609 = vmatmul.mubr.bf16.gmra.mrb[0].mxu0 %v1219
        %v2610 = vpop.f32.mrb[0].mxu0
        %v2611 = vadd.f32 %v2498, %v2610
        %v2612 = vpop.f32.mrb[0].mxu0
        %v2613 = vpop.f32.mrb[0].mxu0
        %v2614 = vadd.f32 %v2498, %v2613
        %v2615 = vpop.f32.mrb[0].mxu0
        %2616 = vmatprep.mubr.bf16.mxu0 0
        %2617 = vmatmul.mubr.bf16.gmra.mrb[0].mxu0 %v1222
        %v2618 = vpop.f32.mrb[0].mxu0
        %v2619 = vadd.f32 %v2498, %v2618
        %v2620 = vpop.f32.mrb[0].mxu0
        %v2621 = vpop.f32.mrb[0].mxu0
        %v2622 = vadd.f32 %v2498, %v2621
        %v2623 = vpop.f32.mrb[0].mxu0
        %2624 = vmatprep.mubr.bf16.mxu0 0
        %2625 = vmatmul.mubr.bf16.gmra.mrb[0].mxu0 %v1225
        %v2626 = vpop.f32.mrb[0].mxu0
        %v2627 = vadd.f32 %v2498, %v2626
        %v2628 = vpop.f32.mrb[0].mxu0
        %v2629 = vpop.f32.mrb[0].mxu0
        %v2630 = vadd.f32 %v2498, %v2629
        %v2631 = vpop.f32.mrb[0].mxu0
        %2632 = vmatprep.mubr.bf16.mxu0 0
        %2633 = vmatmul.mubr.bf16.gmra.mrb[0].mxu0 %v1228
        %v2634 = vpop.f32.mrb[0].mxu0
        %v2635 = vadd.f32 %v2498, %v2634
        %v2636 = vpop.f32.mrb[0].mxu0
        %v2637 = vpop.f32.mrb[0].mxu0
        %v2638 = vadd.f32 %v2498, %v2637
        %v2639 = vpop.f32.mrb[0].mxu0
        %2640 = vmatprep.mubr.bf16.mxu0 0
        %2641 = vmatmul.mubr.bf16.gmra.mrb[0].mxu0 %v1231
        %v2642 = vpop.f32.mrb[0].mxu0
        %v2643 = vadd.f32 %v2498, %v2642
        %v2644 = vpop.f32.mrb[0].mxu0
        %v2645 = vpop.f32.mrb[0].mxu0
        %v2646 = vadd.f32 %v2498, %v2645
        %v2647 = vpop.f32.mrb[0].mxu0
        %2648 = vmatprep.mubr.bf16.mxu0 0
        %2649 = vmatmul.mubr.bf16.gmra.mrb[0].mxu0 %v1234
        %v2650 = vpop.f32.mrb[0].mxu0
        %v2651 = vadd.f32 %v2498, %v2650
        %v2652 = vpop.f32.mrb[0].mxu0
        %v2653 = vpop.f32.mrb[0].mxu0
        %v2654 = vadd.f32 %v2498, %v2653
        %v2655 = vpop.f32.mrb[0].mxu0
        %2656 = vmatprep.mubr.bf16.mxu0 0
        %2657 = vmatmul.mubr.bf16.gmra.mrb[0].mxu0 %v1237
        %v2658 = vpop.f32.mrb[0].mxu0
        %v2659 = vadd.f32 %v2498, %v2658
        %v2660 = vpop.f32.mrb[0].mxu0
        %v2661 = vpop.f32.mrb[0].mxu0
        %v2662 = vadd.f32 %v2498, %v2661
        %v2663 = vpop.f32.mrb[0].mxu0
        %2664 = vmatprep.mubr.bf16.mxu0 0
        %2665 = vmatmul.mubr.bf16.gmra.mrb[0].mxu0 %v1240
        %v2666 = vpop.f32.mrb[0].mxu0
        %v2667 = vadd.f32 %v2498, %v2666
        %v2668 = vpop.f32.mrb[0].mxu0
        %v2669 = vpop.f32.mrb[0].mxu0
        %v2670 = vadd.f32 %v2498, %v2669
        %v2671 = vpop.f32.mrb[0].mxu0
        %2672 = vdwg.mxu0
        %v2673 = vpack.c.bf16 %v2550, %v2547
        %v2674 = vpack.c.bf16 %v2558, %v2555
        %v2675 = vpack.c.bf16 %v2566, %v2563
        %v2676 = vpack.c.bf16 %v2574, %v2571
        %v2677 = vpack.c.bf16 %v2582, %v2579
        %v2678 = vpack.c.bf16 %v2590, %v2587
        %v2679 = vpack.c.bf16 %v2598, %v2595
        %v2680 = vpack.c.bf16 %v2606, %v2603
        %v2681 = vpack.c.bf16 %v2614, %v2611
        %v2682 = vpack.c.bf16 %v2622, %v2619
        %v2683 = vpack.c.bf16 %v2630, %v2627
        %v2684 = vpack.c.bf16 %v2638, %v2635
        %v2685 = vpack.c.bf16 %v2646, %v2643
        %v2686 = vpack.c.bf16 %v2654, %v2651
        %v2687 = vpack.c.bf16 %v2662, %v2659
        %v2688 = vpack.c.bf16 %v2670, %v2667
        %2689 = vmatprep.subr.bf16.mxu0 0
        %2690 = vmatpush1.bf16.msra.mxu0 %v2673
        %2691 = vmatprep.subr.bf16.mxu0 0
        %2692 = vmatpush1.bf16.msra.mxu0 %v2674
        %2693 = vmatprep.subr.bf16.mxu0 0
        %2694 = vmatpush1.bf16.msra.mxu0 %v2675
        %2695 = vmatprep.subr.bf16.mxu0 0
        %2696 = vmatpush1.bf16.msra.mxu0 %v2676
        %2697 = vmatprep.subr.bf16.mxu0 0
        %2698 = vmatpush1.bf16.msra.mxu0 %v2677
        %2699 = vmatprep.subr.bf16.mxu0 0
        %2700 = vmatpush1.bf16.msra.mxu0 %v2678
        %2701 = vmatprep.subr.bf16.mxu0 0
        %2702 = vmatpush1.bf16.msra.mxu0 %v2679
        %2703 = vmatprep.subr.bf16.mxu0 0
        %2704 = vmatpush1.bf16.msra.mxu0 %v2680
        %2705 = vmatprep.subr.bf16.mxu0 0
        %2706 = vmatpush1.bf16.msra.mxu0 %v2681
        %2707 = vmatprep.subr.bf16.mxu0 0
        %2708 = vmatpush1.bf16.msra.mxu0 %v2682
        %2709 = vmatprep.subr.bf16.mxu0 0
        %2710 = vmatpush1.bf16.msra.mxu0 %v2683
        %2711 = vmatprep.subr.bf16.mxu0 0
        %2712 = vmatpush1.bf16.msra.mxu0 %v2684
        %2713 = vmatprep.subr.bf16.mxu0 0
        %2714 = vmatpush1.bf16.msra.mxu0 %v2685
        %2715 = vmatprep.subr.bf16.mxu0 0
        %2716 = vmatpush1.bf16.msra.mxu0 %v2686
        %2717 = vmatprep.subr.bf16.mxu0 0
        %2718 = vmatpush1.bf16.msra.mxu0 %v2687
        %2719 = vmatprep.subr.bf16.mxu0 0
        %2720 = vmatpush1.bf16.msra.mxu0 %v2688
        %2721 = vmatprep.mubr.bf16.mxu0 %v2454
        %2722 = vmatmul.mubr.bf16.gmra.mrb[0].mxu0 %v2453
        %v2723 = vpop.f32.mrb[0].mxu0
        %v2724 = vadd.f32 0.0, %v2723
        %v2725 = vpop.f32.mrb[0].mxu0
        %v2726 = vpop.f32.mrb[0].mxu0
        %v2727 = vadd.f32 0.0, %v2726
        %v2728 = vpop.f32.mrb[0].mxu0
        %2729 = vmatprep.mubr.bf16.mxu0 %v2456
        %2730 = vmatmul.mubr.bf16.gmra.mrb[0].mxu0 %v2455
        %v2731 = vpop.f32.mrb[0].mxu0
        %v2732 = vadd.f32 0.0, %v2731
        %v2733 = vpop.f32.mrb[0].mxu0
        %v2734 = vpop.f32.mrb[0].mxu0
        %v2735 = vadd.f32 0.0, %v2734
        %v2736 = vpop.f32.mrb[0].mxu0
        %2737 = vmatprep.mubr.bf16.mxu0 %v2458
        %2738 = vmatmul.mubr.bf16.gmra.mrb[0].mxu0 %v2457
        %v2739 = vpop.f32.mrb[0].mxu0
        %v2740 = vadd.f32 0.0, %v2739
        %v2741 = vpop.f32.mrb[0].mxu0
        %v2742 = vpop.f32.mrb[0].mxu0
        %v2743 = vadd.f32 0.0, %v2742
        %v2744 = vpop.f32.mrb[0].mxu0
        %2745 = vmatprep.mubr.bf16.mxu0 %v2460
        %2746 = vmatmul.mubr.bf16.gmra.mrb[0].mxu0 %v2459
        %v2747 = vpop.f32.mrb[0].mxu0
        %v2748 = vadd.f32 0.0, %v2747
        %v2749 = vpop.f32.mrb[0].mxu0
        %v2750 = vpop.f32.mrb[0].mxu0
        %v2751 = vadd.f32 0.0, %v2750
        %v2752 = vpop.f32.mrb[0].mxu0
        %2753 = vmatprep.mubr.bf16.mxu0 %v2462
        %2754 = vmatmul.mubr.bf16.gmra.mrb[0].mxu0 %v2461
        %v2755 = vpop.f32.mrb[0].mxu0
        %v2756 = vadd.f32 0.0, %v2755
        %v2757 = vpop.f32.mrb[0].mxu0
        %v2758 = vpop.f32.mrb[0].mxu0
        %v2759 = vadd.f32 0.0, %v2758
        %v2760 = vpop.f32.mrb[0].mxu0
        %2761 = vmatprep.mubr.bf16.mxu0 %v2464
        %2762 = vmatmul.mubr.bf16.gmra.mrb[0].mxu0 %v2463
        %v2763 = vpop.f32.mrb[0].mxu0
        %v2764 = vadd.f32 0.0, %v2763
        %v2765 = vpop.f32.mrb[0].mxu0
        %v2766 = vpop.f32.mrb[0].mxu0
        %v2767 = vadd.f32 0.0, %v2766
        %v2768 = vpop.f32.mrb[0].mxu0
        %2769 = vmatprep.mubr.bf16.mxu0 %v2466
        %2770 = vmatmul.mubr.bf16.gmra.mrb[0].mxu0 %v2465
        %v2771 = vpop.f32.mrb[0].mxu0
        %v2772 = vadd.f32 0.0, %v2771
        %v2773 = vpop.f32.mrb[0].mxu0
        %v2774 = vpop.f32.mrb[0].mxu0
        %v2775 = vadd.f32 0.0, %v2774
        %v2776 = vpop.f32.mrb[0].mxu0
        %2777 = vmatprep.mubr.bf16.mxu0 %v2468
        %2778 = vmatmul.mubr.bf16.gmra.mrb[0].mxu0 %v2467
        %v2779 = vpop.f32.mrb[0].mxu0
        %v2780 = vadd.f32 0.0, %v2779
        %v2781 = vpop.f32.mrb[0].mxu0
        %v2782 = vpop.f32.mrb[0].mxu0
        %v2783 = vadd.f32 0.0, %v2782
        %v2784 = vpop.f32.mrb[0].mxu0
        %2785 = vmatprep.mubr.bf16.mxu0 %v2470
        %2786 = vmatmul.mubr.bf16.gmra.mrb[0].mxu0 %v2469
        %v2787 = vpop.f32.mrb[0].mxu0
        %v2788 = vadd.f32 0.0, %v2787
        %v2789 = vpop.f32.mrb[0].mxu0
        %v2790 = vpop.f32.mrb[0].mxu0
        %v2791 = vadd.f32 0.0, %v2790
        %v2792 = vpop.f32.mrb[0].mxu0
        %2793 = vmatprep.mubr.bf16.mxu0 %v2472
        %2794 = vmatmul.mubr.bf16.gmra.mrb[0].mxu0 %v2471
        %v2795 = vpop.f32.mrb[0].mxu0
        %v2796 = vadd.f32 0.0, %v2795
        %v2797 = vpop.f32.mrb[0].mxu0
        %v2798 = vpop.f32.mrb[0].mxu0
        %v2799 = vadd.f32 0.0, %v2798
        %v2800 = vpop.f32.mrb[0].mxu0
        %2801 = vmatprep.mubr.bf16.mxu0 %v2474
        %2802 = vmatmul.mubr.bf16.gmra.mrb[0].mxu0 %v2473
        %v2803 = vpop.f32.mrb[0].mxu0
        %v2804 = vadd.f32 0.0, %v2803
        %v2805 = vpop.f32.mrb[0].mxu0
        %v2806 = vpop.f32.mrb[0].mxu0
        %v2807 = vadd.f32 0.0, %v2806
        %v2808 = vpop.f32.mrb[0].mxu0
        %2809 = vmatprep.mubr.bf16.mxu0 %v2476
        %2810 = vmatmul.mubr.bf16.gmra.mrb[0].mxu0 %v2475
        %v2811 = vpop.f32.mrb[0].mxu0
        %v2812 = vadd.f32 0.0, %v2811
        %v2813 = vpop.f32.mrb[0].mxu0
        %v2814 = vpop.f32.mrb[0].mxu0
        %v2815 = vadd.f32 0.0, %v2814
        %v2816 = vpop.f32.mrb[0].mxu0
        %2817 = vmatprep.mubr.bf16.mxu0 %v2478
        %2818 = vmatmul.mubr.bf16.gmra.mrb[0].mxu0 %v2477
        %v2819 = vpop.f32.mrb[0].mxu0
        %v2820 = vadd.f32 0.0, %v2819
        %v2821 = vpop.f32.mrb[0].mxu0
        %v2822 = vpop.f32.mrb[0].mxu0
        %v2823 = vadd.f32 0.0, %v2822
        %v2824 = vpop.f32.mrb[0].mxu0
        %2825 = vmatprep.mubr.bf16.mxu0 %v2480
        %2826 = vmatmul.mubr.bf16.gmra.mrb[0].mxu0 %v2479
        %v2827 = vpop.f32.mrb[0].mxu0
        %v2828 = vadd.f32 0.0, %v2827
        %v2829 = vpop.f32.mrb[0].mxu0
        %v2830 = vpop.f32.mrb[0].mxu0
        %v2831 = vadd.f32 0.0, %v2830
        %v2832 = vpop.f32.mrb[0].mxu0
        %2833 = vmatprep.mubr.bf16.mxu0 %v2482
        %2834 = vmatmul.mubr.bf16.gmra.mrb[0].mxu0 %v2481
        %v2835 = vpop.f32.mrb[0].mxu0
        %v2836 = vadd.f32 0.0, %v2835
        %v2837 = vpop.f32.mrb[0].mxu0
        %v2838 = vpop.f32.mrb[0].mxu0
        %v2839 = vadd.f32 0.0, %v2838
        %v2840 = vpop.f32.mrb[0].mxu0
        %2841 = vmatprep.mubr.bf16.mxu0 %v2484
        %2842 = vmatmul.mubr.bf16.gmra.mrb[0].mxu0 %v2483
        %v2843 = vpop.f32.mrb[0].mxu0
        %v2844 = vadd.f32 0.0, %v2843
        %v2845 = vpop.f32.mrb[0].mxu0
        %v2846 = vpop.f32.mrb[0].mxu0
        %v2847 = vadd.f32 0.0, %v2846
        %v2848 = vpop.f32.mrb[0].mxu0
        %2849 = vdwg.mxu0
        %v2850 = vadd.f32 %v1625, %v2724
        %v2851 = vadd.f32 %v1626, %v2727
        %v2852 = vadd.f32 %v1627, %v2732
        %v2853 = vadd.f32 %v1628, %v2735
        %v2854 = vadd.f32 %v1629, %v2740
        %v2855 = vadd.f32 %v1630, %v2743
        %v2856 = vadd.f32 %v1631, %v2748
        %v2857 = vadd.f32 %v1632, %v2751
        %v2858 = vadd.f32 %v1633, %v2756
        %v2859 = vadd.f32 %v1634, %v2759
        %v2860 = vadd.f32 %v1635, %v2764
        %v2861 = vadd.f32 %v1636, %v2767
        %v2862 = vadd.f32 %v1637, %v2772
        %v2863 = vadd.f32 %v1638, %v2775
        %v2864 = vadd.f32 %v1639, %v2780
        %v2865 = vadd.f32 %v1640, %v2783
        %v2866 = vadd.f32 %v1641, %v2788
        %v2867 = vadd.f32 %v1642, %v2791
        %v2868 = vadd.f32 %v1643, %v2796
        %v2869 = vadd.f32 %v1644, %v2799
        %v2870 = vadd.f32 %v1645, %v2804
        %v2871 = vadd.f32 %v1646, %v2807
        %v2872 = vadd.f32 %v1647, %v2812
        %v2873 = vadd.f32 %v1648, %v2815
        %v2874 = vadd.f32 %v1649, %v2820
        %v2875 = vadd.f32 %v1650, %v2823
        %v2876 = vadd.f32 %v1651, %v2828
        %v2877 = vadd.f32 %v1652, %v2831
        %v2878 = vadd.f32 %v1653, %v2836
        %v2879 = vadd.f32 %v1654, %v2839
        %v2880 = vadd.f32 %v1655, %v2844
        %v2881 = vadd.f32 %v1656, %v2847
      $region77: #{tpu_custom_call.1} parent=71 // loop_footer
        %s1624 = sadd.s32 1, %s1620
      $region78: #{tpu_custom_call.1} parent=71 // loop_footer_branch
        %1619 = sbr.rel target = $region74
      $region79: #{tpu_custom_call.1} parent=71 // loop_exit
        _
      %v2882 = vld [vmem:[%s11] sm:$0x1]
      %v2884 = vlaneseq
      %v2885 = vshrl.u32 %v2884, 7
      %v2886 = vsub.s32 0, %v2885
      %v2887 = vrot.slane %v2882, %v2886
      %v2889 = vadd.f32 %v1625, %v2887
      %v2890 = vadd.f32 %v1626, %v2887
      %v2891 = vadd.f32 %v1627, %v2887
      %v2892 = vadd.f32 %v1628, %v2887
      %v2893 = vadd.f32 %v1629, %v2887
      %v2894 = vadd.f32 %v1630, %v2887
      %v2895 = vadd.f32 %v1631, %v2887
      %v2896 = vadd.f32 %v1632, %v2887
      %v2897 = vadd.f32 %v1633, %v2887
      %v2898 = vadd.f32 %v1634, %v2887
      %v2899 = vadd.f32 %v1635, %v2887
      %v2900 = vadd.f32 %v1636, %v2887
      %v2901 = vadd.f32 %v1637, %v2887
      %v2902 = vadd.f32 %v1638, %v2887
      %v2903 = vadd.f32 %v1639, %v2887
      %v2904 = vadd.f32 %v1640, %v2887
      %v2905 = vadd.f32 %v1641, %v2887
      %v2906 = vadd.f32 %v1642, %v2887
      %v2907 = vadd.f32 %v1643, %v2887
      %v2908 = vadd.f32 %v1644, %v2887
      %v2909 = vadd.f32 %v1645, %v2887
      %v2910 = vadd.f32 %v1646, %v2887
      %v2911 = vadd.f32 %v1647, %v2887
      %v2912 = vadd.f32 %v1648, %v2887
      %v2913 = vadd.f32 %v1649, %v2887
      %v2914 = vadd.f32 %v1650, %v2887
      %v2915 = vadd.f32 %v1651, %v2887
      %v2916 = vadd.f32 %v1652, %v2887
      %v2917 = vadd.f32 %v1653, %v2887
      %v2918 = vadd.f32 %v1654, %v2887
      %v2919 = vadd.f32 %v1655, %v2887
      %v2920 = vadd.f32 %v1656, %v2887
      %v2921 = vadd.f32 %v2889, %v1029
      %v2922 = vadd.f32 %v2890, %v1032
      %v2923 = vadd.f32 %v2891, %v1037
      %v2924 = vadd.f32 %v2892, %v1040
      %v2925 = vadd.f32 %v2893, %v1045
      %v2926 = vadd.f32 %v2894, %v1048
      %v2927 = vadd.f32 %v2895, %v1053
      %v2928 = vadd.f32 %v2896, %v1056
      %v2929 = vadd.f32 %v2897, %v1061
      %v2930 = vadd.f32 %v2898, %v1064
      %v2931 = vadd.f32 %v2899, %v1069
      %v2932 = vadd.f32 %v2900, %v1072
      %v2933 = vadd.f32 %v2901, %v1077
      %v2934 = vadd.f32 %v2902, %v1080
      %v2935 = vadd.f32 %v2903, %v1085
      %v2936 = vadd.f32 %v2904, %v1088
      %v2937 = vadd.f32 %v2905, %v1093
      %v2938 = vadd.f32 %v2906, %v1096
      %v2939 = vadd.f32 %v2907, %v1101
      %v2940 = vadd.f32 %v2908, %v1104
      %v2941 = vadd.f32 %v2909, %v1109
      %v2942 = vadd.f32 %v2910, %v1112
      %v2943 = vadd.f32 %v2911, %v1117
      %v2944 = vadd.f32 %v2912, %v1120
      %v2945 = vadd.f32 %v2913, %v1125
      %v2946 = vadd.f32 %v2914, %v1128
      %v2947 = vadd.f32 %v2915, %v1133
      %v2948 = vadd.f32 %v2916, %v1136
      %v2949 = vadd.f32 %v2917, %v1141
      %v2950 = vadd.f32 %v2918, %v1144
      %v2951 = vadd.f32 %v2919, %v1149
      %v2952 = vadd.f32 %v2920, %v1152
      %v2953 = vpack.c.bf16 %v2922, %v2921
      %v2954 = vpack.c.bf16 %v2924, %v2923
      %v2955 = vpack.c.bf16 %v2926, %v2925
      %v2956 = vpack.c.bf16 %v2928, %v2927
      %v2957 = vpack.c.bf16 %v2930, %v2929
      %v2958 = vpack.c.bf16 %v2932, %v2931
      %v2959 = vpack.c.bf16 %v2934, %v2933
      %v2960 = vpack.c.bf16 %v2936, %v2935
      %v2961 = vpack.c.bf16 %v2938, %v2937
      %v2962 = vpack.c.bf16 %v2940, %v2939
      %v2963 = vpack.c.bf16 %v2942, %v2941
      %v2964 = vpack.c.bf16 %v2944, %v2943
      %v2965 = vpack.c.bf16 %v2946, %v2945
      %v2966 = vpack.c.bf16 %v2948, %v2947
      %v2967 = vpack.c.bf16 %v2950, %v2949
      %v2968 = vpack.c.bf16 %v2952, %v2951
      %v2969 = vld [vmem:[%s12] sm:$0xf]
      %v2970 = vld [vmem:[%s12 + $0x4] sm:$0xf]
      %v2971 = vld [vmem:[%s12 + $0x8] sm:$0xf]
      %v2972 = vld [vmem:[%s12 + $0xc] sm:$0xf]
      %v2977 = vunpack.c.l.b16 %v2969
      %v2978 = vunpack.c.l.b16 %v2970
      %v2979 = vunpack.c.l.b16 %v2971
      %v2980 = vunpack.c.l.b16 %v2972
      %v2981 = vpack.c.b16 %v2978, %v2977
      %v2982 = vpack.c.b16 %v2980, %v2979
      %v2986 = vsel %vm945, %v2953, 0
      %v2989 = vsel %vm945, %v2954, 0
      %v2992 = vsel %vm945, %v2955, 0
      %v2995 = vsel %vm945, %v2956, 0
      %v2998 = vsel %vm945, %v2957, 0
      %v3001 = vsel %vm945, %v2958, 0
      %v3004 = vsel %vm945, %v2959, 0
      %v3007 = vsel %vm945, %v2960, 0
      %v3010 = vsel %vm945, %v2961, 0
      %v3013 = vsel %vm945, %v2962, 0
      %v3016 = vsel %vm945, %v2963, 0
      %v3019 = vsel %vm945, %v2964, 0
      %v3022 = vsel %vm945, %v2965, 0
      %v3025 = vsel %vm945, %v2966, 0
      %v3028 = vsel %vm945, %v2967, 0
      %v3031 = vsel %vm945, %v2968, 0
      %3033 = vmatprep.subr.bf16.mxu0 0
      %3034 = vmatpush1.bf16.msra.mxu0 %v2981
      %3035 = vmatprep.subr.bf16.mxu0 0
      %3036 = vmatpush1.bf16.msra.mxu0 %v2982
      %3037 = vmatprep.subr.bf16.mxu0 0
      %3038 = vmatpush1.bf16.msra.mxu0 0
      %3039 = vmatprep.subr.bf16.mxu0 0
      %3040 = vmatpush1.bf16.msra.mxu0 0
      %3041 = vmatprep.subr.bf16.mxu0 0
      %3042 = vmatpush1.bf16.msra.mxu0 0
      %3043 = vmatprep.subr.bf16.mxu0 0
      %3044 = vmatpush1.bf16.msra.mxu0 0
      %3045 = vmatprep.subr.bf16.mxu0 0
      %3046 = vmatpush1.bf16.msra.mxu0 0
      %3047 = vmatprep.subr.bf16.mxu0 0
      %3048 = vmatpush1.bf16.msra.mxu0 0
      %3049 = vmatprep.subr.bf16.mxu0 0
      %3050 = vmatpush1.bf16.msra.mxu0 0
      %3051 = vmatprep.subr.bf16.mxu0 0
      %3052 = vmatpush1.bf16.msra.mxu0 0
      %3053 = vmatprep.subr.bf16.mxu0 0
      %3054 = vmatpush1.bf16.msra.mxu0 0
      %3055 = vmatprep.subr.bf16.mxu0 0
      %3056 = vmatpush1.bf16.msra.mxu0 0
      %3057 = vmatprep.subr.bf16.mxu0 0
      %3058 = vmatpush1.bf16.msra.mxu0 0
      %3059 = vmatprep.subr.bf16.mxu0 0
      %3060 = vmatpush1.bf16.msra.mxu0 0
      %3061 = vmatprep.subr.bf16.mxu0 0
      %3062 = vmatpush1.bf16.msra.mxu0 0
      %3063 = vmatprep.subr.bf16.mxu0 0
      %3064 = vmatpush1.bf16.msra.mxu0 0
      %3065 = vmatprep.mubr.bf16.mxu0 0
      %3066 = vmatmul.mubr.bf16.gmra.mrb[0].mxu0 %v2986
      %v3067 = vpop.f32.mrb[0].mxu0
      %v3068 = vadd.f32 %v2921, %v3067
      %v3069 = vpop.f32.mrb[0].mxu0
      %v3070 = vpop.f32.mrb[0].mxu0
      %v3071 = vadd.f32 %v2922, %v3070
      %v3072 = vpop.f32.mrb[0].mxu0
      %3073 = vmatprep.mubr.bf16.mxu0 0
      %3074 = vmatmul.mubr.bf16.gmra.mrb[0].mxu0 %v2989
      %v3075 = vpop.f32.mrb[0].mxu0
      %v3076 = vadd.f32 %v2923, %v3075
      %v3077 = vpop.f32.mrb[0].mxu0
      %v3078 = vpop.f32.mrb[0].mxu0
      %v3079 = vadd.f32 %v2924, %v3078
      %v3080 = vpop.f32.mrb[0].mxu0
      %3081 = vmatprep.mubr.bf16.mxu0 0
      %3082 = vmatmul.mubr.bf16.gmra.mrb[0].mxu0 %v2992
      %v3083 = vpop.f32.mrb[0].mxu0
      %v3084 = vadd.f32 %v2925, %v3083
      %v3085 = vpop.f32.mrb[0].mxu0
      %v3086 = vpop.f32.mrb[0].mxu0
      %v3087 = vadd.f32 %v2926, %v3086
      %v3088 = vpop.f32.mrb[0].mxu0
      %3089 = vmatprep.mubr.bf16.mxu0 0
      %3090 = vmatmul.mubr.bf16.gmra.mrb[0].mxu0 %v2995
      %v3091 = vpop.f32.mrb[0].mxu0
      %v3092 = vadd.f32 %v2927, %v3091
      %v3093 = vpop.f32.mrb[0].mxu0
      %v3094 = vpop.f32.mrb[0].mxu0
      %v3095 = vadd.f32 %v2928, %v3094
      %v3096 = vpop.f32.mrb[0].mxu0
      %3097 = vmatprep.mubr.bf16.mxu0 0
      %3098 = vmatmul.mubr.bf16.gmra.mrb[0].mxu0 %v2998
      %v3099 = vpop.f32.mrb[0].mxu0
      %v3100 = vadd.f32 %v2929, %v3099
      %v3101 = vpop.f32.mrb[0].mxu0
      %v3102 = vpop.f32.mrb[0].mxu0
      %v3103 = vadd.f32 %v2930, %v3102
      %v3104 = vpop.f32.mrb[0].mxu0
      %3105 = vmatprep.mubr.bf16.mxu0 0
      %3106 = vmatmul.mubr.bf16.gmra.mrb[0].mxu0 %v3001
      %v3107 = vpop.f32.mrb[0].mxu0
      %v3108 = vadd.f32 %v2931, %v3107
      %v3109 = vpop.f32.mrb[0].mxu0
      %v3110 = vpop.f32.mrb[0].mxu0
      %v3111 = vadd.f32 %v2932, %v3110
      %v3112 = vpop.f32.mrb[0].mxu0
      %3113 = vmatprep.mubr.bf16.mxu0 0
      %3114 = vmatmul.mubr.bf16.gmra.mrb[0].mxu0 %v3004
      %v3115 = vpop.f32.mrb[0].mxu0
      %v3116 = vadd.f32 %v2933, %v3115
      %v3117 = vpop.f32.mrb[0].mxu0
      %v3118 = vpop.f32.mrb[0].mxu0
      %v3119 = vadd.f32 %v2934, %v3118
      %v3120 = vpop.f32.mrb[0].mxu0
      %3121 = vmatprep.mubr.bf16.mxu0 0
      %3122 = vmatmul.mubr.bf16.gmra.mrb[0].mxu0 %v3007
      %v3123 = vpop.f32.mrb[0].mxu0
      %v3124 = vadd.f32 %v2935, %v3123
      %v3125 = vpop.f32.mrb[0].mxu0
      %v3126 = vpop.f32.mrb[0].mxu0
      %v3127 = vadd.f32 %v2936, %v3126
      %v3128 = vpop.f32.mrb[0].mxu0
      %3129 = vmatprep.mubr.bf16.mxu0 0
      %3130 = vmatmul.mubr.bf16.gmra.mrb[0].mxu0 %v3010
      %v3131 = vpop.f32.mrb[0].mxu0
      %v3132 = vadd.f32 %v2937, %v3131
      %v3133 = vpop.f32.mrb[0].mxu0
      %v3134 = vpop.f32.mrb[0].mxu0
      %v3135 = vadd.f32 %v2938, %v3134
      %v3136 = vpop.f32.mrb[0].mxu0
      %3137 = vmatprep.mubr.bf16.mxu0 0
      %3138 = vmatmul.mubr.bf16.gmra.mrb[0].mxu0 %v3013
      %v3139 = vpop.f32.mrb[0].mxu0
      %v3140 = vadd.f32 %v2939, %v3139
      %v3141 = vpop.f32.mrb[0].mxu0
      %v3142 = vpop.f32.mrb[0].mxu0
      %v3143 = vadd.f32 %v2940, %v3142
      %v3144 = vpop.f32.mrb[0].mxu0
      %3145 = vmatprep.mubr.bf16.mxu0 0
      %3146 = vmatmul.mubr.bf16.gmra.mrb[0].mxu0 %v3016
      %v3147 = vpop.f32.mrb[0].mxu0
      %v3148 = vadd.f32 %v2941, %v3147
      %v3149 = vpop.f32.mrb[0].mxu0
      %v3150 = vpop.f32.mrb[0].mxu0
      %v3151 = vadd.f32 %v2942, %v3150
      %v3152 = vpop.f32.mrb[0].mxu0
      %3153 = vmatprep.mubr.bf16.mxu0 0
      %3154 = vmatmul.mubr.bf16.gmra.mrb[0].mxu0 %v3019
      %v3155 = vpop.f32.mrb[0].mxu0
      %v3156 = vadd.f32 %v2943, %v3155
      %v3157 = vpop.f32.mrb[0].mxu0
      %v3158 = vpop.f32.mrb[0].mxu0
      %v3159 = vadd.f32 %v2944, %v3158
      %v3160 = vpop.f32.mrb[0].mxu0
      %3161 = vmatprep.mubr.bf16.mxu0 0
      %3162 = vmatmul.mubr.bf16.gmra.mrb[0].mxu0 %v3022
      %v3163 = vpop.f32.mrb[0].mxu0
      %v3164 = vadd.f32 %v2945, %v3163
      %v3165 = vpop.f32.mrb[0].mxu0
      %v3166 = vpop.f32.mrb[0].mxu0
      %v3167 = vadd.f32 %v2946, %v3166
      %v3168 = vpop.f32.mrb[0].mxu0
      %3169 = vmatprep.mubr.bf16.mxu0 0
      %3170 = vmatmul.mubr.bf16.gmra.mrb[0].mxu0 %v3025
      %v3171 = vpop.f32.mrb[0].mxu0
      %v3172 = vadd.f32 %v2947, %v3171
      %v3173 = vpop.f32.mrb[0].mxu0
      %v3174 = vpop.f32.mrb[0].mxu0
      %v3175 = vadd.f32 %v2948, %v3174
      %v3176 = vpop.f32.mrb[0].mxu0
      %3177 = vmatprep.mubr.bf16.mxu0 0
      %3178 = vmatmul.mubr.bf16.gmra.mrb[0].mxu0 %v3028
      %v3179 = vpop.f32.mrb[0].mxu0
      %v3180 = vadd.f32 %v2949, %v3179
      %v3181 = vpop.f32.mrb[0].mxu0
      %v3182 = vpop.f32.mrb[0].mxu0
      %v3183 = vadd.f32 %v2950, %v3182
      %v3184 = vpop.f32.mrb[0].mxu0
      %3185 = vmatprep.mubr.bf16.mxu0 0
      %3186 = vmatmul.mubr.bf16.gmra.mrb[0].mxu0 %v3031
      %v3187 = vpop.f32.mrb[0].mxu0
      %v3188 = vadd.f32 %v2951, %v3187
      %v3189 = vpop.f32.mrb[0].mxu0
      %v3190 = vpop.f32.mrb[0].mxu0
      %v3191 = vadd.f32 %v2952, %v3190
      %v3192 = vpop.f32.mrb[0].mxu0
      %3193 = vdwg.mxu0
      %v3194 = vpack.c.bf16 %v3071, %v3068
      %v3195 = vpack.c.bf16 %v3079, %v3076
      %v3196 = vpack.c.bf16 %v3087, %v3084
      %v3197 = vpack.c.bf16 %v3095, %v3092
      %v3198 = vpack.c.bf16 %v3103, %v3100
      %v3199 = vpack.c.bf16 %v3111, %v3108
      %v3200 = vpack.c.bf16 %v3119, %v3116
      %v3201 = vpack.c.bf16 %v3127, %v3124
      %v3202 = vpack.c.bf16 %v3135, %v3132
      %v3203 = vpack.c.bf16 %v3143, %v3140
      %v3204 = vpack.c.bf16 %v3151, %v3148
      %v3205 = vpack.c.bf16 %v3159, %v3156
      %v3206 = vpack.c.bf16 %v3167, %v3164
      %v3207 = vpack.c.bf16 %v3175, %v3172
      %v3208 = vpack.c.bf16 %v3183, %v3180
      %v3209 = vpack.c.bf16 %v3191, %v3188
      %s3210 = scalar_lea.vmem %s5, 16
      %v3211 = vld [vmem:[%s3210] sm:$0xf]
      %v3212 = vld [vmem:[%s3210 + $0x4] sm:$0xf]
      %v3213 = vld [vmem:[%s3210 + $0x8] sm:$0xf]
      %v3214 = vld [vmem:[%s3210 + $0xc] sm:$0xf]
      %s3215 = scalar_lea.vmem %s6, 1
      %v3216 = vld [vmem:[%s3215] sm:$0x1]
      %v3218 = vlaneseq
      %v3219 = vshrl.u32 %v3218, 7
      %v3220 = vsub.s32 0, %v3219
      %v3221 = vrot.slane %v3216, %v3220
      %v3227 = vunpack.c.l.b16 %v3211
      %v3228 = vunpack.c.l.b16 %v3212
      %v3229 = vunpack.c.l.b16 %v3213
      %v3230 = vunpack.c.l.b16 %v3214
      %v3231 = vpack.c.b16 %v3228, %v3227
      %v3232 = vpack.c.b16 %v3230, %v3229
      %v3236 = vsel %vm945, %v3194, 0
      %v3239 = vsel %vm945, %v3195, 0
      %v3242 = vsel %vm945, %v3196, 0
      %v3245 = vsel %vm945, %v3197, 0
      %v3248 = vsel %vm945, %v3198, 0
      %v3251 = vsel %vm945, %v3199, 0
      %v3254 = vsel %vm945, %v3200, 0
      %v3257 = vsel %vm945, %v3201, 0
      %v3260 = vsel %vm945, %v3202, 0
      %v3263 = vsel %vm945, %v3203, 0
      %v3266 = vsel %vm945, %v3204, 0
      %v3269 = vsel %vm945, %v3205, 0
      %v3272 = vsel %vm945, %v3206, 0
      %v3275 = vsel %vm945, %v3207, 0
      %v3278 = vsel %vm945, %v3208, 0
      %v3281 = vsel %vm945, %v3209, 0
      %3283 = vmatprep.subr.bf16.mxu0 0
      %3284 = vmatpush1.bf16.msra.mxu0 %v3231
      %3285 = vmatprep.subr.bf16.mxu0 0
      %3286 = vmatpush1.bf16.msra.mxu0 %v3232
      %3287 = vmatprep.subr.bf16.mxu0 0
      %3288 = vmatpush1.bf16.msra.mxu0 0
      %3289 = vmatprep.subr.bf16.mxu0 0
      %3290 = vmatpush1.bf16.msra.mxu0 0
      %3291 = vmatprep.subr.bf16.mxu0 0
      %3292 = vmatpush1.bf16.msra.mxu0 0
      %3293 = vmatprep.subr.bf16.mxu0 0
      %3294 = vmatpush1.bf16.msra.mxu0 0
      %3295 = vmatprep.subr.bf16.mxu0 0
      %3296 = vmatpush1.bf16.msra.mxu0 0
      %3297 = vmatprep.subr.bf16.mxu0 0
      %3298 = vmatpush1.bf16.msra.mxu0 0
      %3299 = vmatprep.subr.bf16.mxu0 0
      %3300 = vmatpush1.bf16.msra.mxu0 0
      %3301 = vmatprep.subr.bf16.mxu0 0
      %3302 = vmatpush1.bf16.msra.mxu0 0
      %3303 = vmatprep.subr.bf16.mxu0 0
      %3304 = vmatpush1.bf16.msra.mxu0 0
      %3305 = vmatprep.subr.bf16.mxu0 0
      %3306 = vmatpush1.bf16.msra.mxu0 0
      %3307 = vmatprep.subr.bf16.mxu0 0
      %3308 = vmatpush1.bf16.msra.mxu0 0
      %3309 = vmatprep.subr.bf16.mxu0 0
      %3310 = vmatpush1.bf16.msra.mxu0 0
      %3311 = vmatprep.subr.bf16.mxu0 0
      %3312 = vmatpush1.bf16.msra.mxu0 0
      %3313 = vmatprep.subr.bf16.mxu0 0
      %3314 = vmatpush1.bf16.msra.mxu0 0
      %3315 = vmatprep.mubr.bf16.mxu0 0
      %3316 = vmatmul.mubr.bf16.gmra.mrb[0].mxu0 %v3236
      %v3317 = vpop.f32.mrb[0].mxu0
      %v3318 = vadd.f32 %v3221, %v3317
      %v3319 = vpop.f32.mrb[0].mxu0
      %v3320 = vpop.f32.mrb[0].mxu0
      %v3321 = vadd.f32 %v3221, %v3320
      %v3322 = vpop.f32.mrb[0].mxu0
      %3323 = vmatprep.mubr.bf16.mxu0 0
      %3324 = vmatmul.mubr.bf16.gmra.mrb[0].mxu0 %v3239
      %v3325 = vpop.f32.mrb[0].mxu0
      %v3326 = vadd.f32 %v3221, %v3325
      %v3327 = vpop.f32.mrb[0].mxu0
      %v3328 = vpop.f32.mrb[0].mxu0
      %v3329 = vadd.f32 %v3221, %v3328
      %v3330 = vpop.f32.mrb[0].mxu0
      %3331 = vmatprep.mubr.bf16.mxu0 0
      %3332 = vmatmul.mubr.bf16.gmra.mrb[0].mxu0 %v3242
      %v3333 = vpop.f32.mrb[0].mxu0
      %v3334 = vadd.f32 %v3221, %v3333
      %v3335 = vpop.f32.mrb[0].mxu0
      %v3336 = vpop.f32.mrb[0].mxu0
      %v3337 = vadd.f32 %v3221, %v3336
      %v3338 = vpop.f32.mrb[0].mxu0
      %3339 = vmatprep.mubr.bf16.mxu0 0
      %3340 = vmatmul.mubr.bf16.gmra.mrb[0].mxu0 %v3245
      %v3341 = vpop.f32.mrb[0].mxu0
      %v3342 = vadd.f32 %v3221, %v3341
      %v3343 = vpop.f32.mrb[0].mxu0
      %v3344 = vpop.f32.mrb[0].mxu0
      %v3345 = vadd.f32 %v3221, %v3344
      %v3346 = vpop.f32.mrb[0].mxu0
      %3347 = vmatprep.mubr.bf16.mxu0 0
      %3348 = vmatmul.mubr.bf16.gmra.mrb[0].mxu0 %v3248
      %v3349 = vpop.f32.mrb[0].mxu0
      %v3350 = vadd.f32 %v3221, %v3349
      %v3351 = vpop.f32.mrb[0].mxu0
      %v3352 = vpop.f32.mrb[0].mxu0
      %v3353 = vadd.f32 %v3221, %v3352
      %v3354 = vpop.f32.mrb[0].mxu0
      %3355 = vmatprep.mubr.bf16.mxu0 0
      %3356 = vmatmul.mubr.bf16.gmra.mrb[0].mxu0 %v3251
      %v3357 = vpop.f32.mrb[0].mxu0
      %v3358 = vadd.f32 %v3221, %v3357
      %v3359 = vpop.f32.mrb[0].mxu0
      %v3360 = vpop.f32.mrb[0].mxu0
      %v3361 = vadd.f32 %v3221, %v3360
      %v3362 = vpop.f32.mrb[0].mxu0
      %3363 = vmatprep.mubr.bf16.mxu0 0
      %3364 = vmatmul.mubr.bf16.gmra.mrb[0].mxu0 %v3254
      %v3365 = vpop.f32.mrb[0].mxu0
      %v3366 = vadd.f32 %v3221, %v3365
      %v3367 = vpop.f32.mrb[0].mxu0
      %v3368 = vpop.f32.mrb[0].mxu0
      %v3369 = vadd.f32 %v3221, %v3368
      %v3370 = vpop.f32.mrb[0].mxu0
      %3371 = vmatprep.mubr.bf16.mxu0 0
      %3372 = vmatmul.mubr.bf16.gmra.mrb[0].mxu0 %v3257
      %v3373 = vpop.f32.mrb[0].mxu0
      %v3374 = vadd.f32 %v3221, %v3373
      %v3375 = vpop.f32.mrb[0].mxu0
      %v3376 = vpop.f32.mrb[0].mxu0
      %v3377 = vadd.f32 %v3221, %v3376
      %v3378 = vpop.f32.mrb[0].mxu0
      %3379 = vmatprep.mubr.bf16.mxu0 0
      %3380 = vmatmul.mubr.bf16.gmra.mrb[0].mxu0 %v3260
      %v3381 = vpop.f32.mrb[0].mxu0
      %v3382 = vadd.f32 %v3221, %v3381
      %v3383 = vpop.f32.mrb[0].mxu0
      %v3384 = vpop.f32.mrb[0].mxu0
      %v3385 = vadd.f32 %v3221, %v3384
      %v3386 = vpop.f32.mrb[0].mxu0
      %3387 = vmatprep.mubr.bf16.mxu0 0
      %3388 = vmatmul.mubr.bf16.gmra.mrb[0].mxu0 %v3263
      %v3389 = vpop.f32.mrb[0].mxu0
      %v3390 = vadd.f32 %v3221, %v3389
      %v3391 = vpop.f32.mrb[0].mxu0
      %v3392 = vpop.f32.mrb[0].mxu0
      %v3393 = vadd.f32 %v3221, %v3392
      %v3394 = vpop.f32.mrb[0].mxu0
      %3395 = vmatprep.mubr.bf16.mxu0 0
      %3396 = vmatmul.mubr.bf16.gmra.mrb[0].mxu0 %v3266
      %v3397 = vpop.f32.mrb[0].mxu0
      %v3398 = vadd.f32 %v3221, %v3397
      %v3399 = vpop.f32.mrb[0].mxu0
      %v3400 = vpop.f32.mrb[0].mxu0
      %v3401 = vadd.f32 %v3221, %v3400
      %v3402 = vpop.f32.mrb[0].mxu0
      %3403 = vmatprep.mubr.bf16.mxu0 0
      %3404 = vmatmul.mubr.bf16.gmra.mrb[0].mxu0 %v3269
      %v3405 = vpop.f32.mrb[0].mxu0
      %v3406 = vadd.f32 %v3221, %v3405
      %v3407 = vpop.f32.mrb[0].mxu0
      %v3408 = vpop.f32.mrb[0].mxu0
      %v3409 = vadd.f32 %v3221, %v3408
      %v3410 = vpop.f32.mrb[0].mxu0
      %3411 = vmatprep.mubr.bf16.mxu0 0
      %3412 = vmatmul.mubr.bf16.gmra.mrb[0].mxu0 %v3272
      %v3413 = vpop.f32.mrb[0].mxu0
      %v3414 = vadd.f32 %v3221, %v3413
      %v3415 = vpop.f32.mrb[0].mxu0
      %v3416 = vpop.f32.mrb[0].mxu0
      %v3417 = vadd.f32 %v3221, %v3416
      %v3418 = vpop.f32.mrb[0].mxu0
      %3419 = vmatprep.mubr.bf16.mxu0 0
      %3420 = vmatmul.mubr.bf16.gmra.mrb[0].mxu0 %v3275
      %v3421 = vpop.f32.mrb[0].mxu0
      %v3422 = vadd.f32 %v3221, %v3421
      %v3423 = vpop.f32.mrb[0].mxu0
      %v3424 = vpop.f32.mrb[0].mxu0
      %v3425 = vadd.f32 %v3221, %v3424
      %v3426 = vpop.f32.mrb[0].mxu0
      %3427 = vmatprep.mubr.bf16.mxu0 0
      %3428 = vmatmul.mubr.bf16.gmra.mrb[0].mxu0 %v3278
      %v3429 = vpop.f32.mrb[0].mxu0
      %v3430 = vadd.f32 %v3221, %v3429
      %v3431 = vpop.f32.mrb[0].mxu0
      %v3432 = vpop.f32.mrb[0].mxu0
      %v3433 = vadd.f32 %v3221, %v3432
      %v3434 = vpop.f32.mrb[0].mxu0
      %3435 = vmatprep.mubr.bf16.mxu0 0
      %3436 = vmatmul.mubr.bf16.gmra.mrb[0].mxu0 %v3281
      %v3437 = vpop.f32.mrb[0].mxu0
      %v3438 = vadd.f32 %v3221, %v3437
      %v3439 = vpop.f32.mrb[0].mxu0
      %v3440 = vpop.f32.mrb[0].mxu0
      %v3441 = vadd.f32 %v3221, %v3440
      %v3442 = vpop.f32.mrb[0].mxu0
      %3443 = vdwg.mxu0
      %s3444 = scalar_lea.vmem %s7, 16
      %v3445 = vld [vmem:[%s3444] sm:$0xf]
      %v3446 = vld [vmem:[%s3444 + $0x4] sm:$0xf]
      %v3447 = vld [vmem:[%s3444 + $0x8] sm:$0xf]
      %v3448 = vld [vmem:[%s3444 + $0xc] sm:$0xf]
      %s3449 = scalar_lea.vmem %s8, 1
      %v3450 = vld [vmem:[%s3449] sm:$0x1]
      %v3452 = vlaneseq
      %v3453 = vshrl.u32 %v3452, 7
      %v3454 = vsub.s32 0, %v3453
      %v3455 = vrot.slane %v3450, %v3454
      %v3461 = vunpack.c.l.b16 %v3445
      %v3462 = vunpack.c.l.b16 %v3446
      %v3463 = vunpack.c.l.b16 %v3447
      %v3464 = vunpack.c.l.b16 %v3448
      %v3465 = vpack.c.b16 %v3462, %v3461
      %v3466 = vpack.c.b16 %v3464, %v3463
      %3469 = vmatprep.subr.bf16.mxu0 0
      %3470 = vmatpush1.bf16.msra.mxu0 %v3465
      %3471 = vmatprep.subr.bf16.mxu0 0
      %3472 = vmatpush1.bf16.msra.mxu0 %v3466
      %3473 = vmatprep.subr.bf16.mxu0 0
      %3474 = vmatpush1.bf16.msra.mxu0 0
      %3475 = vmatprep.subr.bf16.mxu0 0
      %3476 = vmatpush1.bf16.msra.mxu0 0
      %3477 = vmatprep.subr.bf16.mxu0 0
      %3478 = vmatpush1.bf16.msra.mxu0 0
      %3479 = vmatprep.subr.bf16.mxu0 0
      %3480 = vmatpush1.bf16.msra.mxu0 0
      %3481 = vmatprep.subr.bf16.mxu0 0
      %3482 = vmatpush1.bf16.msra.mxu0 0
      %3483 = vmatprep.subr.bf16.mxu0 0
      %3484 = vmatpush1.bf16.msra.mxu0 0
      %3485 = vmatprep.subr.bf16.mxu0 0
      %3486 = vmatpush1.bf16.msra.mxu0 0
      %3487 = vmatprep.subr.bf16.mxu0 0
      %3488 = vmatpush1.bf16.msra.mxu0 0
      %3489 = vmatprep.subr.bf16.mxu0 0
      %3490 = vmatpush1.bf16.msra.mxu0 0
      %3491 = vmatprep.subr.bf16.mxu0 0
      %3492 = vmatpush1.bf16.msra.mxu0 0
      %3493 = vmatprep.subr.bf16.mxu0 0
      %3494 = vmatpush1.bf16.msra.mxu0 0
      %3495 = vmatprep.subr.bf16.mxu0 0
      %3496 = vmatpush1.bf16.msra.mxu0 0
      %3497 = vmatprep.subr.bf16.mxu0 0
      %3498 = vmatpush1.bf16.msra.mxu0 0
      %3499 = vmatprep.subr.bf16.mxu0 0
      %3500 = vmatpush1.bf16.msra.mxu0 0
      %3501 = vmatprep.mubr.bf16.mxu0 0
      %3502 = vmatmul.mubr.bf16.gmra.mrb[0].mxu0 %v3236
      %v3503 = vpop.f32.mrb[0].mxu0
      %v3504 = vadd.f32 %v3455, %v3503
      %v3505 = vpop.f32.mrb[0].mxu0
      %v3506 = vpop.f32.mrb[0].mxu0
      %v3507 = vadd.f32 %v3455, %v3506
      %v3508 = vpop.f32.mrb[0].mxu0
      %3509 = vmatprep.mubr.bf16.mxu0 0
      %3510 = vmatmul.mubr.bf16.gmra.mrb[0].mxu0 %v3239
      %v3511 = vpop.f32.mrb[0].mxu0
      %v3512 = vadd.f32 %v3455, %v3511
      %v3513 = vpop.f32.mrb[0].mxu0
      %v3514 = vpop.f32.mrb[0].mxu0
      %v3515 = vadd.f32 %v3455, %v3514
      %v3516 = vpop.f32.mrb[0].mxu0
      %3517 = vmatprep.mubr.bf16.mxu0 0
      %3518 = vmatmul.mubr.bf16.gmra.mrb[0].mxu0 %v3242
      %v3519 = vpop.f32.mrb[0].mxu0
      %v3520 = vadd.f32 %v3455, %v3519
      %v3521 = vpop.f32.mrb[0].mxu0
      %v3522 = vpop.f32.mrb[0].mxu0
      %v3523 = vadd.f32 %v3455, %v3522
      %v3524 = vpop.f32.mrb[0].mxu0
      %3525 = vmatprep.mubr.bf16.mxu0 0
      %3526 = vmatmul.mubr.bf16.gmra.mrb[0].mxu0 %v3245
      %v3527 = vpop.f32.mrb[0].mxu0
      %v3528 = vadd.f32 %v3455, %v3527
      %v3529 = vpop.f32.mrb[0].mxu0
      %v3530 = vpop.f32.mrb[0].mxu0
      %v3531 = vadd.f32 %v3455, %v3530
      %v3532 = vpop.f32.mrb[0].mxu0
      %3533 = vmatprep.mubr.bf16.mxu0 0
      %3534 = vmatmul.mubr.bf16.gmra.mrb[0].mxu0 %v3248
      %v3535 = vpop.f32.mrb[0].mxu0
      %v3536 = vadd.f32 %v3455, %v3535
      %v3537 = vpop.f32.mrb[0].mxu0
      %v3538 = vpop.f32.mrb[0].mxu0
      %v3539 = vadd.f32 %v3455, %v3538
      %v3540 = vpop.f32.mrb[0].mxu0
      %3541 = vmatprep.mubr.bf16.mxu0 0
      %3542 = vmatmul.mubr.bf16.gmra.mrb[0].mxu0 %v3251
      %v3543 = vpop.f32.mrb[0].mxu0
      %v3544 = vadd.f32 %v3455, %v3543
      %v3545 = vpop.f32.mrb[0].mxu0
      %v3546 = vpop.f32.mrb[0].mxu0
      %v3547 = vadd.f32 %v3455, %v3546
      %v3548 = vpop.f32.mrb[0].mxu0
      %3549 = vmatprep.mubr.bf16.mxu0 0
      %3550 = vmatmul.mubr.bf16.gmra.mrb[0].mxu0 %v3254
      %v3551 = vpop.f32.mrb[0].mxu0
      %v3552 = vadd.f32 %v3455, %v3551
      %v3553 = vpop.f32.mrb[0].mxu0
      %v3554 = vpop.f32.mrb[0].mxu0
      %v3555 = vadd.f32 %v3455, %v3554
      %v3556 = vpop.f32.mrb[0].mxu0
      %3557 = vmatprep.mubr.bf16.mxu0 0
      %3558 = vmatmul.mubr.bf16.gmra.mrb[0].mxu0 %v3257
      %v3559 = vpop.f32.mrb[0].mxu0
      %v3560 = vadd.f32 %v3455, %v3559
      %v3561 = vpop.f32.mrb[0].mxu0
      %v3562 = vpop.f32.mrb[0].mxu0
      %v3563 = vadd.f32 %v3455, %v3562
      %v3564 = vpop.f32.mrb[0].mxu0
      %3565 = vmatprep.mubr.bf16.mxu0 0
      %3566 = vmatmul.mubr.bf16.gmra.mrb[0].mxu0 %v3260
      %v3567 = vpop.f32.mrb[0].mxu0
      %v3568 = vadd.f32 %v3455, %v3567
      %v3569 = vpop.f32.mrb[0].mxu0
      %v3570 = vpop.f32.mrb[0].mxu0
      %v3571 = vadd.f32 %v3455, %v3570
      %v3572 = vpop.f32.mrb[0].mxu0
      %3573 = vmatprep.mubr.bf16.mxu0 0
      %3574 = vmatmul.mubr.bf16.gmra.mrb[0].mxu0 %v3263
      %v3575 = vpop.f32.mrb[0].mxu0
      %v3576 = vadd.f32 %v3455, %v3575
      %v3577 = vpop.f32.mrb[0].mxu0
      %v3578 = vpop.f32.mrb[0].mxu0
      %v3579 = vadd.f32 %v3455, %v3578
      %v3580 = vpop.f32.mrb[0].mxu0
      %3581 = vmatprep.mubr.bf16.mxu0 0
      %3582 = vmatmul.mubr.bf16.gmra.mrb[0].mxu0 %v3266
      %v3583 = vpop.f32.mrb[0].mxu0
      %v3584 = vadd.f32 %v3455, %v3583
      %v3585 = vpop.f32.mrb[0].mxu0
      %v3586 = vpop.f32.mrb[0].mxu0
      %v3587 = vadd.f32 %v3455, %v3586
      %v3588 = vpop.f32.mrb[0].mxu0
      %3589 = vmatprep.mubr.bf16.mxu0 0
      %3590 = vmatmul.mubr.bf16.gmra.mrb[0].mxu0 %v3269
      %v3591 = vpop.f32.mrb[0].mxu0
      %v3592 = vadd.f32 %v3455, %v3591
      %v3593 = vpop.f32.mrb[0].mxu0
      %v3594 = vpop.f32.mrb[0].mxu0
      %v3595 = vadd.f32 %v3455, %v3594
      %v3596 = vpop.f32.mrb[0].mxu0
      %3597 = vmatprep.mubr.bf16.mxu0 0
      %3598 = vmatmul.mubr.bf16.gmra.mrb[0].mxu0 %v3272
      %v3599 = vpop.f32.mrb[0].mxu0
      %v3600 = vadd.f32 %v3455, %v3599
      %v3601 = vpop.f32.mrb[0].mxu0
      %v3602 = vpop.f32.mrb[0].mxu0
      %v3603 = vadd.f32 %v3455, %v3602
      %v3604 = vpop.f32.mrb[0].mxu0
      %3605 = vmatprep.mubr.bf16.mxu0 0
      %3606 = vmatmul.mubr.bf16.gmra.mrb[0].mxu0 %v3275
      %v3607 = vpop.f32.mrb[0].mxu0
      %v3608 = vadd.f32 %v3455, %v3607
      %v3609 = vpop.f32.mrb[0].mxu0
      %v3610 = vpop.f32.mrb[0].mxu0
      %v3611 = vadd.f32 %v3455, %v3610
      %v3612 = vpop.f32.mrb[0].mxu0
      %3613 = vmatprep.mubr.bf16.mxu0 0
      %3614 = vmatmul.mubr.bf16.gmra.mrb[0].mxu0 %v3278
      %v3615 = vpop.f32.mrb[0].mxu0
      %v3616 = vadd.f32 %v3455, %v3615
      %v3617 = vpop.f32.mrb[0].mxu0
      %v3618 = vpop.f32.mrb[0].mxu0
      %v3619 = vadd.f32 %v3455, %v3618
      %v3620 = vpop.f32.mrb[0].mxu0
      %3621 = vmatprep.mubr.bf16.mxu0 0
      %3622 = vmatmul.mubr.bf16.gmra.mrb[0].mxu0 %v3281
      %v3623 = vpop.f32.mrb[0].mxu0
      %v3624 = vadd.f32 %v3455, %v3623
      %v3625 = vpop.f32.mrb[0].mxu0
      %v3626 = vpop.f32.mrb[0].mxu0
      %v3627 = vadd.f32 %v3455, %v3626
      %v3628 = vpop.f32.mrb[0].mxu0
      %3629 = vdwg.mxu0
      %v3630 = vpack.c.bf16 %v3321, %v3318
      %v3631 = vpack.c.bf16 %v3329, %v3326
      %v3632 = vpack.c.bf16 %v3337, %v3334
      %v3633 = vpack.c.bf16 %v3345, %v3342
      %v3634 = vpack.c.bf16 %v3353, %v3350
      %v3635 = vpack.c.bf16 %v3361, %v3358
      %v3636 = vpack.c.bf16 %v3369, %v3366
      %v3637 = vpack.c.bf16 %v3377, %v3374
      %v3638 = vpack.c.bf16 %v3385, %v3382
      %v3639 = vpack.c.bf16 %v3393, %v3390
      %v3640 = vpack.c.bf16 %v3401, %v3398
      %v3641 = vpack.c.bf16 %v3409, %v3406
      %v3642 = vpack.c.bf16 %v3417, %v3414
      %v3643 = vpack.c.bf16 %v3425, %v3422
      %v3644 = vpack.c.bf16 %v3433, %v3430
      %v3645 = vpack.c.bf16 %v3441, %v3438
      %v3646 = vpack.c.bf16 %v3507, %v3504
      %v3647 = vpack.c.bf16 %v3515, %v3512
      %v3648 = vpack.c.bf16 %v3523, %v3520
      %v3649 = vpack.c.bf16 %v3531, %v3528
      %v3650 = vpack.c.bf16 %v3539, %v3536
      %v3651 = vpack.c.bf16 %v3547, %v3544
      %v3652 = vpack.c.bf16 %v3555, %v3552
      %v3653 = vpack.c.bf16 %v3563, %v3560
      %v3654 = vpack.c.bf16 %v3571, %v3568
      %v3655 = vpack.c.bf16 %v3579, %v3576
      %v3656 = vpack.c.bf16 %v3587, %v3584
      %v3657 = vpack.c.bf16 %v3595, %v3592
      %v3658 = vpack.c.bf16 %v3603, %v3600
      %v3659 = vpack.c.bf16 %v3611, %v3608
      %v3660 = vpack.c.bf16 %v3619, %v3616
      %v3661 = vpack.c.bf16 %v3627, %v3624
      loop: start=0, step=1, limit=4
      $region80: #{tpu_custom_call.1} parent=71 // loop_pre_header
        _
      $region81: #{tpu_custom_call.1} parent=71 // loop_header
        %s3663 = sphi 0, %s3667
        %p3664 = scmp.ge.s32.totalorder %s3663, 4
        %v3668 = vphi 0.0, %v4895
        %v3669 = vphi 0.0, %v4896
        %v3670 = vphi 0.0, %v4897
        %v3671 = vphi 0.0, %v4898
        %v3672 = vphi 0.0, %v4899
        %v3673 = vphi 0.0, %v4900
        %v3674 = vphi 0.0, %v4901
        %v3675 = vphi 0.0, %v4902
        %v3676 = vphi 0.0, %v4903
        %v3677 = vphi 0.0, %v4904
        %v3678 = vphi 0.0, %v4905
        %v3679 = vphi 0.0, %v4906
        %v3680 = vphi 0.0, %v4907
        %v3681 = vphi 0.0, %v4908
        %v3682 = vphi 0.0, %v4909
        %v3683 = vphi 0.0, %v4910
        %v3684 = vphi 0.0, %v4911
        %v3685 = vphi 0.0, %v4912
        %v3686 = vphi 0.0, %v4913
        %v3687 = vphi 0.0, %v4914
        %v3688 = vphi 0.0, %v4915
        %v3689 = vphi 0.0, %v4916
        %v3690 = vphi 0.0, %v4917
        %v3691 = vphi 0.0, %v4918
        %v3692 = vphi 0.0, %v4919
        %v3693 = vphi 0.0, %v4920
        %v3694 = vphi 0.0, %v4921
        %v3695 = vphi 0.0, %v4922
        %v3696 = vphi 0.0, %v4923
        %v3697 = vphi 0.0, %v4924
        %v3698 = vphi 0.0, %v4925
        %v3699 = vphi 0.0, %v4926
      $region82: #{tpu_custom_call.1} parent=71 // loop_header_branch
        %3666 = sbr.rel (%p3664) target = $region86
      $region83: #{tpu_custom_call.1} parent=71 // loop_body
        %s3700 = smul.u32 %s3663, 8
        %v3701 = vstv %s3700
        %vm3702 = vcmp.ge.s32.totalorder %v475, %v3701
        %s3703 = sadd.s32 %s3663, 1
        %s3704 = smul.u32 %s3703, 8
        %v3705 = vstv %s3704
        %vm3706 = vcmp.lt.s32.totalorder %v475, %v3705
        %vm3707 = vmand %vm3702, %vm3706
        %v3708 = vsel %vm3707, 1, 0
        %v3709 = vcvt.s32.f32 %v3708
        %v3710 = vpack.c.bf16 %v3709, %v3709
        %v3711 = vmul.bf16 %v3646, %v3710
        %v3712 = vmul.bf16 %v3647, %v3710
        %v3713 = vmul.bf16 %v3648, %v3710
        %v3714 = vmul.bf16 %v3649, %v3710
        %v3715 = vmul.bf16 %v3650, %v3710
        %v3716 = vmul.bf16 %v3651, %v3710
        %v3717 = vmul.bf16 %v3652, %v3710
        %v3718 = vmul.bf16 %v3653, %v3710
        %v3719 = vmul.bf16 %v3654, %v3710
        %v3720 = vmul.bf16 %v3655, %v3710
        %v3721 = vmul.bf16 %v3656, %v3710
        %v3722 = vmul.bf16 %v3657, %v3710
        %v3723 = vmul.bf16 %v3658, %v3710
        %v3724 = vmul.bf16 %v3659, %v3710
        %v3725 = vmul.bf16 %v3660, %v3710
        %v3726 = vmul.bf16 %v3661, %v3710
        %v3728 = vsel %vm945, %v3630, 0
        %v3731 = vsel %vm945, %v3631, 0
        %v3734 = vsel %vm945, %v3632, 0
        %v3737 = vsel %vm945, %v3633, 0
        %v3740 = vsel %vm945, %v3634, 0
        %v3743 = vsel %vm945, %v3635, 0
        %v3746 = vsel %vm945, %v3636, 0
        %v3749 = vsel %vm945, %v3637, 0
        %v3752 = vsel %vm945, %v3638, 0
        %v3755 = vsel %vm945, %v3639, 0
        %v3758 = vsel %vm945, %v3640, 0
        %v3761 = vsel %vm945, %v3641, 0
        %v3764 = vsel %vm945, %v3642, 0
        %v3767 = vsel %vm945, %v3643, 0
        %v3770 = vsel %vm945, %v3644, 0
        %v3773 = vsel %vm945, %v3645, 0
        %v3776 = vsel %vm945, %v3711, 0
        %v3779 = vsel %vm945, %v3712, 0
        %v3782 = vsel %vm945, %v3713, 0
        %v3785 = vsel %vm945, %v3714, 0
        %v3788 = vsel %vm945, %v3715, 0
        %v3791 = vsel %vm945, %v3716, 0
        %v3794 = vsel %vm945, %v3717, 0
        %v3797 = vsel %vm945, %v3718, 0
        %v3800 = vsel %vm945, %v3719, 0
        %v3803 = vsel %vm945, %v3720, 0
        %v3806 = vsel %vm945, %v3721, 0
        %v3809 = vsel %vm945, %v3722, 0
        %v3812 = vsel %vm945, %v3723, 0
        %v3815 = vsel %vm945, %v3724, 0
        %v3818 = vsel %vm945, %v3725, 0
        %v3821 = vsel %vm945, %v3726, 0
        %3823 = vmatprep.subr.bf16.mxu0 0
        %3824 = vmatpush1.bf16.xpose.msra.mxu0 %v3776
        %3825 = vmatprep.subr.bf16.mxu0 0
        %3826 = vmatpush1.bf16.xpose.msra.mxu0 %v3779
        %3827 = vmatprep.subr.bf16.mxu0 0
        %3828 = vmatpush1.bf16.xpose.msra.mxu0 %v3782
        %3829 = vmatprep.subr.bf16.mxu0 0
        %3830 = vmatpush1.bf16.xpose.msra.mxu0 %v3785
        %3831 = vmatprep.subr.bf16.mxu0 0
        %3832 = vmatpush1.bf16.xpose.msra.mxu0 %v3788
        %3833 = vmatprep.subr.bf16.mxu0 0
        %3834 = vmatpush1.bf16.xpose.msra.mxu0 %v3791
        %3835 = vmatprep.subr.bf16.mxu0 0
        %3836 = vmatpush1.bf16.xpose.msra.mxu0 %v3794
        %3837 = vmatprep.subr.bf16.mxu0 0
        %3838 = vmatpush1.bf16.xpose.msra.mxu0 %v3797
        %3839 = vmatprep.subr.bf16.mxu0 0
        %3840 = vmatpush1.bf16.xpose.msra.mxu0 %v3800
        %3841 = vmatprep.subr.bf16.mxu0 0
        %3842 = vmatpush1.bf16.xpose.msra.mxu0 %v3803
        %3843 = vmatprep.subr.bf16.mxu0 0
        %3844 = vmatpush1.bf16.xpose.msra.mxu0 %v3806
        %3845 = vmatprep.subr.bf16.mxu0 0
        %3846 = vmatpush1.bf16.xpose.msra.mxu0 %v3809
        %3847 = vmatprep.subr.bf16.mxu0 0
        %3848 = vmatpush1.bf16.xpose.msra.mxu0 %v3812
        %3849 = vmatprep.subr.bf16.mxu0 0
        %3850 = vmatpush1.bf16.xpose.msra.mxu0 %v3815
        %3851 = vmatprep.subr.bf16.mxu0 0
        %3852 = vmatpush1.bf16.xpose.msra.mxu0 %v3818
        %3853 = vmatprep.subr.bf16.mxu0 0
        %3854 = vmatpush1.bf16.xpose.msra.mxu0 %v3821
        %3855 = vmatprep.mubr.bf16.mxu0 0
        %3856 = vmatmul.mubr.bf16.gmra.mrb[0].mxu0 %v3728
        %v3857 = vpop.f32.mrb[0].mxu0
        %v3858 = vadd.f32 0.0, %v3857
        %v3859 = vpop.f32.mrb[0].mxu0
        %v3860 = vadd.f32 0.0, %v3859
        %v3861 = vpop.f32.mrb[0].mxu0
        %v3862 = vadd.f32 0.0, %v3861
        %v3863 = vpop.f32.mrb[0].mxu0
        %v3864 = vadd.f32 0.0, %v3863
        %3865 = vmatprep.mubr.bf16.mxu0 0
        %3866 = vmatmul.mubr.bf16.gmra.mrb[0].mxu0 %v3731
        %v3867 = vpop.f32.mrb[0].mxu0
        %v3868 = vadd.f32 0.0, %v3867
        %v3869 = vpop.f32.mrb[0].mxu0
        %v3870 = vadd.f32 0.0, %v3869
        %v3871 = vpop.f32.mrb[0].mxu0
        %v3872 = vadd.f32 0.0, %v3871
        %v3873 = vpop.f32.mrb[0].mxu0
        %v3874 = vadd.f32 0.0, %v3873
        %3875 = vmatprep.mubr.bf16.mxu0 0
        %3876 = vmatmul.mubr.bf16.gmra.mrb[0].mxu0 %v3734
        %v3877 = vpop.f32.mrb[0].mxu0
        %v3878 = vadd.f32 0.0, %v3877
        %v3879 = vpop.f32.mrb[0].mxu0
        %v3880 = vadd.f32 0.0, %v3879
        %v3881 = vpop.f32.mrb[0].mxu0
        %v3882 = vadd.f32 0.0, %v3881
        %v3883 = vpop.f32.mrb[0].mxu0
        %v3884 = vadd.f32 0.0, %v3883
        %3885 = vmatprep.mubr.bf16.mxu0 0
        %3886 = vmatmul.mubr.bf16.gmra.mrb[0].mxu0 %v3737
        %v3887 = vpop.f32.mrb[0].mxu0
        %v3888 = vadd.f32 0.0, %v3887
        %v3889 = vpop.f32.mrb[0].mxu0
        %v3890 = vadd.f32 0.0, %v3889
        %v3891 = vpop.f32.mrb[0].mxu0
        %v3892 = vadd.f32 0.0, %v3891
        %v3893 = vpop.f32.mrb[0].mxu0
        %v3894 = vadd.f32 0.0, %v3893
        %3895 = vmatprep.mubr.bf16.mxu0 0
        %3896 = vmatmul.mubr.bf16.gmra.mrb[0].mxu0 %v3740
        %v3897 = vpop.f32.mrb[0].mxu0
        %v3898 = vadd.f32 0.0, %v3897
        %v3899 = vpop.f32.mrb[0].mxu0
        %v3900 = vadd.f32 0.0, %v3899
        %v3901 = vpop.f32.mrb[0].mxu0
        %v3902 = vadd.f32 0.0, %v3901
        %v3903 = vpop.f32.mrb[0].mxu0
        %v3904 = vadd.f32 0.0, %v3903
        %3905 = vmatprep.mubr.bf16.mxu0 0
        %3906 = vmatmul.mubr.bf16.gmra.mrb[0].mxu0 %v3743
        %v3907 = vpop.f32.mrb[0].mxu0
        %v3908 = vadd.f32 0.0, %v3907
        %v3909 = vpop.f32.mrb[0].mxu0
        %v3910 = vadd.f32 0.0, %v3909
        %v3911 = vpop.f32.mrb[0].mxu0
        %v3912 = vadd.f32 0.0, %v3911
        %v3913 = vpop.f32.mrb[0].mxu0
        %v3914 = vadd.f32 0.0, %v3913
        %3915 = vmatprep.mubr.bf16.mxu0 0
        %3916 = vmatmul.mubr.bf16.gmra.mrb[0].mxu0 %v3746
        %v3917 = vpop.f32.mrb[0].mxu0
        %v3918 = vadd.f32 0.0, %v3917
        %v3919 = vpop.f32.mrb[0].mxu0
        %v3920 = vadd.f32 0.0, %v3919
        %v3921 = vpop.f32.mrb[0].mxu0
        %v3922 = vadd.f32 0.0, %v3921
        %v3923 = vpop.f32.mrb[0].mxu0
        %v3924 = vadd.f32 0.0, %v3923
        %3925 = vmatprep.mubr.bf16.mxu0 0
        %3926 = vmatmul.mubr.bf16.gmra.mrb[0].mxu0 %v3749
        %v3927 = vpop.f32.mrb[0].mxu0
        %v3928 = vadd.f32 0.0, %v3927
        %v3929 = vpop.f32.mrb[0].mxu0
        %v3930 = vadd.f32 0.0, %v3929
        %v3931 = vpop.f32.mrb[0].mxu0
        %v3932 = vadd.f32 0.0, %v3931
        %v3933 = vpop.f32.mrb[0].mxu0
        %v3934 = vadd.f32 0.0, %v3933
        %3935 = vmatprep.mubr.bf16.mxu0 0
        %3936 = vmatmul.mubr.bf16.gmra.mrb[0].mxu0 %v3752
        %v3937 = vpop.f32.mrb[0].mxu0
        %v3938 = vadd.f32 0.0, %v3937
        %v3939 = vpop.f32.mrb[0].mxu0
        %v3940 = vadd.f32 0.0, %v3939
        %v3941 = vpop.f32.mrb[0].mxu0
        %v3942 = vadd.f32 0.0, %v3941
        %v3943 = vpop.f32.mrb[0].mxu0
        %v3944 = vadd.f32 0.0, %v3943
        %3945 = vmatprep.mubr.bf16.mxu0 0
        %3946 = vmatmul.mubr.bf16.gmra.mrb[0].mxu0 %v3755
        %v3947 = vpop.f32.mrb[0].mxu0
        %v3948 = vadd.f32 0.0, %v3947
        %v3949 = vpop.f32.mrb[0].mxu0
        %v3950 = vadd.f32 0.0, %v3949
        %v3951 = vpop.f32.mrb[0].mxu0
        %v3952 = vadd.f32 0.0, %v3951
        %v3953 = vpop.f32.mrb[0].mxu0
        %v3954 = vadd.f32 0.0, %v3953
        %3955 = vmatprep.mubr.bf16.mxu0 0
        %3956 = vmatmul.mubr.bf16.gmra.mrb[0].mxu0 %v3758
        %v3957 = vpop.f32.mrb[0].mxu0
        %v3958 = vadd.f32 0.0, %v3957
        %v3959 = vpop.f32.mrb[0].mxu0
        %v3960 = vadd.f32 0.0, %v3959
        %v3961 = vpop.f32.mrb[0].mxu0
        %v3962 = vadd.f32 0.0, %v3961
        %v3963 = vpop.f32.mrb[0].mxu0
        %v3964 = vadd.f32 0.0, %v3963
        %3965 = vmatprep.mubr.bf16.mxu0 0
        %3966 = vmatmul.mubr.bf16.gmra.mrb[0].mxu0 %v3761
        %v3967 = vpop.f32.mrb[0].mxu0
        %v3968 = vadd.f32 0.0, %v3967
        %v3969 = vpop.f32.mrb[0].mxu0
        %v3970 = vadd.f32 0.0, %v3969
        %v3971 = vpop.f32.mrb[0].mxu0
        %v3972 = vadd.f32 0.0, %v3971
        %v3973 = vpop.f32.mrb[0].mxu0
        %v3974 = vadd.f32 0.0, %v3973
        %3975 = vmatprep.mubr.bf16.mxu0 0
        %3976 = vmatmul.mubr.bf16.gmra.mrb[0].mxu0 %v3764
        %v3977 = vpop.f32.mrb[0].mxu0
        %v3978 = vadd.f32 0.0, %v3977
        %v3979 = vpop.f32.mrb[0].mxu0
        %v3980 = vadd.f32 0.0, %v3979
        %v3981 = vpop.f32.mrb[0].mxu0
        %v3982 = vadd.f32 0.0, %v3981
        %v3983 = vpop.f32.mrb[0].mxu0
        %v3984 = vadd.f32 0.0, %v3983
        %3985 = vmatprep.mubr.bf16.mxu0 0
        %3986 = vmatmul.mubr.bf16.gmra.mrb[0].mxu0 %v3767
        %v3987 = vpop.f32.mrb[0].mxu0
        %v3988 = vadd.f32 0.0, %v3987
        %v3989 = vpop.f32.mrb[0].mxu0
        %v3990 = vadd.f32 0.0, %v3989
        %v3991 = vpop.f32.mrb[0].mxu0
        %v3992 = vadd.f32 0.0, %v3991
        %v3993 = vpop.f32.mrb[0].mxu0
        %v3994 = vadd.f32 0.0, %v3993
        %3995 = vmatprep.mubr.bf16.mxu0 0
        %3996 = vmatmul.mubr.bf16.gmra.mrb[0].mxu0 %v3770
        %v3997 = vpop.f32.mrb[0].mxu0
        %v3998 = vadd.f32 0.0, %v3997
        %v3999 = vpop.f32.mrb[0].mxu0
        %v4000 = vadd.f32 0.0, %v3999
        %v4001 = vpop.f32.mrb[0].mxu0
        %v4002 = vadd.f32 0.0, %v4001
        %v4003 = vpop.f32.mrb[0].mxu0
        %v4004 = vadd.f32 0.0, %v4003
        %4005 = vmatprep.mubr.bf16.mxu0 0
        %4006 = vmatmul.mubr.bf16.gmra.mrb[0].mxu0 %v3773
        %v4007 = vpop.f32.mrb[0].mxu0
        %v4008 = vadd.f32 0.0, %v4007
        %v4009 = vpop.f32.mrb[0].mxu0
        %v4010 = vadd.f32 0.0, %v4009
        %v4011 = vpop.f32.mrb[0].mxu0
        %v4012 = vadd.f32 0.0, %v4011
        %v4013 = vpop.f32.mrb[0].mxu0
        %v4014 = vadd.f32 0.0, %v4013
        %4015 = vdwg.mxu0
        %v4016 = vmax.f32 %v3858, %v3860
        %4017 = vmax.xlane.f32.xlu0 %v4016
        %v4018 = vpop.xlane.xlu0 %4017
        %v4019 = vmax.f32 %v3862, %v3864
        %4020 = vmax.xlane.f32.xlu0 %v4019
        %v4021 = vpop.xlane.xlu0 %4020
        %v4022 = vmax.f32 %v3868, %v3870
        %4023 = vmax.xlane.f32.xlu0 %v4022
        %v4024 = vpop.xlane.xlu0 %4023
        %v4025 = vmax.f32 %v3872, %v3874
        %4026 = vmax.xlane.f32.xlu0 %v4025
        %v4027 = vpop.xlane.xlu0 %4026
        %v4028 = vmax.f32 %v3878, %v3880
        %4029 = vmax.xlane.f32.xlu0 %v4028
        %v4030 = vpop.xlane.xlu0 %4029
        %v4031 = vmax.f32 %v3882, %v3884
        %4032 = vmax.xlane.f32.xlu0 %v4031
        %v4033 = vpop.xlane.xlu0 %4032
        %v4034 = vmax.f32 %v3888, %v3890
        %4035 = vmax.xlane.f32.xlu0 %v4034
        %v4036 = vpop.xlane.xlu0 %4035
        %v4037 = vmax.f32 %v3892, %v3894
        %4038 = vmax.xlane.f32.xlu0 %v4037
        %v4039 = vpop.xlane.xlu0 %4038
        %v4040 = vmax.f32 %v3898, %v3900
        %4041 = vmax.xlane.f32.xlu0 %v4040
        %v4042 = vpop.xlane.xlu0 %4041
        %v4043 = vmax.f32 %v3902, %v3904
        %4044 = vmax.xlane.f32.xlu0 %v4043
        %v4045 = vpop.xlane.xlu0 %4044
        %v4046 = vmax.f32 %v3908, %v3910
        %4047 = vmax.xlane.f32.xlu0 %v4046
        %v4048 = vpop.xlane.xlu0 %4047
        %v4049 = vmax.f32 %v3912, %v3914
        %4050 = vmax.xlane.f32.xlu0 %v4049
        %v4051 = vpop.xlane.xlu0 %4050
        %v4052 = vmax.f32 %v3918, %v3920
        %4053 = vmax.xlane.f32.xlu0 %v4052
        %v4054 = vpop.xlane.xlu0 %4053
        %v4055 = vmax.f32 %v3922, %v3924
        %4056 = vmax.xlane.f32.xlu0 %v4055
        %v4057 = vpop.xlane.xlu0 %4056
        %v4058 = vmax.f32 %v3928, %v3930
        %4059 = vmax.xlane.f32.xlu0 %v4058
        %v4060 = vpop.xlane.xlu0 %4059
        %v4061 = vmax.f32 %v3932, %v3934
        %4062 = vmax.xlane.f32.xlu0 %v4061
        %v4063 = vpop.xlane.xlu0 %4062
        %v4064 = vmax.f32 %v3938, %v3940
        %4065 = vmax.xlane.f32.xlu0 %v4064
        %v4066 = vpop.xlane.xlu0 %4065
        %v4067 = vmax.f32 %v3942, %v3944
        %4068 = vmax.xlane.f32.xlu0 %v4067
        %v4069 = vpop.xlane.xlu0 %4068
        %v4070 = vmax.f32 %v3948, %v3950
        %4071 = vmax.xlane.f32.xlu0 %v4070
        %v4072 = vpop.xlane.xlu0 %4071
        %v4073 = vmax.f32 %v3952, %v3954
        %4074 = vmax.xlane.f32.xlu0 %v4073
        %v4075 = vpop.xlane.xlu0 %4074
        %v4076 = vmax.f32 %v3958, %v3960
        %4077 = vmax.xlane.f32.xlu0 %v4076
        %v4078 = vpop.xlane.xlu0 %4077
        %v4079 = vmax.f32 %v3962, %v3964
        %4080 = vmax.xlane.f32.xlu0 %v4079
        %v4081 = vpop.xlane.xlu0 %4080
        %v4082 = vmax.f32 %v3968, %v3970
        %4083 = vmax.xlane.f32.xlu0 %v4082
        %v4084 = vpop.xlane.xlu0 %4083
        %v4085 = vmax.f32 %v3972, %v3974
        %4086 = vmax.xlane.f32.xlu0 %v4085
        %v4087 = vpop.xlane.xlu0 %4086
        %v4088 = vmax.f32 %v3978, %v3980
        %4089 = vmax.xlane.f32.xlu0 %v4088
        %v4090 = vpop.xlane.xlu0 %4089
        %v4091 = vmax.f32 %v3982, %v3984
        %4092 = vmax.xlane.f32.xlu0 %v4091
        %v4093 = vpop.xlane.xlu0 %4092
        %v4094 = vmax.f32 %v3988, %v3990
        %4095 = vmax.xlane.f32.xlu0 %v4094
        %v4096 = vpop.xlane.xlu0 %4095
        %v4097 = vmax.f32 %v3992, %v3994
        %4098 = vmax.xlane.f32.xlu0 %v4097
        %v4099 = vpop.xlane.xlu0 %4098
        %v4100 = vmax.f32 %v3998, %v4000
        %4101 = vmax.xlane.f32.xlu0 %v4100
        %v4102 = vpop.xlane.xlu0 %4101
        %v4103 = vmax.f32 %v4002, %v4004
        %4104 = vmax.xlane.f32.xlu0 %v4103
        %v4105 = vpop.xlane.xlu0 %4104
        %v4106 = vmax.f32 %v4008, %v4010
        %4107 = vmax.xlane.f32.xlu0 %v4106
        %v4108 = vpop.xlane.xlu0 %4107
        %v4109 = vmax.f32 %v4012, %v4014
        %4110 = vmax.xlane.f32.xlu0 %v4109
        %v4111 = vpop.xlane.xlu0 %4110
        %v4112 = vsub.f32 %v3858, %v4018
        %v4113 = vsub.f32 %v3860, %v4018
        %v4114 = vsub.f32 %v3862, %v4021
        %v4115 = vsub.f32 %v3864, %v4021
        %v4116 = vsub.f32 %v3868, %v4024
        %v4117 = vsub.f32 %v3870, %v4024
        %v4118 = vsub.f32 %v3872, %v4027
        %v4119 = vsub.f32 %v3874, %v4027
        %v4120 = vsub.f32 %v3878, %v4030
        %v4121 = vsub.f32 %v3880, %v4030
        %v4122 = vsub.f32 %v3882, %v4033
        %v4123 = vsub.f32 %v3884, %v4033
        %v4124 = vsub.f32 %v3888, %v4036
        %v4125 = vsub.f32 %v3890, %v4036
        %v4126 = vsub.f32 %v3892, %v4039
        %v4127 = vsub.f32 %v3894, %v4039
        %v4128 = vsub.f32 %v3898, %v4042
        %v4129 = vsub.f32 %v3900, %v4042
        %v4130 = vsub.f32 %v3902, %v4045
        %v4131 = vsub.f32 %v3904, %v4045
        %v4132 = vsub.f32 %v3908, %v4048
        %v4133 = vsub.f32 %v3910, %v4048
        %v4134 = vsub.f32 %v3912, %v4051
        %v4135 = vsub.f32 %v3914, %v4051
        %v4136 = vsub.f32 %v3918, %v4054
        %v4137 = vsub.f32 %v3920, %v4054
        %v4138 = vsub.f32 %v3922, %v4057
        %v4139 = vsub.f32 %v3924, %v4057
        %v4140 = vsub.f32 %v3928, %v4060
        %v4141 = vsub.f32 %v3930, %v4060
        %v4142 = vsub.f32 %v3932, %v4063
        %v4143 = vsub.f32 %v3934, %v4063
        %v4144 = vsub.f32 %v3938, %v4066
        %v4145 = vsub.f32 %v3940, %v4066
        %v4146 = vsub.f32 %v3942, %v4069
        %v4147 = vsub.f32 %v3944, %v4069
        %v4148 = vsub.f32 %v3948, %v4072
        %v4149 = vsub.f32 %v3950, %v4072
        %v4150 = vsub.f32 %v3952, %v4075
        %v4151 = vsub.f32 %v3954, %v4075
        %v4152 = vsub.f32 %v3958, %v4078
        %v4153 = vsub.f32 %v3960, %v4078
        %v4154 = vsub.f32 %v3962, %v4081
        %v4155 = vsub.f32 %v3964, %v4081
        %v4156 = vsub.f32 %v3968, %v4084
        %v4157 = vsub.f32 %v3970, %v4084
        %v4158 = vsub.f32 %v3972, %v4087
        %v4159 = vsub.f32 %v3974, %v4087
        %v4160 = vsub.f32 %v3978, %v4090
        %v4161 = vsub.f32 %v3980, %v4090
        %v4162 = vsub.f32 %v3982, %v4093
        %v4163 = vsub.f32 %v3984, %v4093
        %v4164 = vsub.f32 %v3988, %v4096
        %v4165 = vsub.f32 %v3990, %v4096
        %v4166 = vsub.f32 %v3992, %v4099
        %v4167 = vsub.f32 %v3994, %v4099
        %v4168 = vsub.f32 %v3998, %v4102
        %v4169 = vsub.f32 %v4000, %v4102
        %v4170 = vsub.f32 %v4002, %v4105
        %v4171 = vsub.f32 %v4004, %v4105
        %v4172 = vsub.f32 %v4008, %v4108
        %v4173 = vsub.f32 %v4010, %v4108
        %v4174 = vsub.f32 %v4012, %v4111
        %v4175 = vsub.f32 %v4014, %v4111
        %v4176 = vmul.f32 %v4112, 1.442695
        %v4177 = vpow.pop %v4176
        %v4178 = vmul.f32 %v4113, 1.442695
        %v4179 = vpow.pop %v4178
        %v4180 = vmul.f32 %v4114, 1.442695
        %v4181 = vpow.pop %v4180
        %v4182 = vmul.f32 %v4115, 1.442695
        %v4183 = vpow.pop %v4182
        %v4184 = vmul.f32 %v4116, 1.442695
        %v4185 = vpow.pop %v4184
        %v4186 = vmul.f32 %v4117, 1.442695
        %v4187 = vpow.pop %v4186
        %v4188 = vmul.f32 %v4118, 1.442695
        %v4189 = vpow.pop %v4188
        %v4190 = vmul.f32 %v4119, 1.442695
        %v4191 = vpow.pop %v4190
        %v4192 = vmul.f32 %v4120, 1.442695
        %v4193 = vpow.pop %v4192
        %v4194 = vmul.f32 %v4121, 1.442695
        %v4195 = vpow.pop %v4194
        %v4196 = vmul.f32 %v4122, 1.442695
        %v4197 = vpow.pop %v4196
        %v4198 = vmul.f32 %v4123, 1.442695
        %v4199 = vpow.pop %v4198
        %v4200 = vmul.f32 %v4124, 1.442695
        %v4201 = vpow.pop %v4200
        %v4202 = vmul.f32 %v4125, 1.442695
        %v4203 = vpow.pop %v4202
        %v4204 = vmul.f32 %v4126, 1.442695
        %v4205 = vpow.pop %v4204
        %v4206 = vmul.f32 %v4127, 1.442695
        %v4207 = vpow.pop %v4206
        %v4208 = vmul.f32 %v4128, 1.442695
        %v4209 = vpow.pop %v4208
        %v4210 = vmul.f32 %v4129, 1.442695
        %v4211 = vpow.pop %v4210
        %v4212 = vmul.f32 %v4130, 1.442695
        %v4213 = vpow.pop %v4212
        %v4214 = vmul.f32 %v4131, 1.442695
        %v4215 = vpow.pop %v4214
        %v4216 = vmul.f32 %v4132, 1.442695
        %v4217 = vpow.pop %v4216
        %v4218 = vmul.f32 %v4133, 1.442695
        %v4219 = vpow.pop %v4218
        %v4220 = vmul.f32 %v4134, 1.442695
        %v4221 = vpow.pop %v4220
        %v4222 = vmul.f32 %v4135, 1.442695
        %v4223 = vpow.pop %v4222
        %v4224 = vmul.f32 %v4136, 1.442695
        %v4225 = vpow.pop %v4224
        %v4226 = vmul.f32 %v4137, 1.442695
        %v4227 = vpow.pop %v4226
        %v4228 = vmul.f32 %v4138, 1.442695
        %v4229 = vpow.pop %v4228
        %v4230 = vmul.f32 %v4139, 1.442695
        %v4231 = vpow.pop %v4230
        %v4232 = vmul.f32 %v4140, 1.442695
        %v4233 = vpow.pop %v4232
        %v4234 = vmul.f32 %v4141, 1.442695
        %v4235 = vpow.pop %v4234
        %v4236 = vmul.f32 %v4142, 1.442695
        %v4237 = vpow.pop %v4236
        %v4238 = vmul.f32 %v4143, 1.442695
        %v4239 = vpow.pop %v4238
        %v4240 = vmul.f32 %v4144, 1.442695
        %v4241 = vpow.pop %v4240
        %v4242 = vmul.f32 %v4145, 1.442695
        %v4243 = vpow.pop %v4242
        %v4244 = vmul.f32 %v4146, 1.442695
        %v4245 = vpow.pop %v4244
        %v4246 = vmul.f32 %v4147, 1.442695
        %v4247 = vpow.pop %v4246
        %v4248 = vmul.f32 %v4148, 1.442695
        %v4249 = vpow.pop %v4248
        %v4250 = vmul.f32 %v4149, 1.442695
        %v4251 = vpow.pop %v4250
        %v4252 = vmul.f32 %v4150, 1.442695
        %v4253 = vpow.pop %v4252
        %v4254 = vmul.f32 %v4151, 1.442695
        %v4255 = vpow.pop %v4254
        %v4256 = vmul.f32 %v4152, 1.442695
        %v4257 = vpow.pop %v4256
        %v4258 = vmul.f32 %v4153, 1.442695
        %v4259 = vpow.pop %v4258
        %v4260 = vmul.f32 %v4154, 1.442695
        %v4261 = vpow.pop %v4260
        %v4262 = vmul.f32 %v4155, 1.442695
        %v4263 = vpow.pop %v4262
        %v4264 = vmul.f32 %v4156, 1.442695
        %v4265 = vpow.pop %v4264
        %v4266 = vmul.f32 %v4157, 1.442695
        %v4267 = vpow.pop %v4266
        %v4268 = vmul.f32 %v4158, 1.442695
        %v4269 = vpow.pop %v4268
        %v4270 = vmul.f32 %v4159, 1.442695
        %v4271 = vpow.pop %v4270
        %v4272 = vmul.f32 %v4160, 1.442695
        %v4273 = vpow.pop %v4272
        %v4274 = vmul.f32 %v4161, 1.442695
        %v4275 = vpow.pop %v4274
        %v4276 = vmul.f32 %v4162, 1.442695
        %v4277 = vpow.pop %v4276
        %v4278 = vmul.f32 %v4163, 1.442695
        %v4279 = vpow.pop %v4278
        %v4280 = vmul.f32 %v4164, 1.442695
        %v4281 = vpow.pop %v4280
        %v4282 = vmul.f32 %v4165, 1.442695
        %v4283 = vpow.pop %v4282
        %v4284 = vmul.f32 %v4166, 1.442695
        %v4285 = vpow.pop %v4284
        %v4286 = vmul.f32 %v4167, 1.442695
        %v4287 = vpow.pop %v4286
        %v4288 = vmul.f32 %v4168, 1.442695
        %v4289 = vpow.pop %v4288
        %v4290 = vmul.f32 %v4169, 1.442695
        %v4291 = vpow.pop %v4290
        %v4292 = vmul.f32 %v4170, 1.442695
        %v4293 = vpow.pop %v4292
        %v4294 = vmul.f32 %v4171, 1.442695
        %v4295 = vpow.pop %v4294
        %v4296 = vmul.f32 %v4172, 1.442695
        %v4297 = vpow.pop %v4296
        %v4298 = vmul.f32 %v4173, 1.442695
        %v4299 = vpow.pop %v4298
        %v4300 = vmul.f32 %v4174, 1.442695
        %v4301 = vpow.pop %v4300
        %v4302 = vmul.f32 %v4175, 1.442695
        %v4303 = vpow.pop %v4302
        %v4304 = vadd.f32 %v4177, %v4179
        %4305 = vadd.xlane.f32.xlu0 %v4304
        %v4306 = vpop.xlane.xlu0 %4305
        %v4307 = vadd.f32 %v4181, %v4183
        %4308 = vadd.xlane.f32.xlu0 %v4307
        %v4309 = vpop.xlane.xlu0 %4308
        %v4310 = vadd.f32 %v4185, %v4187
        %4311 = vadd.xlane.f32.xlu0 %v4310
        %v4312 = vpop.xlane.xlu0 %4311
        %v4313 = vadd.f32 %v4189, %v4191
        %4314 = vadd.xlane.f32.xlu0 %v4313
        %v4315 = vpop.xlane.xlu0 %4314
        %v4316 = vadd.f32 %v4193, %v4195
        %4317 = vadd.xlane.f32.xlu0 %v4316
        %v4318 = vpop.xlane.xlu0 %4317
        %v4319 = vadd.f32 %v4197, %v4199
        %4320 = vadd.xlane.f32.xlu0 %v4319
        %v4321 = vpop.xlane.xlu0 %4320
        %v4322 = vadd.f32 %v4201, %v4203
        %4323 = vadd.xlane.f32.xlu0 %v4322
        %v4324 = vpop.xlane.xlu0 %4323
        %v4325 = vadd.f32 %v4205, %v4207
        %4326 = vadd.xlane.f32.xlu0 %v4325
        %v4327 = vpop.xlane.xlu0 %4326
        %v4328 = vadd.f32 %v4209, %v4211
        %4329 = vadd.xlane.f32.xlu0 %v4328
        %v4330 = vpop.xlane.xlu0 %4329
        %v4331 = vadd.f32 %v4213, %v4215
        %4332 = vadd.xlane.f32.xlu0 %v4331
        %v4333 = vpop.xlane.xlu0 %4332
        %v4334 = vadd.f32 %v4217, %v4219
        %4335 = vadd.xlane.f32.xlu0 %v4334
        %v4336 = vpop.xlane.xlu0 %4335
        %v4337 = vadd.f32 %v4221, %v4223
        %4338 = vadd.xlane.f32.xlu0 %v4337
        %v4339 = vpop.xlane.xlu0 %4338
        %v4340 = vadd.f32 %v4225, %v4227
        %4341 = vadd.xlane.f32.xlu0 %v4340
        %v4342 = vpop.xlane.xlu0 %4341
        %v4343 = vadd.f32 %v4229, %v4231
        %4344 = vadd.xlane.f32.xlu0 %v4343
        %v4345 = vpop.xlane.xlu0 %4344
        %v4346 = vadd.f32 %v4233, %v4235
        %4347 = vadd.xlane.f32.xlu0 %v4346
        %v4348 = vpop.xlane.xlu0 %4347
        %v4349 = vadd.f32 %v4237, %v4239
        %4350 = vadd.xlane.f32.xlu0 %v4349
        %v4351 = vpop.xlane.xlu0 %4350
        %v4352 = vadd.f32 %v4241, %v4243
        %4353 = vadd.xlane.f32.xlu0 %v4352
        %v4354 = vpop.xlane.xlu0 %4353
        %v4355 = vadd.f32 %v4245, %v4247
        %4356 = vadd.xlane.f32.xlu0 %v4355
        %v4357 = vpop.xlane.xlu0 %4356
        %v4358 = vadd.f32 %v4249, %v4251
        %4359 = vadd.xlane.f32.xlu0 %v4358
        %v4360 = vpop.xlane.xlu0 %4359
        %v4361 = vadd.f32 %v4253, %v4255
        %4362 = vadd.xlane.f32.xlu0 %v4361
        %v4363 = vpop.xlane.xlu0 %4362
        %v4364 = vadd.f32 %v4257, %v4259
        %4365 = vadd.xlane.f32.xlu0 %v4364
        %v4366 = vpop.xlane.xlu0 %4365
        %v4367 = vadd.f32 %v4261, %v4263
        %4368 = vadd.xlane.f32.xlu0 %v4367
        %v4369 = vpop.xlane.xlu0 %4368
        %v4370 = vadd.f32 %v4265, %v4267
        %4371 = vadd.xlane.f32.xlu0 %v4370
        %v4372 = vpop.xlane.xlu0 %4371
        %v4373 = vadd.f32 %v4269, %v4271
        %4374 = vadd.xlane.f32.xlu0 %v4373
        %v4375 = vpop.xlane.xlu0 %4374
        %v4376 = vadd.f32 %v4273, %v4275
        %4377 = vadd.xlane.f32.xlu0 %v4376
        %v4378 = vpop.xlane.xlu0 %4377
        %v4379 = vadd.f32 %v4277, %v4279
        %4380 = vadd.xlane.f32.xlu0 %v4379
        %v4381 = vpop.xlane.xlu0 %4380
        %v4382 = vadd.f32 %v4281, %v4283
        %4383 = vadd.xlane.f32.xlu0 %v4382
        %v4384 = vpop.xlane.xlu0 %4383
        %v4385 = vadd.f32 %v4285, %v4287
        %4386 = vadd.xlane.f32.xlu0 %v4385
        %v4387 = vpop.xlane.xlu0 %4386
        %v4388 = vadd.f32 %v4289, %v4291
        %4389 = vadd.xlane.f32.xlu0 %v4388
        %v4390 = vpop.xlane.xlu0 %4389
        %v4391 = vadd.f32 %v4293, %v4295
        %4392 = vadd.xlane.f32.xlu0 %v4391
        %v4393 = vpop.xlane.xlu0 %4392
        %v4394 = vadd.f32 %v4297, %v4299
        %4395 = vadd.xlane.f32.xlu0 %v4394
        %v4396 = vpop.xlane.xlu0 %4395
        %v4397 = vadd.f32 %v4301, %v4303
        %4398 = vadd.xlane.f32.xlu0 %v4397
        %v4399 = vpop.xlane.xlu0 %4398
        %v4400 = vrcp.pop %v4306
        %v4401 = vrcp.pop %v4309
        %v4402 = vrcp.pop %v4312
        %v4403 = vrcp.pop %v4315
        %v4404 = vrcp.pop %v4318
        %v4405 = vrcp.pop %v4321
        %v4406 = vrcp.pop %v4324
        %v4407 = vrcp.pop %v4327
        %v4408 = vrcp.pop %v4330
        %v4409 = vrcp.pop %v4333
        %v4410 = vrcp.pop %v4336
        %v4411 = vrcp.pop %v4339
        %v4412 = vrcp.pop %v4342
        %v4413 = vrcp.pop %v4345
        %v4414 = vrcp.pop %v4348
        %v4415 = vrcp.pop %v4351
        %v4416 = vrcp.pop %v4354
        %v4417 = vrcp.pop %v4357
        %v4418 = vrcp.pop %v4360
        %v4419 = vrcp.pop %v4363
        %v4420 = vrcp.pop %v4366
        %v4421 = vrcp.pop %v4369
        %v4422 = vrcp.pop %v4372
        %v4423 = vrcp.pop %v4375
        %v4424 = vrcp.pop %v4378
        %v4425 = vrcp.pop %v4381
        %v4426 = vrcp.pop %v4384
        %v4427 = vrcp.pop %v4387
        %v4428 = vrcp.pop %v4390
        %v4429 = vrcp.pop %v4393
        %v4430 = vrcp.pop %v4396
        %v4431 = vrcp.pop %v4399
        %v4432 = vmul.f32 %v4177, %v4400
        %v4433 = vmul.f32 %v4179, %v4400
        %v4434 = vmul.f32 %v4181, %v4401
        %v4435 = vmul.f32 %v4183, %v4401
        %v4436 = vmul.f32 %v4185, %v4402
        %v4437 = vmul.f32 %v4187, %v4402
        %v4438 = vmul.f32 %v4189, %v4403
        %v4439 = vmul.f32 %v4191, %v4403
        %v4440 = vmul.f32 %v4193, %v4404
        %v4441 = vmul.f32 %v4195, %v4404
        %v4442 = vmul.f32 %v4197, %v4405
        %v4443 = vmul.f32 %v4199, %v4405
        %v4444 = vmul.f32 %v4201, %v4406
        %v4445 = vmul.f32 %v4203, %v4406
        %v4446 = vmul.f32 %v4205, %v4407
        %v4447 = vmul.f32 %v4207, %v4407
        %v4448 = vmul.f32 %v4209, %v4408
        %v4449 = vmul.f32 %v4211, %v4408
        %v4450 = vmul.f32 %v4213, %v4409
        %v4451 = vmul.f32 %v4215, %v4409
        %v4452 = vmul.f32 %v4217, %v4410
        %v4453 = vmul.f32 %v4219, %v4410
        %v4454 = vmul.f32 %v4221, %v4411
        %v4455 = vmul.f32 %v4223, %v4411
        %v4456 = vmul.f32 %v4225, %v4412
        %v4457 = vmul.f32 %v4227, %v4412
        %v4458 = vmul.f32 %v4229, %v4413
        %v4459 = vmul.f32 %v4231, %v4413
        %v4460 = vmul.f32 %v4233, %v4414
        %v4461 = vmul.f32 %v4235, %v4414
        %v4462 = vmul.f32 %v4237, %v4415
        %v4463 = vmul.f32 %v4239, %v4415
        %v4464 = vmul.f32 %v4241, %v4416
        %v4465 = vmul.f32 %v4243, %v4416
        %v4466 = vmul.f32 %v4245, %v4417
        %v4467 = vmul.f32 %v4247, %v4417
        %v4468 = vmul.f32 %v4249, %v4418
        %v4469 = vmul.f32 %v4251, %v4418
        %v4470 = vmul.f32 %v4253, %v4419
        %v4471 = vmul.f32 %v4255, %v4419
        %v4472 = vmul.f32 %v4257, %v4420
        %v4473 = vmul.f32 %v4259, %v4420
        %v4474 = vmul.f32 %v4261, %v4421
        %v4475 = vmul.f32 %v4263, %v4421
        %v4476 = vmul.f32 %v4265, %v4422
        %v4477 = vmul.f32 %v4267, %v4422
        %v4478 = vmul.f32 %v4269, %v4423
        %v4479 = vmul.f32 %v4271, %v4423
        %v4480 = vmul.f32 %v4273, %v4424
        %v4481 = vmul.f32 %v4275, %v4424
        %v4482 = vmul.f32 %v4277, %v4425
        %v4483 = vmul.f32 %v4279, %v4425
        %v4484 = vmul.f32 %v4281, %v4426
        %v4485 = vmul.f32 %v4283, %v4426
        %v4486 = vmul.f32 %v4285, %v4427
        %v4487 = vmul.f32 %v4287, %v4427
        %v4488 = vmul.f32 %v4289, %v4428
        %v4489 = vmul.f32 %v4291, %v4428
        %v4490 = vmul.f32 %v4293, %v4429
        %v4491 = vmul.f32 %v4295, %v4429
        %v4492 = vmul.f32 %v4297, %v4430
        %v4493 = vmul.f32 %v4299, %v4430
        %v4494 = vmul.f32 %v4301, %v4431
        %v4495 = vmul.f32 %v4303, %v4431
        %v4496 = vpack.c.bf16 %v4434, %v4432
        %v4497 = vpack.c.bf16 %v4435, %v4433
        %v4498 = vpack.c.bf16 %v4438, %v4436
        %v4499 = vpack.c.bf16 %v4439, %v4437
        %v4500 = vpack.c.bf16 %v4442, %v4440
        %v4501 = vpack.c.bf16 %v4443, %v4441
        %v4502 = vpack.c.bf16 %v4446, %v4444
        %v4503 = vpack.c.bf16 %v4447, %v4445
        %v4504 = vpack.c.bf16 %v4450, %v4448
        %v4505 = vpack.c.bf16 %v4451, %v4449
        %v4506 = vpack.c.bf16 %v4454, %v4452
        %v4507 = vpack.c.bf16 %v4455, %v4453
        %v4508 = vpack.c.bf16 %v4458, %v4456
        %v4509 = vpack.c.bf16 %v4459, %v4457
        %v4510 = vpack.c.bf16 %v4462, %v4460
        %v4511 = vpack.c.bf16 %v4463, %v4461
        %v4512 = vpack.c.bf16 %v4466, %v4464
        %v4513 = vpack.c.bf16 %v4467, %v4465
        %v4514 = vpack.c.bf16 %v4470, %v4468
        %v4515 = vpack.c.bf16 %v4471, %v4469
        %v4516 = vpack.c.bf16 %v4474, %v4472
        %v4517 = vpack.c.bf16 %v4475, %v4473
        %v4518 = vpack.c.bf16 %v4478, %v4476
        %v4519 = vpack.c.bf16 %v4479, %v4477
        %v4520 = vpack.c.bf16 %v4482, %v4480
        %v4521 = vpack.c.bf16 %v4483, %v4481
        %v4522 = vpack.c.bf16 %v4486, %v4484
        %v4523 = vpack.c.bf16 %v4487, %v4485
        %v4524 = vpack.c.bf16 %v4490, %v4488
        %v4525 = vpack.c.bf16 %v4491, %v4489
        %v4526 = vpack.c.bf16 %v4494, %v4492
        %v4527 = vpack.c.bf16 %v4495, %v4493
        %s4528 = smul.u32 %s3663, 4
        %s4529 = sadd.s32 %s4528, 16
        %s4530 = smul.addr %s4529, 4
        %s4531 = scalar_lea.vmem %s9, %s4530
        %v4532 = vld [vmem:[%s4531] sm:$0xf]
        %v4533 = vld [vmem:[%s4531 + $0x4] sm:$0xf]
        %v4534 = vld [vmem:[%s4531 + $0x8] sm:$0xf]
        %v4535 = vld [vmem:[%s4531 + $0xc] sm:$0xf]
        %s4536 = sadd.s32 %s3663, 4
        %s4537 = scalar_lea.vmem %s10, %s4536
        %v4538 = vld [vmem:[%s4537] sm:$0x1]
        %v4540 = vlaneseq
        %v4541 = vshrl.u32 %v4540, 7
        %v4542 = vsub.s32 0, %v4541
        %v4543 = vrot.slane %v4538, %v4542
        %v4549 = vunpack.c.l.b16 %v4532
        %v4550 = vunpack.c.l.b16 %v4533
        %v4551 = vunpack.c.l.b16 %v4534
        %v4552 = vunpack.c.l.b16 %v4535
        %v4553 = vpack.c.b16 %v4550, %v4549
        %v4554 = vpack.c.b16 %v4552, %v4551
        %4557 = vmatprep.subr.bf16.mxu0 0
        %4558 = vmatpush1.bf16.msra.mxu0 %v4553
        %4559 = vmatprep.subr.bf16.mxu0 0
        %4560 = vmatpush1.bf16.msra.mxu0 %v4554
        %4561 = vmatprep.subr.bf16.mxu0 0
        %4562 = vmatpush1.bf16.msra.mxu0 0
        %4563 = vmatprep.subr.bf16.mxu0 0
        %4564 = vmatpush1.bf16.msra.mxu0 0
        %4565 = vmatprep.subr.bf16.mxu0 0
        %4566 = vmatpush1.bf16.msra.mxu0 0
        %4567 = vmatprep.subr.bf16.mxu0 0
        %4568 = vmatpush1.bf16.msra.mxu0 0
        %4569 = vmatprep.subr.bf16.mxu0 0
        %4570 = vmatpush1.bf16.msra.mxu0 0
        %4571 = vmatprep.subr.bf16.mxu0 0
        %4572 = vmatpush1.bf16.msra.mxu0 0
        %4573 = vmatprep.subr.bf16.mxu0 0
        %4574 = vmatpush1.bf16.msra.mxu0 0
        %4575 = vmatprep.subr.bf16.mxu0 0
        %4576 = vmatpush1.bf16.msra.mxu0 0
        %4577 = vmatprep.subr.bf16.mxu0 0
        %4578 = vmatpush1.bf16.msra.mxu0 0
        %4579 = vmatprep.subr.bf16.mxu0 0
        %4580 = vmatpush1.bf16.msra.mxu0 0
        %4581 = vmatprep.subr.bf16.mxu0 0
        %4582 = vmatpush1.bf16.msra.mxu0 0
        %4583 = vmatprep.subr.bf16.mxu0 0
        %4584 = vmatpush1.bf16.msra.mxu0 0
        %4585 = vmatprep.subr.bf16.mxu0 0
        %4586 = vmatpush1.bf16.msra.mxu0 0
        %4587 = vmatprep.subr.bf16.mxu0 0
        %4588 = vmatpush1.bf16.msra.mxu0 0
        %4589 = vmatprep.mubr.bf16.mxu0 0
        %4590 = vmatmul.mubr.bf16.gmra.mrb[0].mxu0 %v3236
        %v4591 = vpop.f32.mrb[0].mxu0
        %v4592 = vadd.f32 %v4543, %v4591
        %v4593 = vpop.f32.mrb[0].mxu0
        %v4594 = vpop.f32.mrb[0].mxu0
        %v4595 = vadd.f32 %v4543, %v4594
        %v4596 = vpop.f32.mrb[0].mxu0
        %4597 = vmatprep.mubr.bf16.mxu0 0
        %4598 = vmatmul.mubr.bf16.gmra.mrb[0].mxu0 %v3239
        %v4599 = vpop.f32.mrb[0].mxu0
        %v4600 = vadd.f32 %v4543, %v4599
        %v4601 = vpop.f32.mrb[0].mxu0
        %v4602 = vpop.f32.mrb[0].mxu0
        %v4603 = vadd.f32 %v4543, %v4602
        %v4604 = vpop.f32.mrb[0].mxu0
        %4605 = vmatprep.mubr.bf16.mxu0 0
        %4606 = vmatmul.mubr.bf16.gmra.mrb[0].mxu0 %v3242
        %v4607 = vpop.f32.mrb[0].mxu0
        %v4608 = vadd.f32 %v4543, %v4607
        %v4609 = vpop.f32.mrb[0].mxu0
        %v4610 = vpop.f32.mrb[0].mxu0
        %v4611 = vadd.f32 %v4543, %v4610
        %v4612 = vpop.f32.mrb[0].mxu0
        %4613 = vmatprep.mubr.bf16.mxu0 0
        %4614 = vmatmul.mubr.bf16.gmra.mrb[0].mxu0 %v3245
        %v4615 = vpop.f32.mrb[0].mxu0
        %v4616 = vadd.f32 %v4543, %v4615
        %v4617 = vpop.f32.mrb[0].mxu0
        %v4618 = vpop.f32.mrb[0].mxu0
        %v4619 = vadd.f32 %v4543, %v4618
        %v4620 = vpop.f32.mrb[0].mxu0
        %4621 = vmatprep.mubr.bf16.mxu0 0
        %4622 = vmatmul.mubr.bf16.gmra.mrb[0].mxu0 %v3248
        %v4623 = vpop.f32.mrb[0].mxu0
        %v4624 = vadd.f32 %v4543, %v4623
        %v4625 = vpop.f32.mrb[0].mxu0
        %v4626 = vpop.f32.mrb[0].mxu0
        %v4627 = vadd.f32 %v4543, %v4626
        %v4628 = vpop.f32.mrb[0].mxu0
        %4629 = vmatprep.mubr.bf16.mxu0 0
        %4630 = vmatmul.mubr.bf16.gmra.mrb[0].mxu0 %v3251
        %v4631 = vpop.f32.mrb[0].mxu0
        %v4632 = vadd.f32 %v4543, %v4631
        %v4633 = vpop.f32.mrb[0].mxu0
        %v4634 = vpop.f32.mrb[0].mxu0
        %v4635 = vadd.f32 %v4543, %v4634
        %v4636 = vpop.f32.mrb[0].mxu0
        %4637 = vmatprep.mubr.bf16.mxu0 0
        %4638 = vmatmul.mubr.bf16.gmra.mrb[0].mxu0 %v3254
        %v4639 = vpop.f32.mrb[0].mxu0
        %v4640 = vadd.f32 %v4543, %v4639
        %v4641 = vpop.f32.mrb[0].mxu0
        %v4642 = vpop.f32.mrb[0].mxu0
        %v4643 = vadd.f32 %v4543, %v4642
        %v4644 = vpop.f32.mrb[0].mxu0
        %4645 = vmatprep.mubr.bf16.mxu0 0
        %4646 = vmatmul.mubr.bf16.gmra.mrb[0].mxu0 %v3257
        %v4647 = vpop.f32.mrb[0].mxu0
        %v4648 = vadd.f32 %v4543, %v4647
        %v4649 = vpop.f32.mrb[0].mxu0
        %v4650 = vpop.f32.mrb[0].mxu0
        %v4651 = vadd.f32 %v4543, %v4650
        %v4652 = vpop.f32.mrb[0].mxu0
        %4653 = vmatprep.mubr.bf16.mxu0 0
        %4654 = vmatmul.mubr.bf16.gmra.mrb[0].mxu0 %v3260
        %v4655 = vpop.f32.mrb[0].mxu0
        %v4656 = vadd.f32 %v4543, %v4655
        %v4657 = vpop.f32.mrb[0].mxu0
        %v4658 = vpop.f32.mrb[0].mxu0
        %v4659 = vadd.f32 %v4543, %v4658
        %v4660 = vpop.f32.mrb[0].mxu0
        %4661 = vmatprep.mubr.bf16.mxu0 0
        %4662 = vmatmul.mubr.bf16.gmra.mrb[0].mxu0 %v3263
        %v4663 = vpop.f32.mrb[0].mxu0
        %v4664 = vadd.f32 %v4543, %v4663
        %v4665 = vpop.f32.mrb[0].mxu0
        %v4666 = vpop.f32.mrb[0].mxu0
        %v4667 = vadd.f32 %v4543, %v4666
        %v4668 = vpop.f32.mrb[0].mxu0
        %4669 = vmatprep.mubr.bf16.mxu0 0
        %4670 = vmatmul.mubr.bf16.gmra.mrb[0].mxu0 %v3266
        %v4671 = vpop.f32.mrb[0].mxu0
        %v4672 = vadd.f32 %v4543, %v4671
        %v4673 = vpop.f32.mrb[0].mxu0
        %v4674 = vpop.f32.mrb[0].mxu0
        %v4675 = vadd.f32 %v4543, %v4674
        %v4676 = vpop.f32.mrb[0].mxu0
        %4677 = vmatprep.mubr.bf16.mxu0 0
        %4678 = vmatmul.mubr.bf16.gmra.mrb[0].mxu0 %v3269
        %v4679 = vpop.f32.mrb[0].mxu0
        %v4680 = vadd.f32 %v4543, %v4679
        %v4681 = vpop.f32.mrb[0].mxu0
        %v4682 = vpop.f32.mrb[0].mxu0
        %v4683 = vadd.f32 %v4543, %v4682
        %v4684 = vpop.f32.mrb[0].mxu0
        %4685 = vmatprep.mubr.bf16.mxu0 0
        %4686 = vmatmul.mubr.bf16.gmra.mrb[0].mxu0 %v3272
        %v4687 = vpop.f32.mrb[0].mxu0
        %v4688 = vadd.f32 %v4543, %v4687
        %v4689 = vpop.f32.mrb[0].mxu0
        %v4690 = vpop.f32.mrb[0].mxu0
        %v4691 = vadd.f32 %v4543, %v4690
        %v4692 = vpop.f32.mrb[0].mxu0
        %4693 = vmatprep.mubr.bf16.mxu0 0
        %4694 = vmatmul.mubr.bf16.gmra.mrb[0].mxu0 %v3275
        %v4695 = vpop.f32.mrb[0].mxu0
        %v4696 = vadd.f32 %v4543, %v4695
        %v4697 = vpop.f32.mrb[0].mxu0
        %v4698 = vpop.f32.mrb[0].mxu0
        %v4699 = vadd.f32 %v4543, %v4698
        %v4700 = vpop.f32.mrb[0].mxu0
        %4701 = vmatprep.mubr.bf16.mxu0 0
        %4702 = vmatmul.mubr.bf16.gmra.mrb[0].mxu0 %v3278
        %v4703 = vpop.f32.mrb[0].mxu0
        %v4704 = vadd.f32 %v4543, %v4703
        %v4705 = vpop.f32.mrb[0].mxu0
        %v4706 = vpop.f32.mrb[0].mxu0
        %v4707 = vadd.f32 %v4543, %v4706
        %v4708 = vpop.f32.mrb[0].mxu0
        %4709 = vmatprep.mubr.bf16.mxu0 0
        %4710 = vmatmul.mubr.bf16.gmra.mrb[0].mxu0 %v3281
        %v4711 = vpop.f32.mrb[0].mxu0
        %v4712 = vadd.f32 %v4543, %v4711
        %v4713 = vpop.f32.mrb[0].mxu0
        %v4714 = vpop.f32.mrb[0].mxu0
        %v4715 = vadd.f32 %v4543, %v4714
        %v4716 = vpop.f32.mrb[0].mxu0
        %4717 = vdwg.mxu0
        %v4718 = vpack.c.bf16 %v4595, %v4592
        %v4719 = vpack.c.bf16 %v4603, %v4600
        %v4720 = vpack.c.bf16 %v4611, %v4608
        %v4721 = vpack.c.bf16 %v4619, %v4616
        %v4722 = vpack.c.bf16 %v4627, %v4624
        %v4723 = vpack.c.bf16 %v4635, %v4632
        %v4724 = vpack.c.bf16 %v4643, %v4640
        %v4725 = vpack.c.bf16 %v4651, %v4648
        %v4726 = vpack.c.bf16 %v4659, %v4656
        %v4727 = vpack.c.bf16 %v4667, %v4664
        %v4728 = vpack.c.bf16 %v4675, %v4672
        %v4729 = vpack.c.bf16 %v4683, %v4680
        %v4730 = vpack.c.bf16 %v4691, %v4688
        %v4731 = vpack.c.bf16 %v4699, %v4696
        %v4732 = vpack.c.bf16 %v4707, %v4704
        %v4733 = vpack.c.bf16 %v4715, %v4712
        %4734 = vmatprep.subr.bf16.mxu0 0
        %4735 = vmatpush1.bf16.msra.mxu0 %v4718
        %4736 = vmatprep.subr.bf16.mxu0 0
        %4737 = vmatpush1.bf16.msra.mxu0 %v4719
        %4738 = vmatprep.subr.bf16.mxu0 0
        %4739 = vmatpush1.bf16.msra.mxu0 %v4720
        %4740 = vmatprep.subr.bf16.mxu0 0
        %4741 = vmatpush1.bf16.msra.mxu0 %v4721
        %4742 = vmatprep.subr.bf16.mxu0 0
        %4743 = vmatpush1.bf16.msra.mxu0 %v4722
        %4744 = vmatprep.subr.bf16.mxu0 0
        %4745 = vmatpush1.bf16.msra.mxu0 %v4723
        %4746 = vmatprep.subr.bf16.mxu0 0
        %4747 = vmatpush1.bf16.msra.mxu0 %v4724
        %4748 = vmatprep.subr.bf16.mxu0 0
        %4749 = vmatpush1.bf16.msra.mxu0 %v4725
        %4750 = vmatprep.subr.bf16.mxu0 0
        %4751 = vmatpush1.bf16.msra.mxu0 %v4726
        %4752 = vmatprep.subr.bf16.mxu0 0
        %4753 = vmatpush1.bf16.msra.mxu0 %v4727
        %4754 = vmatprep.subr.bf16.mxu0 0
        %4755 = vmatpush1.bf16.msra.mxu0 %v4728
        %4756 = vmatprep.subr.bf16.mxu0 0
        %4757 = vmatpush1.bf16.msra.mxu0 %v4729
        %4758 = vmatprep.subr.bf16.mxu0 0
        %4759 = vmatpush1.bf16.msra.mxu0 %v4730
        %4760 = vmatprep.subr.bf16.mxu0 0
        %4761 = vmatpush1.bf16.msra.mxu0 %v4731
        %4762 = vmatprep.subr.bf16.mxu0 0
        %4763 = vmatpush1.bf16.msra.mxu0 %v4732
        %4764 = vmatprep.subr.bf16.mxu0 0
        %4765 = vmatpush1.bf16.msra.mxu0 %v4733
        %4766 = vmatprep.mubr.bf16.mxu0 %v4497
        %4767 = vmatmul.mubr.bf16.gmra.mrb[0].mxu0 %v4496
        %v4768 = vpop.f32.mrb[0].mxu0
        %v4769 = vadd.f32 0.0, %v4768
        %v4770 = vpop.f32.mrb[0].mxu0
        %v4771 = vpop.f32.mrb[0].mxu0
        %v4772 = vadd.f32 0.0, %v4771
        %v4773 = vpop.f32.mrb[0].mxu0
        %4774 = vmatprep.mubr.bf16.mxu0 %v4499
        %4775 = vmatmul.mubr.bf16.gmra.mrb[0].mxu0 %v4498
        %v4776 = vpop.f32.mrb[0].mxu0
        %v4777 = vadd.f32 0.0, %v4776
        %v4778 = vpop.f32.mrb[0].mxu0
        %v4779 = vpop.f32.mrb[0].mxu0
        %v4780 = vadd.f32 0.0, %v4779
        %v4781 = vpop.f32.mrb[0].mxu0
        %4782 = vmatprep.mubr.bf16.mxu0 %v4501
        %4783 = vmatmul.mubr.bf16.gmra.mrb[0].mxu0 %v4500
        %v4784 = vpop.f32.mrb[0].mxu0
        %v4785 = vadd.f32 0.0, %v4784
        %v4786 = vpop.f32.mrb[0].mxu0
        %v4787 = vpop.f32.mrb[0].mxu0
        %v4788 = vadd.f32 0.0, %v4787
        %v4789 = vpop.f32.mrb[0].mxu0
        %4790 = vmatprep.mubr.bf16.mxu0 %v4503
        %4791 = vmatmul.mubr.bf16.gmra.mrb[0].mxu0 %v4502
        %v4792 = vpop.f32.mrb[0].mxu0
        %v4793 = vadd.f32 0.0, %v4792
        %v4794 = vpop.f32.mrb[0].mxu0
        %v4795 = vpop.f32.mrb[0].mxu0
        %v4796 = vadd.f32 0.0, %v4795
        %v4797 = vpop.f32.mrb[0].mxu0
        %4798 = vmatprep.mubr.bf16.mxu0 %v4505
        %4799 = vmatmul.mubr.bf16.gmra.mrb[0].mxu0 %v4504
        %v4800 = vpop.f32.mrb[0].mxu0
        %v4801 = vadd.f32 0.0, %v4800
        %v4802 = vpop.f32.mrb[0].mxu0
        %v4803 = vpop.f32.mrb[0].mxu0
        %v4804 = vadd.f32 0.0, %v4803
        %v4805 = vpop.f32.mrb[0].mxu0
        %4806 = vmatprep.mubr.bf16.mxu0 %v4507
        %4807 = vmatmul.mubr.bf16.gmra.mrb[0].mxu0 %v4506
        %v4808 = vpop.f32.mrb[0].mxu0
        %v4809 = vadd.f32 0.0, %v4808
        %v4810 = vpop.f32.mrb[0].mxu0
        %v4811 = vpop.f32.mrb[0].mxu0
        %v4812 = vadd.f32 0.0, %v4811
        %v4813 = vpop.f32.mrb[0].mxu0
        %4814 = vmatprep.mubr.bf16.mxu0 %v4509
        %4815 = vmatmul.mubr.bf16.gmra.mrb[0].mxu0 %v4508
        %v4816 = vpop.f32.mrb[0].mxu0
        %v4817 = vadd.f32 0.0, %v4816
        %v4818 = vpop.f32.mrb[0].mxu0
        %v4819 = vpop.f32.mrb[0].mxu0
        %v4820 = vadd.f32 0.0, %v4819
        %v4821 = vpop.f32.mrb[0].mxu0
        %4822 = vmatprep.mubr.bf16.mxu0 %v4511
        %4823 = vmatmul.mubr.bf16.gmra.mrb[0].mxu0 %v4510
        %v4824 = vpop.f32.mrb[0].mxu0
        %v4825 = vadd.f32 0.0, %v4824
        %v4826 = vpop.f32.mrb[0].mxu0
        %v4827 = vpop.f32.mrb[0].mxu0
        %v4828 = vadd.f32 0.0, %v4827
        %v4829 = vpop.f32.mrb[0].mxu0
        %4830 = vmatprep.mubr.bf16.mxu0 %v4513
        %4831 = vmatmul.mubr.bf16.gmra.mrb[0].mxu0 %v4512
        %v4832 = vpop.f32.mrb[0].mxu0
        %v4833 = vadd.f32 0.0, %v4832
        %v4834 = vpop.f32.mrb[0].mxu0
        %v4835 = vpop.f32.mrb[0].mxu0
        %v4836 = vadd.f32 0.0, %v4835
        %v4837 = vpop.f32.mrb[0].mxu0
        %4838 = vmatprep.mubr.bf16.mxu0 %v4515
        %4839 = vmatmul.mubr.bf16.gmra.mrb[0].mxu0 %v4514
        %v4840 = vpop.f32.mrb[0].mxu0
        %v4841 = vadd.f32 0.0, %v4840
        %v4842 = vpop.f32.mrb[0].mxu0
        %v4843 = vpop.f32.mrb[0].mxu0
        %v4844 = vadd.f32 0.0, %v4843
        %v4845 = vpop.f32.mrb[0].mxu0
        %4846 = vmatprep.mubr.bf16.mxu0 %v4517
        %4847 = vmatmul.mubr.bf16.gmra.mrb[0].mxu0 %v4516
        %v4848 = vpop.f32.mrb[0].mxu0
        %v4849 = vadd.f32 0.0, %v4848
        %v4850 = vpop.f32.mrb[0].mxu0
        %v4851 = vpop.f32.mrb[0].mxu0
        %v4852 = vadd.f32 0.0, %v4851
        %v4853 = vpop.f32.mrb[0].mxu0
        %4854 = vmatprep.mubr.bf16.mxu0 %v4519
        %4855 = vmatmul.mubr.bf16.gmra.mrb[0].mxu0 %v4518
        %v4856 = vpop.f32.mrb[0].mxu0
        %v4857 = vadd.f32 0.0, %v4856
        %v4858 = vpop.f32.mrb[0].mxu0
        %v4859 = vpop.f32.mrb[0].mxu0
        %v4860 = vadd.f32 0.0, %v4859
        %v4861 = vpop.f32.mrb[0].mxu0
        %4862 = vmatprep.mubr.bf16.mxu0 %v4521
        %4863 = vmatmul.mubr.bf16.gmra.mrb[0].mxu0 %v4520
        %v4864 = vpop.f32.mrb[0].mxu0
        %v4865 = vadd.f32 0.0, %v4864
        %v4866 = vpop.f32.mrb[0].mxu0
        %v4867 = vpop.f32.mrb[0].mxu0
        %v4868 = vadd.f32 0.0, %v4867
        %v4869 = vpop.f32.mrb[0].mxu0
        %4870 = vmatprep.mubr.bf16.mxu0 %v4523
        %4871 = vmatmul.mubr.bf16.gmra.mrb[0].mxu0 %v4522
        %v4872 = vpop.f32.mrb[0].mxu0
        %v4873 = vadd.f32 0.0, %v4872
        %v4874 = vpop.f32.mrb[0].mxu0
        %v4875 = vpop.f32.mrb[0].mxu0
        %v4876 = vadd.f32 0.0, %v4875
        %v4877 = vpop.f32.mrb[0].mxu0
        %4878 = vmatprep.mubr.bf16.mxu0 %v4525
        %4879 = vmatmul.mubr.bf16.gmra.mrb[0].mxu0 %v4524
        %v4880 = vpop.f32.mrb[0].mxu0
        %v4881 = vadd.f32 0.0, %v4880
        %v4882 = vpop.f32.mrb[0].mxu0
        %v4883 = vpop.f32.mrb[0].mxu0
        %v4884 = vadd.f32 0.0, %v4883
        %v4885 = vpop.f32.mrb[0].mxu0
        %4886 = vmatprep.mubr.bf16.mxu0 %v4527
        %4887 = vmatmul.mubr.bf16.gmra.mrb[0].mxu0 %v4526
        %v4888 = vpop.f32.mrb[0].mxu0
        %v4889 = vadd.f32 0.0, %v4888
        %v4890 = vpop.f32.mrb[0].mxu0
        %v4891 = vpop.f32.mrb[0].mxu0
        %v4892 = vadd.f32 0.0, %v4891
        %v4893 = vpop.f32.mrb[0].mxu0
        %4894 = vdwg.mxu0
        %v4895 = vadd.f32 %v3668, %v4769
        %v4896 = vadd.f32 %v3669, %v4772
        %v4897 = vadd.f32 %v3670, %v4777
        %v4898 = vadd.f32 %v3671, %v4780
        %v4899 = vadd.f32 %v3672, %v4785
        %v4900 = vadd.f32 %v3673, %v4788
        %v4901 = vadd.f32 %v3674, %v4793
        %v4902 = vadd.f32 %v3675, %v4796
        %v4903 = vadd.f32 %v3676, %v4801
        %v4904 = vadd.f32 %v3677, %v4804
        %v4905 = vadd.f32 %v3678, %v4809
        %v4906 = vadd.f32 %v3679, %v4812
        %v4907 = vadd.f32 %v3680, %v4817
        %v4908 = vadd.f32 %v3681, %v4820
        %v4909 = vadd.f32 %v3682, %v4825
        %v4910 = vadd.f32 %v3683, %v4828
        %v4911 = vadd.f32 %v3684, %v4833
        %v4912 = vadd.f32 %v3685, %v4836
        %v4913 = vadd.f32 %v3686, %v4841
        %v4914 = vadd.f32 %v3687, %v4844
        %v4915 = vadd.f32 %v3688, %v4849
        %v4916 = vadd.f32 %v3689, %v4852
        %v4917 = vadd.f32 %v3690, %v4857
        %v4918 = vadd.f32 %v3691, %v4860
        %v4919 = vadd.f32 %v3692, %v4865
        %v4920 = vadd.f32 %v3693, %v4868
        %v4921 = vadd.f32 %v3694, %v4873
        %v4922 = vadd.f32 %v3695, %v4876
        %v4923 = vadd.f32 %v3696, %v4881
        %v4924 = vadd.f32 %v3697, %v4884
        %v4925 = vadd.f32 %v3698, %v4889
        %v4926 = vadd.f32 %v3699, %v4892
      $region84: #{tpu_custom_call.1} parent=71 // loop_footer
        %s3667 = sadd.s32 1, %s3663
      $region85: #{tpu_custom_call.1} parent=71 // loop_footer_branch
        %3662 = sbr.rel target = $region81
      $region86: #{tpu_custom_call.1} parent=71 // loop_exit
        _
      %s4927 = scalar_lea.vmem %s11, 1
      %v4928 = vld [vmem:[%s4927] sm:$0x1]
      %v4930 = vlaneseq
      %v4931 = vshrl.u32 %v4930, 7
      %v4932 = vsub.s32 0, %v4931
      %v4933 = vrot.slane %v4928, %v4932
      %v4935 = vadd.f32 %v3668, %v4933
      %v4936 = vadd.f32 %v3669, %v4933
      %v4937 = vadd.f32 %v3670, %v4933
      %v4938 = vadd.f32 %v3671, %v4933
      %v4939 = vadd.f32 %v3672, %v4933
      %v4940 = vadd.f32 %v3673, %v4933
      %v4941 = vadd.f32 %v3674, %v4933
      %v4942 = vadd.f32 %v3675, %v4933
      %v4943 = vadd.f32 %v3676, %v4933
      %v4944 = vadd.f32 %v3677, %v4933
      %v4945 = vadd.f32 %v3678, %v4933
      %v4946 = vadd.f32 %v3679, %v4933
      %v4947 = vadd.f32 %v3680, %v4933
      %v4948 = vadd.f32 %v3681, %v4933
      %v4949 = vadd.f32 %v3682, %v4933
      %v4950 = vadd.f32 %v3683, %v4933
      %v4951 = vadd.f32 %v3684, %v4933
      %v4952 = vadd.f32 %v3685, %v4933
      %v4953 = vadd.f32 %v3686, %v4933
      %v4954 = vadd.f32 %v3687, %v4933
      %v4955 = vadd.f32 %v3688, %v4933
      %v4956 = vadd.f32 %v3689, %v4933
      %v4957 = vadd.f32 %v3690, %v4933
      %v4958 = vadd.f32 %v3691, %v4933
      %v4959 = vadd.f32 %v3692, %v4933
      %v4960 = vadd.f32 %v3693, %v4933
      %v4961 = vadd.f32 %v3694, %v4933
      %v4962 = vadd.f32 %v3695, %v4933
      %v4963 = vadd.f32 %v3696, %v4933
      %v4964 = vadd.f32 %v3697, %v4933
      %v4965 = vadd.f32 %v3698, %v4933
      %v4966 = vadd.f32 %v3699, %v4933
      %v4967 = vadd.f32 %v4935, %v3068
      %v4968 = vadd.f32 %v4936, %v3071
      %v4969 = vadd.f32 %v4937, %v3076
      %v4970 = vadd.f32 %v4938, %v3079
      %v4971 = vadd.f32 %v4939, %v3084
      %v4972 = vadd.f32 %v4940, %v3087
      %v4973 = vadd.f32 %v4941, %v3092
      %v4974 = vadd.f32 %v4942, %v3095
      %v4975 = vadd.f32 %v4943, %v3100
      %v4976 = vadd.f32 %v4944, %v3103
      %v4977 = vadd.f32 %v4945, %v3108
      %v4978 = vadd.f32 %v4946, %v3111
      %v4979 = vadd.f32 %v4947, %v3116
      %v4980 = vadd.f32 %v4948, %v3119
      %v4981 = vadd.f32 %v4949, %v3124
      %v4982 = vadd.f32 %v4950, %v3127
      %v4983 = vadd.f32 %v4951, %v3132
      %v4984 = vadd.f32 %v4952, %v3135
      %v4985 = vadd.f32 %v4953, %v3140
      %v4986 = vadd.f32 %v4954, %v3143
      %v4987 = vadd.f32 %v4955, %v3148
      %v4988 = vadd.f32 %v4956, %v3151
      %v4989 = vadd.f32 %v4957, %v3156
      %v4990 = vadd.f32 %v4958, %v3159
      %v4991 = vadd.f32 %v4959, %v3164
      %v4992 = vadd.f32 %v4960, %v3167
      %v4993 = vadd.f32 %v4961, %v3172
      %v4994 = vadd.f32 %v4962, %v3175
      %v4995 = vadd.f32 %v4963, %v3180
      %v4996 = vadd.f32 %v4964, %v3183
      %v4997 = vadd.f32 %v4965, %v3188
      %v4998 = vadd.f32 %v4966, %v3191
      %v4999 = vpack.c.bf16 %v4968, %v4967
      %v5000 = vpack.c.bf16 %v4970, %v4969
      %v5001 = vpack.c.bf16 %v4972, %v4971
      %v5002 = vpack.c.bf16 %v4974, %v4973
      %v5003 = vpack.c.bf16 %v4976, %v4975
      %v5004 = vpack.c.bf16 %v4978, %v4977
      %v5005 = vpack.c.bf16 %v4980, %v4979
      %v5006 = vpack.c.bf16 %v4982, %v4981
      %v5007 = vpack.c.bf16 %v4984, %v4983
      %v5008 = vpack.c.bf16 %v4986, %v4985
      %v5009 = vpack.c.bf16 %v4988, %v4987
      %v5010 = vpack.c.bf16 %v4990, %v4989
      %v5011 = vpack.c.bf16 %v4992, %v4991
      %v5012 = vpack.c.bf16 %v4994, %v4993
      %v5013 = vpack.c.bf16 %v4996, %v4995
      %v5014 = vpack.c.bf16 %v4998, %v4997
      %s5015 = scalar_lea.vmem %s12, 16
      %v5016 = vld [vmem:[%s5015] sm:$0xf]
      %v5017 = vld [vmem:[%s5015 + $0x4] sm:$0xf]
      %v5018 = vld [vmem:[%s5015 + $0x8] sm:$0xf]
      %v5019 = vld [vmem:[%s5015 + $0xc] sm:$0xf]
      %v5024 = vunpack.c.l.b16 %v5016
      %v5025 = vunpack.c.l.b16 %v5017
      %v5026 = vunpack.c.l.b16 %v5018
      %v5027 = vunpack.c.l.b16 %v5019
      %v5028 = vpack.c.b16 %v5025, %v5024
      %v5029 = vpack.c.b16 %v5027, %v5026
      %v5033 = vsel %vm945, %v4999, 0
      %v5036 = vsel %vm945, %v5000, 0
      %v5039 = vsel %vm945, %v5001, 0
      %v5042 = vsel %vm945, %v5002, 0
      %v5045 = vsel %vm945, %v5003, 0
      %v5048 = vsel %vm945, %v5004, 0
      %v5051 = vsel %vm945, %v5005, 0
      %v5054 = vsel %vm945, %v5006, 0
      %v5057 = vsel %vm945, %v5007, 0
      %v5060 = vsel %vm945, %v5008, 0
      %v5063 = vsel %vm945, %v5009, 0
      %v5066 = vsel %vm945, %v5010, 0
      %v5069 = vsel %vm945, %v5011, 0
      %v5072 = vsel %vm945, %v5012, 0
      %v5075 = vsel %vm945, %v5013, 0
      %v5078 = vsel %vm945, %v5014, 0
      %5080 = vmatprep.subr.bf16.mxu0 0
      %5081 = vmatpush1.bf16.msra.mxu0 %v5028
      %5082 = vmatprep.subr.bf16.mxu0 0
      %5083 = vmatpush1.bf16.msra.mxu0 %v5029
      %5084 = vmatprep.subr.bf16.mxu0 0
      %5085 = vmatpush1.bf16.msra.mxu0 0
      %5086 = vmatprep.subr.bf16.mxu0 0
      %5087 = vmatpush1.bf16.msra.mxu0 0
      %5088 = vmatprep.subr.bf16.mxu0 0
      %5089 = vmatpush1.bf16.msra.mxu0 0
      %5090 = vmatprep.subr.bf16.mxu0 0
      %5091 = vmatpush1.bf16.msra.mxu0 0
      %5092 = vmatprep.subr.bf16.mxu0 0
      %5093 = vmatpush1.bf16.msra.mxu0 0
      %5094 = vmatprep.subr.bf16.mxu0 0
      %5095 = vmatpush1.bf16.msra.mxu0 0
      %5096 = vmatprep.subr.bf16.mxu0 0
      %5097 = vmatpush1.bf16.msra.mxu0 0
      %5098 = vmatprep.subr.bf16.mxu0 0
      %5099 = vmatpush1.bf16.msra.mxu0 0
      %5100 = vmatprep.subr.bf16.mxu0 0
      %5101 = vmatpush1.bf16.msra.mxu0 0
      %5102 = vmatprep.subr.bf16.mxu0 0
      %5103 = vmatpush1.bf16.msra.mxu0 0
      %5104 = vmatprep.subr.bf16.mxu0 0
      %5105 = vmatpush1.bf16.msra.mxu0 0
      %5106 = vmatprep.subr.bf16.mxu0 0
      %5107 = vmatpush1.bf16.msra.mxu0 0
      %5108 = vmatprep.subr.bf16.mxu0 0
      %5109 = vmatpush1.bf16.msra.mxu0 0
      %5110 = vmatprep.subr.bf16.mxu0 0
      %5111 = vmatpush1.bf16.msra.mxu0 0
      %5112 = vmatprep.mubr.bf16.mxu0 0
      %5113 = vmatmul.mubr.bf16.gmra.mrb[0].mxu0 %v5033
      %v5114 = vpop.f32.mrb[0].mxu0
      %v5115 = vadd.f32 %v4967, %v5114
      %v5116 = vpop.f32.mrb[0].mxu0
      %v5117 = vpop.f32.mrb[0].mxu0
      %v5118 = vadd.f32 %v4968, %v5117
      %v5119 = vpop.f32.mrb[0].mxu0
      %5120 = vmatprep.mubr.bf16.mxu0 0
      %5121 = vmatmul.mubr.bf16.gmra.mrb[0].mxu0 %v5036
      %v5122 = vpop.f32.mrb[0].mxu0
      %v5123 = vadd.f32 %v4969, %v5122
      %v5124 = vpop.f32.mrb[0].mxu0
      %v5125 = vpop.f32.mrb[0].mxu0
      %v5126 = vadd.f32 %v4970, %v5125
      %v5127 = vpop.f32.mrb[0].mxu0
      %5128 = vmatprep.mubr.bf16.mxu0 0
      %5129 = vmatmul.mubr.bf16.gmra.mrb[0].mxu0 %v5039
      %v5130 = vpop.f32.mrb[0].mxu0
      %v5131 = vadd.f32 %v4971, %v5130
      %v5132 = vpop.f32.mrb[0].mxu0
      %v5133 = vpop.f32.mrb[0].mxu0
      %v5134 = vadd.f32 %v4972, %v5133
      %v5135 = vpop.f32.mrb[0].mxu0
      %5136 = vmatprep.mubr.bf16.mxu0 0
      %5137 = vmatmul.mubr.bf16.gmra.mrb[0].mxu0 %v5042
      %v5138 = vpop.f32.mrb[0].mxu0
      %v5139 = vadd.f32 %v4973, %v5138
      %v5140 = vpop.f32.mrb[0].mxu0
      %v5141 = vpop.f32.mrb[0].mxu0
      %v5142 = vadd.f32 %v4974, %v5141
      %v5143 = vpop.f32.mrb[0].mxu0
      %5144 = vmatprep.mubr.bf16.mxu0 0
      %5145 = vmatmul.mubr.bf16.gmra.mrb[0].mxu0 %v5045
      %v5146 = vpop.f32.mrb[0].mxu0
      %v5147 = vadd.f32 %v4975, %v5146
      %v5148 = vpop.f32.mrb[0].mxu0
      %v5149 = vpop.f32.mrb[0].mxu0
      %v5150 = vadd.f32 %v4976, %v5149
      %v5151 = vpop.f32.mrb[0].mxu0
      %5152 = vmatprep.mubr.bf16.mxu0 0
      %5153 = vmatmul.mubr.bf16.gmra.mrb[0].mxu0 %v5048
      %v5154 = vpop.f32.mrb[0].mxu0
      %v5155 = vadd.f32 %v4977, %v5154
      %v5156 = vpop.f32.mrb[0].mxu0
      %v5157 = vpop.f32.mrb[0].mxu0
      %v5158 = vadd.f32 %v4978, %v5157
      %v5159 = vpop.f32.mrb[0].mxu0
      %5160 = vmatprep.mubr.bf16.mxu0 0
      %5161 = vmatmul.mubr.bf16.gmra.mrb[0].mxu0 %v5051
      %v5162 = vpop.f32.mrb[0].mxu0
      %v5163 = vadd.f32 %v4979, %v5162
      %v5164 = vpop.f32.mrb[0].mxu0
      %v5165 = vpop.f32.mrb[0].mxu0
      %v5166 = vadd.f32 %v4980, %v5165
      %v5167 = vpop.f32.mrb[0].mxu0
      %5168 = vmatprep.mubr.bf16.mxu0 0
      %5169 = vmatmul.mubr.bf16.gmra.mrb[0].mxu0 %v5054
      %v5170 = vpop.f32.mrb[0].mxu0
      %v5171 = vadd.f32 %v4981, %v5170
      %v5172 = vpop.f32.mrb[0].mxu0
      %v5173 = vpop.f32.mrb[0].mxu0
      %v5174 = vadd.f32 %v4982, %v5173
      %v5175 = vpop.f32.mrb[0].mxu0
      %5176 = vmatprep.mubr.bf16.mxu0 0
      %5177 = vmatmul.mubr.bf16.gmra.mrb[0].mxu0 %v5057
      %v5178 = vpop.f32.mrb[0].mxu0
      %v5179 = vadd.f32 %v4983, %v5178
      %v5180 = vpop.f32.mrb[0].mxu0
      %v5181 = vpop.f32.mrb[0].mxu0
      %v5182 = vadd.f32 %v4984, %v5181
      %v5183 = vpop.f32.mrb[0].mxu0
      %5184 = vmatprep.mubr.bf16.mxu0 0
      %5185 = vmatmul.mubr.bf16.gmra.mrb[0].mxu0 %v5060
      %v5186 = vpop.f32.mrb[0].mxu0
      %v5187 = vadd.f32 %v4985, %v5186
      %v5188 = vpop.f32.mrb[0].mxu0
      %v5189 = vpop.f32.mrb[0].mxu0
      %v5190 = vadd.f32 %v4986, %v5189
      %v5191 = vpop.f32.mrb[0].mxu0
      %5192 = vmatprep.mubr.bf16.mxu0 0
      %5193 = vmatmul.mubr.bf16.gmra.mrb[0].mxu0 %v5063
      %v5194 = vpop.f32.mrb[0].mxu0
      %v5195 = vadd.f32 %v4987, %v5194
      %v5196 = vpop.f32.mrb[0].mxu0
      %v5197 = vpop.f32.mrb[0].mxu0
      %v5198 = vadd.f32 %v4988, %v5197
      %v5199 = vpop.f32.mrb[0].mxu0
      %5200 = vmatprep.mubr.bf16.mxu0 0
      %5201 = vmatmul.mubr.bf16.gmra.mrb[0].mxu0 %v5066
      %v5202 = vpop.f32.mrb[0].mxu0
      %v5203 = vadd.f32 %v4989, %v5202
      %v5204 = vpop.f32.mrb[0].mxu0
      %v5205 = vpop.f32.mrb[0].mxu0
      %v5206 = vadd.f32 %v4990, %v5205
      %v5207 = vpop.f32.mrb[0].mxu0
      %5208 = vmatprep.mubr.bf16.mxu0 0
      %5209 = vmatmul.mubr.bf16.gmra.mrb[0].mxu0 %v5069
      %v5210 = vpop.f32.mrb[0].mxu0
      %v5211 = vadd.f32 %v4991, %v5210
      %v5212 = vpop.f32.mrb[0].mxu0
      %v5213 = vpop.f32.mrb[0].mxu0
      %v5214 = vadd.f32 %v4992, %v5213
      %v5215 = vpop.f32.mrb[0].mxu0
      %5216 = vmatprep.mubr.bf16.mxu0 0
      %5217 = vmatmul.mubr.bf16.gmra.mrb[0].mxu0 %v5072
      %v5218 = vpop.f32.mrb[0].mxu0
      %v5219 = vadd.f32 %v4993, %v5218
      %v5220 = vpop.f32.mrb[0].mxu0
      %v5221 = vpop.f32.mrb[0].mxu0
      %v5222 = vadd.f32 %v4994, %v5221
      %v5223 = vpop.f32.mrb[0].mxu0
      %5224 = vmatprep.mubr.bf16.mxu0 0
      %5225 = vmatmul.mubr.bf16.gmra.mrb[0].mxu0 %v5075
      %v5226 = vpop.f32.mrb[0].mxu0
      %v5227 = vadd.f32 %v4995, %v5226
      %v5228 = vpop.f32.mrb[0].mxu0
      %v5229 = vpop.f32.mrb[0].mxu0
      %v5230 = vadd.f32 %v4996, %v5229
      %v5231 = vpop.f32.mrb[0].mxu0
      %5232 = vmatprep.mubr.bf16.mxu0 0
      %5233 = vmatmul.mubr.bf16.gmra.mrb[0].mxu0 %v5078
      %v5234 = vpop.f32.mrb[0].mxu0
      %v5235 = vadd.f32 %v4997, %v5234
      %v5236 = vpop.f32.mrb[0].mxu0
      %v5237 = vpop.f32.mrb[0].mxu0
      %v5238 = vadd.f32 %v4998, %v5237
      %v5239 = vpop.f32.mrb[0].mxu0
      %5240 = vdwg.mxu0
      %5241 = vst.msk [vmem:[%s440] sm:$0xff] %vm945, %v5115
      %5242 = vst.msk [vmem:[%s440 + $0x8] sm:$0xff] %vm945, %v5118
      %5243 = vst.msk [vmem:[%s440 + $0x10] sm:$0xff] %vm945, %v5123
      %5244 = vst.msk [vmem:[%s440 + $0x18] sm:$0xff] %vm945, %v5126
      %5245 = vst.msk [vmem:[%s440 + $0x20] sm:$0xff] %vm945, %v5131
      %5246 = vst.msk [vmem:[%s440 + $0x28] sm:$0xff] %vm945, %v5134
      %5247 = vst.msk [vmem:[%s440 + $0x30] sm:$0xff] %vm945, %v5139
      %5248 = vst.msk [vmem:[%s440 + $0x38] sm:$0xff] %vm945, %v5142
      %5249 = vst.msk [vmem:[%s440 + $0x40] sm:$0xff] %vm945, %v5147
      %5250 = vst.msk [vmem:[%s440 + $0x48] sm:$0xff] %vm945, %v5150
      %5251 = vst.msk [vmem:[%s440 + $0x50] sm:$0xff] %vm945, %v5155
      %5252 = vst.msk [vmem:[%s440 + $0x58] sm:$0xff] %vm945, %v5158
      %5253 = vst.msk [vmem:[%s440 + $0x60] sm:$0xff] %vm945, %v5163
      %5254 = vst.msk [vmem:[%s440 + $0x68] sm:$0xff] %vm945, %v5166
      %5255 = vst.msk [vmem:[%s440 + $0x70] sm:$0xff] %vm945, %v5171
      %5256 = vst.msk [vmem:[%s440 + $0x78] sm:$0xff] %vm945, %v5174
      %5257 = vst.msk [vmem:[%s440 + $0x80] sm:$0xff] %vm945, %v5179
      %5258 = vst.msk [vmem:[%s440 + $0x88] sm:$0xff] %vm945, %v5182
      %5259 = vst.msk [vmem:[%s440 + $0x90] sm:$0xff] %vm945, %v5187
      %5260 = vst.msk [vmem:[%s440 + $0x98] sm:$0xff] %vm945, %v5190
      %5261 = vst.msk [vmem:[%s440 + $0xa0] sm:$0xff] %vm945, %v5195
      %5262 = vst.msk [vmem:[%s440 + $0xa8] sm:$0xff] %vm945, %v5198
      %5263 = vst.msk [vmem:[%s440 + $0xb0] sm:$0xff] %vm945, %v5203
      %5264 = vst.msk [vmem:[%s440 + $0xb8] sm:$0xff] %vm945, %v5206
      %5265 = vst.msk [vmem:[%s440 + $0xc0] sm:$0xff] %vm945, %v5211
      %5266 = vst.msk [vmem:[%s440 + $0xc8] sm:$0xff] %vm945, %v5214
      %5267 = vst.msk [vmem:[%s440 + $0xd0] sm:$0xff] %vm945, %v5219
      %5268 = vst.msk [vmem:[%s440 + $0xd8] sm:$0xff] %vm945, %v5222
      %5269 = vst.msk [vmem:[%s440 + $0xe0] sm:$0xff] %vm945, %v5227
      %5270 = vst.msk [vmem:[%s440 + $0xe8] sm:$0xff] %vm945, %v5230
      %5271 = vst.msk [vmem:[%s440 + $0xf0] sm:$0xff] %vm945, %v5235
      %5272 = vst.msk [vmem:[%s440 + $0xf8] sm:$0xff] %vm945, %v5238
      %p5273 = scmp.lt.s32.totalorder %s24, 1
      %s5274 = scalar_select %p5273, %s24, 1
      %s5275 = smul.addr %s5274, 32
      %s5276 = smul.addr %s5275, 8
      %s5277 = scalar_lea.vmem %s13, %s5276
      // Predicated region
      $region87: #{tpu_custom_call.1} parent=71 // pred_check
        %p5278 = pneg %p320
      $region88: #{tpu_custom_call.1} parent=71 // pred_check_branch
        %5280 = sbr.rel (%p5278) target = $region90
      $region89: #{tpu_custom_call.1} parent=71 // pred_region
        _
      $region90: #{tpu_custom_call.1} parent=71 // pred_fallthru
        _
    $region72: #{tpu_custom_call.1} parent=5 // pred_fallthru
      _
    %p5281 = scmp.le.s32.totalorder 2, %s19
    // Predicated region
    $region91: #{tpu_custom_call.1} parent=5 // pred_check
      %p5282 = pneg %p5281
    $region92: #{tpu_custom_call.1} parent=5 // pred_check_branch
      %5284 = sbr.rel (%p5282) target = $region94
    $region93: #{tpu_custom_call.1} parent=5 // pred_region
      %s5285 = ssub.s32 %s19, 2
      // Predicated region
      $region95: #{tpu_custom_call.1} parent=93 // pred_check
        %p5286 = pneg %p326
      $region96: #{tpu_custom_call.1} parent=93 // pred_check_branch
        %5288 = sbr.rel (%p5286) target = $region98
      $region97: #{tpu_custom_call.1} parent=93 // pred_region
        %p5289 = scmp.lt.s32.totalorder %s25, 1
        %s5290 = scalar_select %p5289, %s25, 1
        %s5291 = smul.addr %s5290, 32
        %s5292 = smul.addr %s5291, 8
        %s5293 = scalar_lea.vmem %s13, %s5292
      $region98: #{tpu_custom_call.1} parent=93 // pred_fallthru
        _
    $region94: #{tpu_custom_call.1} parent=5 // pred_fallthru
      _
  $region6: #{tpu_custom_call.1} parent=0 // loop_footer
    %s23 = sadd.s32 1, %s19
  $region7: #{tpu_custom_call.1} parent=0 // loop_footer_branch
    %18 = sbr.rel target = $region3
  $region8: #{tpu_custom_call.1} parent=0 // loop_exit
    _

</llo_original>
